<compile_context>
chip_gen: v7x
topology: tpu7x:2x2x1
jax: 0.10.0
libtpu: 0.0.40
codegen_flags: <defaults>
</compile_context>

<pallas_src>
import functools

import jax
import jax.numpy as jnp
import numpy as np
from jax.experimental import pallas as pl
from jax.experimental.pallas import tpu as pltpu

BN_EPS = 1e-5
# One-pass (sum, sum-of-squares) BN statistics: both reductions are independent
# and pipeline back-to-back through the XLU.  Set False for PyTorch's two-pass
# centered variance (reduce -> subtract -> reduce, serialized but bit-faithful).
ONE_PASS_BN = True
_HIGHEST = jax.lax.Precision.HIGHEST


def _make_bn(b_real, mask2, mask3, one_pass):
    """BatchNorm1d (training mode): batch stats, biased variance, eps=1e-5.

    Stats only count the first `b_real` rows; mask2/mask3 handle the sublane
    padding of the batch (they are None when B is already a multiple of 8).
    """
    inv_n = jnp.float32(1.0 / b_real)

    def stats(v, axis):
        mask = mask3 if v.ndim == 3 else mask2
        vm = v if mask is None else v * mask
        mean = jnp.sum(vm, axis=axis, keepdims=True) * inv_n
        if one_pass:
            ex2 = jnp.sum(vm * vm, axis=axis, keepdims=True) * inv_n
            var = ex2 - mean * mean
        else:
            c = v - mean
            if mask is not None:
                c = c * mask
            var = jnp.sum(c * c, axis=axis, keepdims=True) * inv_n
        return mean, var

    def apply(v, mean, var, gamma, beta):
        scale = gamma * jax.lax.rsqrt(var + jnp.float32(BN_EPS))   # EUP rsqrt
        return (v - mean) * scale + beta

    return stats, apply


def _indrnn_kernel(T, B, Bp, layer_num, one_pass_bn,
                   x_ref,                                   # (T*Bp, D) time-major
                   w0_ref, b0_ref, u0_ref, g10_ref, be10_ref, g20_ref, be20_ref,
                   wm_ref, bm_ref, um_ref, g1m_ref, be1m_ref, g2m_ref, be2m_ref,
                   wf_ref, bf_ref,
                   out_ref,
                   traj_ref):                               # VMEM (T, Bp, H) scratch
    # Hoist all parameter loads once (JAX does not CSE broadcasts/loads).
    w0, b0, u0 = w0_ref[...], b0_ref[...], u0_ref[...]
    g10, be10, g20, be20 = g10_ref[...], be10_ref[...], g20_ref[...], be20_ref[...]
    wm, bm, um = wm_ref[...], bm_ref[...], um_ref[...]
    g1m, be1m, g2m, be2m = g1m_ref[...], be1m_ref[...], g2m_ref[...], be2m_ref[...]
    H = w0.shape[1]

    if Bp != B:   # batch was padded to a sublane multiple -> mask the BN stats
        mask2 = (jax.lax.broadcasted_iota(jnp.int32, (Bp, 1), 0) < B
                 ).astype(jnp.float32)
        mask3 = mask2.reshape(1, Bp, 1)
    else:
        mask2 = mask3 = None
    bn_stats, bn_apply = _make_bn(B, mask2, mask3, one_pass_bn)

    def projected_bn1(inp, w, b, gamma, beta):
        # One batched MXU matmul + one vectorized BN1 for ALL T time steps of a
        # layer: none of this sits on the serial recurrence chain.
        pre = jnp.dot(inp, w, preferred_element_type=jnp.float32,
                      precision=_HIGHEST) + b                       # (T*Bp, H)
        pre = pre.reshape(T, Bp, H)
        mean, var = bn_stats(pre, axis=1)       # per-time-step stats over batch
        return bn_apply(pre, mean, var, gamma, beta)                # (T, Bp, H)

    def recur(pre, u, gamma2, beta2, store):
        # Serial IndRNN recurrence of ONE layer: only elementwise work + BN2.
        # T is small & static -> fully unrolled so the scheduler sees the whole
        # DAG.  TODO(synk): switch to lax.fori_loop(..., unroll=k) if T grows
        # enough for the unrolled live ranges to spill (review opt 6).
        h = jnp.zeros((Bp, H), jnp.float32)
        for t in range(T):
            z = pre[t] + h * u              # hidden @ diag(u) == hidden * u_row
            z = jnp.maximum(z, 0.0)         # F.relu
            mean, var = bn_stats(z, axis=0)
            h = bn_apply(z, mean, var, gamma2, beta2)
            if store:
                traj_ref[t] = h             # leading-axis store: always aligned
        return h

    # ---- layer 0 (its own cell parameters) ----
    pre0 = projected_bn1(x_ref[...], w0, b0, g10, be10)
    h = recur(pre0, u0, g20, be20, store=layer_num > 1)

    # ---- layers 1..L-1: one shared middle cell (PyTorch `list * k` quirk) ----
    for j in range(1, layer_num):
        inp = traj_ref[...].reshape(T * Bp, H)   # previous layer's trajectory
        prem = projected_bn1(inp, wm, bm, g1m, be1m)
        h = recur(prem, um, g2m, be2m, store=j < layer_num - 1)

    # ---- epilogue: fc + log_softmax(dim=1) on last layer's final hidden ----
    logits = jnp.dot(h, wf_ref[...], preferred_element_type=jnp.float32,
                     precision=_HIGHEST) + bf_ref[...]
    m = jnp.max(logits, axis=1, keepdims=True)
    shifted = logits - m
    out_ref[...] = shifted - jnp.log(jnp.sum(jnp.exp(shifted), axis=1,
                                             keepdims=True))


@functools.partial(jax.jit, static_argnums=(2,))
def indrnn_forward(x, params, layer_num):
    """x: (B, T, D) float32 -> (B, O) float32 log-probabilities."""
    B, T, D = x.shape
    H = params["w0T"].shape[1]
    O = params["wfT"].shape[1]

    # Sublane-align the per-time-step batch blocks (review opt 4).  BN stats in
    # the kernel are masked to the real B, so padding never changes the math.
    Bp = ((B + 7) // 8) * 8
    xt = jnp.transpose(x, (1, 0, 2))                 # time-major (T, B, D)
    if Bp != B:
        xt = jnp.pad(xt, ((0, 0), (0, Bp - B), (0, 0)))
    x_flat = xt.reshape(T * Bp, D)                   # one big layer-0 matmul operand

    param_order = ["w0T", "b0", "u0", "g1_0", "be1_0", "g2_0", "be2_0",
                   "wmT", "bm", "um", "g1_m", "be1_m", "g2_m", "be2_m",
                   "wfT", "bf"]
    param_vals = [params[k] for k in param_order]

    # Single invocation: every operand is tiny, loaded whole into VMEM.
    # Scaling notes (review opts 5-8):
    #  * large T / T*B: grid over T ('arbitrary') with the hidden states carried
    #    in VMEM scratch and x streamed via BlockSpec pipelining; set
    #    CompilerParams(vmem_limit_bytes=...) explicitly -- v7x has only 64 MiB
    #    physical VMEM, so do not keep pre-activations for all T resident.
    #  * do NOT split the batch across cores/grid axes: training-mode BN stats
    #    span the full batch.  Shard along the layer/wavefront axis instead, or
    #    cross-core-reduce (sum, sum_sq) before normalizing.
    #  * real configs should round H (and O) up to lane multiples of 128 (or
    #    pack layers along lanes); at H=32/O=8 the VPU/XLU are lane-underused.
    vmem = pl.BlockSpec(memory_space=pltpu.MemorySpace.VMEM)
    out = pl.pallas_call(
        functools.partial(_indrnn_kernel, T, B, Bp, layer_num, ONE_PASS_BN),
        out_shape=jax.ShapeDtypeStruct((Bp, O), jnp.float32),
        in_specs=[vmem] * (1 + len(param_vals)),
        out_specs=vmem,
        scratch_shapes=[pltpu.VMEM((T, Bp, H), jnp.float32)],
    )(x_flat, *param_vals)
    return out[:B]


def indrnn_reference(x, params, layer_num):
    """Pure-JAX reference replicating the PyTorch forward semantics
    (two-pass centered BN variance; hidden @ diag(u) == hidden * u_row)."""
    B, T, _ = x.shape
    H = params["w0T"].shape[1]

    def bn(v, gamma, beta):
        mean = jnp.mean(v, axis=0, keepdims=True)
        c = v - mean
        var = jnp.mean(c * c, axis=0, keepdims=True)
        return c * (gamma * jax.lax.rsqrt(var + BN_EPS)) + beta

    h = [jnp.zeros((B, H), jnp.float32) for _ in range(layer_num)]
    for i in range(T):
        cur = x[:, i, :]
        for j in range(layer_num):
            if j == 0:
                wT, b, u = params["w0T"], params["b0"], params["u0"]
                g1, be1, g2, be2 = (params["g1_0"], params["be1_0"],
                                    params["g2_0"], params["be2_0"])
            else:
                wT, b, u = params["wmT"], params["bm"], params["um"]
                g1, be1, g2, be2 = (params["g1_m"], params["be1_m"],
                                    params["g2_m"], params["be2_m"])
            out = jnp.dot(cur, wT, precision=_HIGHEST) + b
            out = bn(out, g1, be1)
            out = out + h[j] * u
            out = jnp.maximum(out, 0.0)
            out = bn(out, g2, be2)
            h[j] = out
            cur = out
    logits = jnp.dot(h[-1], params["wfT"], precision=_HIGHEST) + params["bf"]
    m = jnp.max(logits, axis=1, keepdims=True)
    shifted = logits - m
    return shifted - jnp.log(jnp.sum(jnp.exp(shifted), axis=1, keepdims=True))


if __name__ == "__main__":
    # batch, seq, inputDim, hiddenNum, outputDim, layerNum
    B, T, D, H, O, L = 8, 8, 16, 32, 8, 3

    key = jax.random.PRNGKey(0)
    ks = jax.random.split(key, 9)
    params = {
        # first cell: Linear(inputDim, hiddenNum)
        "w0T":   jax.random.normal(ks[0], (D, H), jnp.float32) * 0.1,
        "b0":    jax.random.normal(ks[1], (1, H), jnp.float32) * 0.1,
        "u0":    jax.random.normal(ks[2], (1, H), jnp.float32),   # diag of u
        "g1_0":  jnp.ones((1, H), jnp.float32),
        "be1_0": jnp.zeros((1, H), jnp.float32),
        "g2_0":  jnp.ones((1, H), jnp.float32),
        "be2_0": jnp.zeros((1, H), jnp.float32),
        # shared middle cell: Linear(hiddenNum, hiddenNum)
        "wmT":   jax.random.normal(ks[3], (H, H), jnp.float32) * 0.1,
        "bm":    jax.random.normal(ks[4], (1, H), jnp.float32) * 0.1,
        "um":    jax.random.normal(ks[5], (1, H), jnp.float32),   # diag of u
        "g1_m":  jnp.ones((1, H), jnp.float32),
        "be1_m": jnp.zeros((1, H), jnp.float32),
        "g2_m":  jnp.ones((1, H), jnp.float32),
        "be2_m": jnp.zeros((1, H), jnp.float32),
        # fc: Linear(hiddenNum, outputDim)
        "wfT":   jax.random.normal(ks[6], (H, O), jnp.float32) * 0.1,
        "bf":    jax.random.normal(ks[7], (1, O), jnp.float32) * 0.1,
    }
    x = jax.random.normal(ks[8], (B, T, D), jnp.float32)

    out = jax.block_until_ready(indrnn_forward(x, params, L))

    ref = indrnn_reference(x, params, L)
    # 2e-4 tolerance: tiny drift allowed for one-pass BN variance vs PyTorch's
    # two-pass centered variance in the reference.
    np.testing.assert_allclose(np.asarray(out), np.asarray(ref),
                               atol=2e-4, rtol=2e-4)
    print("KERNEL_OK")
</pallas_src>

<mosaic_0001>
module attributes {stable_mosaic.version = 11 : i64} {
  func.func @_indrnn_kernel(%arg0: memref<64x16xf32, #tpu.memory_space<vmem>>, %arg1: memref<16x32xf32, #tpu.memory_space<vmem>>, %arg2: memref<1x32xf32, #tpu.memory_space<vmem>>, %arg3: memref<1x32xf32, #tpu.memory_space<vmem>>, %arg4: memref<1x32xf32, #tpu.memory_space<vmem>>, %arg5: memref<1x32xf32, #tpu.memory_space<vmem>>, %arg6: memref<1x32xf32, #tpu.memory_space<vmem>>, %arg7: memref<1x32xf32, #tpu.memory_space<vmem>>, %arg8: memref<32x32xf32, #tpu.memory_space<vmem>>, %arg9: memref<1x32xf32, #tpu.memory_space<vmem>>, %arg10: memref<1x32xf32, #tpu.memory_space<vmem>>, %arg11: memref<1x32xf32, #tpu.memory_space<vmem>>, %arg12: memref<1x32xf32, #tpu.memory_space<vmem>>, %arg13: memref<1x32xf32, #tpu.memory_space<vmem>>, %arg14: memref<1x32xf32, #tpu.memory_space<vmem>>, %arg15: memref<32x8xf32, #tpu.memory_space<vmem>>, %arg16: memref<1x8xf32, #tpu.memory_space<vmem>>, %arg17: memref<8x8xf32, #tpu.memory_space<vmem>>, %arg18: memref<8x8x32xf32, #tpu.memory_space<vmem>>) attributes {dimension_semantics = [], scalar_prefetch = 0 : i64, scratch_operands = 1 : i64, tpu.core_type = #tpu.core_type<tc>} {
    %c0 = arith.constant 0 : index
    %c0_0 = arith.constant 0 : index
    %0 = vector.load %arg1[%c0, %c0_0] : memref<16x32xf32, #tpu.memory_space<vmem>>, vector<16x32xf32>
    %c0_1 = arith.constant 0 : index
    %c0_2 = arith.constant 0 : index
    %1 = vector.load %arg2[%c0_1, %c0_2] : memref<1x32xf32, #tpu.memory_space<vmem>>, vector<1x32xf32>
    %c0_3 = arith.constant 0 : index
    %c0_4 = arith.constant 0 : index
    %2 = vector.load %arg3[%c0_3, %c0_4] : memref<1x32xf32, #tpu.memory_space<vmem>>, vector<1x32xf32>
    %c0_5 = arith.constant 0 : index
    %c0_6 = arith.constant 0 : index
    %3 = vector.load %arg4[%c0_5, %c0_6] : memref<1x32xf32, #tpu.memory_space<vmem>>, vector<1x32xf32>
    %c0_7 = arith.constant 0 : index
    %c0_8 = arith.constant 0 : index
    %4 = vector.load %arg5[%c0_7, %c0_8] : memref<1x32xf32, #tpu.memory_space<vmem>>, vector<1x32xf32>
    %c0_9 = arith.constant 0 : index
    %c0_10 = arith.constant 0 : index
    %5 = vector.load %arg6[%c0_9, %c0_10] : memref<1x32xf32, #tpu.memory_space<vmem>>, vector<1x32xf32>
    %c0_11 = arith.constant 0 : index
    %c0_12 = arith.constant 0 : index
    %6 = vector.load %arg7[%c0_11, %c0_12] : memref<1x32xf32, #tpu.memory_space<vmem>>, vector<1x32xf32>
    %c0_13 = arith.constant 0 : index
    %c0_14 = arith.constant 0 : index
    %7 = vector.load %arg8[%c0_13, %c0_14] : memref<32x32xf32, #tpu.memory_space<vmem>>, vector<32x32xf32>
    %c0_15 = arith.constant 0 : index
    %c0_16 = arith.constant 0 : index
    %8 = vector.load %arg9[%c0_15, %c0_16] : memref<1x32xf32, #tpu.memory_space<vmem>>, vector<1x32xf32>
    %c0_17 = arith.constant 0 : index
    %c0_18 = arith.constant 0 : index
    %9 = vector.load %arg10[%c0_17, %c0_18] : memref<1x32xf32, #tpu.memory_space<vmem>>, vector<1x32xf32>
    %c0_19 = arith.constant 0 : index
    %c0_20 = arith.constant 0 : index
    %10 = vector.load %arg11[%c0_19, %c0_20] : memref<1x32xf32, #tpu.memory_space<vmem>>, vector<1x32xf32>
    %c0_21 = arith.constant 0 : index
    %c0_22 = arith.constant 0 : index
    %11 = vector.load %arg12[%c0_21, %c0_22] : memref<1x32xf32, #tpu.memory_space<vmem>>, vector<1x32xf32>
    %c0_23 = arith.constant 0 : index
    %c0_24 = arith.constant 0 : index
    %12 = vector.load %arg13[%c0_23, %c0_24] : memref<1x32xf32, #tpu.memory_space<vmem>>, vector<1x32xf32>
    %c0_25 = arith.constant 0 : index
    %c0_26 = arith.constant 0 : index
    %13 = vector.load %arg14[%c0_25, %c0_26] : memref<1x32xf32, #tpu.memory_space<vmem>>, vector<1x32xf32>
    %c0_27 = arith.constant 0 : index
    %c0_28 = arith.constant 0 : index
    %14 = vector.load %arg0[%c0_27, %c0_28] : memref<64x16xf32, #tpu.memory_space<vmem>>, vector<64x16xf32>
    %cst = arith.constant dense<0.000000e+00> : vector<64x32xf32>
    %15 = tpu.matmul %14, %0, %cst {dimension_numbers = #tpu.dot_dimension_numbers<[1], [0], [0], [1], [0, 0, 1, 1], [], []>, precision = #tpu.contract_precision<fp32>} : vector<64x16xf32>, vector<16x32xf32>, vector<64x32xf32> -> vector<64x32xf32>
    %16 = vector.broadcast %1 : vector<1x32xf32> to vector<64x32xf32>
    %17 = arith.addf %15, %16 : vector<64x32xf32>
    %18 = vector.shape_cast %17 : vector<64x32xf32> to vector<8x8x32xf32>
    %cst_29 = arith.constant dense<0.000000e+00> : vector<8x32xf32>
    %19 = vector.multi_reduction <add>, %18, %cst_29 [1] : vector<8x8x32xf32> to vector<8x32xf32>
    %20 = vector.shape_cast %19 : vector<8x32xf32> to vector<8x1x32xf32>
    %cst_30 = arith.constant 1.250000e-01 : f32
    %21 = vector.broadcast %cst_30 : f32 to vector<8x1x32xf32>
    %22 = arith.mulf %20, %21 : vector<8x1x32xf32>
    %23 = arith.mulf %18, %18 : vector<8x8x32xf32>
    %cst_31 = arith.constant dense<0.000000e+00> : vector<8x32xf32>
    %24 = vector.multi_reduction <add>, %23, %cst_31 [1] : vector<8x8x32xf32> to vector<8x32xf32>
    %25 = vector.shape_cast %24 : vector<8x32xf32> to vector<8x1x32xf32>
    %cst_32 = arith.constant 1.250000e-01 : f32
    %26 = vector.broadcast %cst_32 : f32 to vector<8x1x32xf32>
    %27 = arith.mulf %25, %26 : vector<8x1x32xf32>
    %28 = arith.mulf %22, %22 : vector<8x1x32xf32>
    %29 = arith.subf %27, %28 : vector<8x1x32xf32>
    %cst_33 = arith.constant 9.99999974E-6 : f32
    %30 = vector.broadcast %cst_33 : f32 to vector<8x1x32xf32>
    %31 = arith.addf %29, %30 : vector<8x1x32xf32>
    %32 = math.rsqrt %31 : vector<8x1x32xf32>
    %33 = vector.shape_cast %3 : vector<1x32xf32> to vector<1x1x32xf32>
    %34 = vector.broadcast %33 : vector<1x1x32xf32> to vector<8x1x32xf32>
    %35 = arith.mulf %34, %32 : vector<8x1x32xf32>
    %36 = vector.broadcast %22 : vector<8x1x32xf32> to vector<8x8x32xf32>
    %37 = arith.subf %18, %36 : vector<8x8x32xf32>
    %38 = vector.broadcast %35 : vector<8x1x32xf32> to vector<8x8x32xf32>
    %39 = arith.mulf %37, %38 : vector<8x8x32xf32>
    %40 = vector.shape_cast %4 : vector<1x32xf32> to vector<1x1x32xf32>
    %41 = vector.broadcast %40 : vector<1x1x32xf32> to vector<8x8x32xf32>
    %42 = arith.addf %39, %41 : vector<8x8x32xf32>
    %cst_34 = arith.constant 0.000000e+00 : f32
    %43 = vector.broadcast %cst_34 : f32 to vector<8x32xf32>
    %44 = vector.extract_strided_slice %42 {offsets = [0, 0, 0], sizes = [1, 8, 32], strides = [1, 1, 1]} : vector<8x8x32xf32> to vector<1x8x32xf32>
    %45 = vector.shape_cast %44 : vector<1x8x32xf32> to vector<8x32xf32>
    %46 = vector.broadcast %2 : vector<1x32xf32> to vector<8x32xf32>
    %47 = arith.mulf %43, %46 : vector<8x32xf32>
    %48 = arith.addf %45, %47 : vector<8x32xf32>
    %cst_35 = arith.constant 0.000000e+00 : f32
    %49 = vector.broadcast %cst_35 : f32 to vector<8x32xf32>
    %50 = arith.maximumf %48, %49 : vector<8x32xf32>
    %cst_36 = arith.constant dense<0.000000e+00> : vector<32xf32>
    %51 = vector.multi_reduction <add>, %50, %cst_36 [0] : vector<8x32xf32> to vector<32xf32>
    %52 = vector.shape_cast %51 : vector<32xf32> to vector<1x32xf32>
    %cst_37 = arith.constant 1.250000e-01 : f32
    %53 = vector.broadcast %cst_37 : f32 to vector<1x32xf32>
    %54 = arith.mulf %52, %53 : vector<1x32xf32>
    %55 = arith.mulf %50, %50 : vector<8x32xf32>
    %cst_38 = arith.constant dense<0.000000e+00> : vector<32xf32>
    %56 = vector.multi_reduction <add>, %55, %cst_38 [0] : vector<8x32xf32> to vector<32xf32>
    %57 = vector.shape_cast %56 : vector<32xf32> to vector<1x32xf32>
    %cst_39 = arith.constant 1.250000e-01 : f32
    %58 = vector.broadcast %cst_39 : f32 to vector<1x32xf32>
    %59 = arith.mulf %57, %58 : vector<1x32xf32>
    %60 = arith.mulf %54, %54 : vector<1x32xf32>
    %61 = arith.subf %59, %60 : vector<1x32xf32>
    %cst_40 = arith.constant 9.99999974E-6 : f32
    %62 = vector.broadcast %cst_40 : f32 to vector<1x32xf32>
    %63 = arith.addf %61, %62 : vector<1x32xf32>
    %64 = math.rsqrt %63 : vector<1x32xf32>
    %65 = arith.mulf %5, %64 : vector<1x32xf32>
    %66 = vector.broadcast %54 : vector<1x32xf32> to vector<8x32xf32>
    %67 = arith.subf %50, %66 : vector<8x32xf32>
    %68 = vector.broadcast %65 : vector<1x32xf32> to vector<8x32xf32>
    %69 = arith.mulf %67, %68 : vector<8x32xf32>
    %70 = vector.broadcast %6 : vector<1x32xf32> to vector<8x32xf32>
    %71 = arith.addf %69, %70 : vector<8x32xf32>
    %c0_41 = arith.constant 0 : index
    %c0_42 = arith.constant 0 : index
    %c0_43 = arith.constant 0 : index
    %72 = vector.load %arg18[%c0_41, %c0_42, %c0_43] : memref<8x8x32xf32, #tpu.memory_space<vmem>>, vector<1x8x32xf32>
    %73 = vector.shape_cast %72 : vector<1x8x32xf32> to vector<8x32xf32>
    %74 = vector.shape_cast %71 : vector<8x32xf32> to vector<1x8x32xf32>
    tpu.vector_store %arg18[%c0_41, %c0_42, %c0_43], %74 {strides = array<i32>} : memref<8x8x32xf32, #tpu.memory_space<vmem>>, vector<1x8x32xf32>,
    %75 = vector.extract_strided_slice %42 {offsets = [1, 0, 0], sizes = [1, 8, 32], strides = [1, 1, 1]} : vector<8x8x32xf32> to vector<1x8x32xf32>
    %76 = vector.shape_cast %75 : vector<1x8x32xf32> to vector<8x32xf32>
    %77 = vector.broadcast %2 : vector<1x32xf32> to vector<8x32xf32>
    %78 = arith.mulf %71, %77 : vector<8x32xf32>
    %79 = arith.addf %76, %78 : vector<8x32xf32>
    %cst_44 = arith.constant 0.000000e+00 : f32
    %80 = vector.broadcast %cst_44 : f32 to vector<8x32xf32>
    %81 = arith.maximumf %79, %80 : vector<8x32xf32>
    %cst_45 = arith.constant dense<0.000000e+00> : vector<32xf32>
    %82 = vector.multi_reduction <add>, %81, %cst_45 [0] : vector<8x32xf32> to vector<32xf32>
    %83 = vector.shape_cast %82 : vector<32xf32> to vector<1x32xf32>
    %cst_46 = arith.constant 1.250000e-01 : f32
    %84 = vector.broadcast %cst_46 : f32 to vector<1x32xf32>
    %85 = arith.mulf %83, %84 : vector<1x32xf32>
    %86 = arith.mulf %81, %81 : vector<8x32xf32>
    %cst_47 = arith.constant dense<0.000000e+00> : vector<32xf32>
    %87 = vector.multi_reduction <add>, %86, %cst_47 [0] : vector<8x32xf32> to vector<32xf32>
    %88 = vector.shape_cast %87 : vector<32xf32> to vector<1x32xf32>
    %cst_48 = arith.constant 1.250000e-01 : f32
    %89 = vector.broadcast %cst_48 : f32 to vector<1x32xf32>
    %90 = arith.mulf %88, %89 : vector<1x32xf32>
    %91 = arith.mulf %85, %85 : vector<1x32xf32>
    %92 = arith.subf %90, %91 : vector<1x32xf32>
    %cst_49 = arith.constant 9.99999974E-6 : f32
    %93 = vector.broadcast %cst_49 : f32 to vector<1x32xf32>
    %94 = arith.addf %92, %93 : vector<1x32xf32>
    %95 = math.rsqrt %94 : vector<1x32xf32>
    %96 = arith.mulf %5, %95 : vector<1x32xf32>
    %97 = vector.broadcast %85 : vector<1x32xf32> to vector<8x32xf32>
    %98 = arith.subf %81, %97 : vector<8x32xf32>
    %99 = vector.broadcast %96 : vector<1x32xf32> to vector<8x32xf32>
    %100 = arith.mulf %98, %99 : vector<8x32xf32>
    %101 = vector.broadcast %6 : vector<1x32xf32> to vector<8x32xf32>
    %102 = arith.addf %100, %101 : vector<8x32xf32>
    %c1 = arith.constant 1 : index
    %c0_50 = arith.constant 0 : index
    %c0_51 = arith.constant 0 : index
    %103 = vector.load %arg18[%c1, %c0_50, %c0_51] : memref<8x8x32xf32, #tpu.memory_space<vmem>>, vector<1x8x32xf32>
    %104 = vector.shape_cast %103 : vector<1x8x32xf32> to vector<8x32xf32>
    %105 = vector.shape_cast %102 : vector<8x32xf32> to vector<1x8x32xf32>
    tpu.vector_store %arg18[%c1, %c0_50, %c0_51], %105 {strides = array<i32>} : memref<8x8x32xf32, #tpu.memory_space<vmem>>, vector<1x8x32xf32>,
    %106 = vector.extract_strided_slice %42 {offsets = [2, 0, 0], sizes = [1, 8, 32], strides = [1, 1, 1]} : vector<8x8x32xf32> to vector<1x8x32xf32>
    %107 = vector.shape_cast %106 : vector<1x8x32xf32> to vector<8x32xf32>
    %108 = vector.broadcast %2 : vector<1x32xf32> to vector<8x32xf32>
    %109 = arith.mulf %102, %108 : vector<8x32xf32>
    %110 = arith.addf %107, %109 : vector<8x32xf32>
    %cst_52 = arith.constant 0.000000e+00 : f32
    %111 = vector.broadcast %cst_52 : f32 to vector<8x32xf32>
    %112 = arith.maximumf %110, %111 : vector<8x32xf32>
    %cst_53 = arith.constant dense<0.000000e+00> : vector<32xf32>
    %113 = vector.multi_reduction <add>, %112, %cst_53 [0] : vector<8x32xf32> to vector<32xf32>
    %114 = vector.shape_cast %113 : vector<32xf32> to vector<1x32xf32>
    %cst_54 = arith.constant 1.250000e-01 : f32
    %115 = vector.broadcast %cst_54 : f32 to vector<1x32xf32>
    %116 = arith.mulf %114, %115 : vector<1x32xf32>
    %117 = arith.mulf %112, %112 : vector<8x32xf32>
    %cst_55 = arith.constant dense<0.000000e+00> : vector<32xf32>
    %118 = vector.multi_reduction <add>, %117, %cst_55 [0] : vector<8x32xf32> to vector<32xf32>
    %119 = vector.shape_cast %118 : vector<32xf32> to vector<1x32xf32>
    %cst_56 = arith.constant 1.250000e-01 : f32
    %120 = vector.broadcast %cst_56 : f32 to vector<1x32xf32>
    %121 = arith.mulf %119, %120 : vector<1x32xf32>
    %122 = arith.mulf %116, %116 : vector<1x32xf32>
    %123 = arith.subf %121, %122 : vector<1x32xf32>
    %cst_57 = arith.constant 9.99999974E-6 : f32
    %124 = vector.broadcast %cst_57 : f32 to vector<1x32xf32>
    %125 = arith.addf %123, %124 : vector<1x32xf32>
    %126 = math.rsqrt %125 : vector<1x32xf32>
    %127 = arith.mulf %5, %126 : vector<1x32xf32>
    %128 = vector.broadcast %116 : vector<1x32xf32> to vector<8x32xf32>
    %129 = arith.subf %112, %128 : vector<8x32xf32>
    %130 = vector.broadcast %127 : vector<1x32xf32> to vector<8x32xf32>
    %131 = arith.mulf %129, %130 : vector<8x32xf32>
    %132 = vector.broadcast %6 : vector<1x32xf32> to vector<8x32xf32>
    %133 = arith.addf %131, %132 : vector<8x32xf32>
    %c2 = arith.constant 2 : index
    %c0_58 = arith.constant 0 : index
    %c0_59 = arith.constant 0 : index
    %134 = vector.load %arg18[%c2, %c0_58, %c0_59] : memref<8x8x32xf32, #tpu.memory_space<vmem>>, vector<1x8x32xf32>
    %135 = vector.shape_cast %134 : vector<1x8x32xf32> to vector<8x32xf32>
    %136 = vector.shape_cast %133 : vector<8x32xf32> to vector<1x8x32xf32>
    tpu.vector_store %arg18[%c2, %c0_58, %c0_59], %136 {strides = array<i32>} : memref<8x8x32xf32, #tpu.memory_space<vmem>>, vector<1x8x32xf32>,
    %137 = vector.extract_strided_slice %42 {offsets = [3, 0, 0], sizes = [1, 8, 32], strides = [1, 1, 1]} : vector<8x8x32xf32> to vector<1x8x32xf32>
    %138 = vector.shape_cast %137 : vector<1x8x32xf32> to vector<8x32xf32>
    %139 = vector.broadcast %2 : vector<1x32xf32> to vector<8x32xf32>
    %140 = arith.mulf %133, %139 : vector<8x32xf32>
    %141 = arith.addf %138, %140 : vector<8x32xf32>
    %cst_60 = arith.constant 0.000000e+00 : f32
    %142 = vector.broadcast %cst_60 : f32 to vector<8x32xf32>
    %143 = arith.maximumf %141, %142 : vector<8x32xf32>
    %cst_61 = arith.constant dense<0.000000e+00> : vector<32xf32>
    %144 = vector.multi_reduction <add>, %143, %cst_61 [0] : vector<8x32xf32> to vector<32xf32>
    %145 = vector.shape_cast %144 : vector<32xf32> to vector<1x32xf32>
    %cst_62 = arith.constant 1.250000e-01 : f32
    %146 = vector.broadcast %cst_62 : f32 to vector<1x32xf32>
    %147 = arith.mulf %145, %146 : vector<1x32xf32>
    %148 = arith.mulf %143, %143 : vector<8x32xf32>
    %cst_63 = arith.constant dense<0.000000e+00> : vector<32xf32>
    %149 = vector.multi_reduction <add>, %148, %cst_63 [0] : vector<8x32xf32> to vector<32xf32>
    %150 = vector.shape_cast %149 : vector<32xf32> to vector<1x32xf32>
    %cst_64 = arith.constant 1.250000e-01 : f32
    %151 = vector.broadcast %cst_64 : f32 to vector<1x32xf32>
    %152 = arith.mulf %150, %151 : vector<1x32xf32>
    %153 = arith.mulf %147, %147 : vector<1x32xf32>
    %154 = arith.subf %152, %153 : vector<1x32xf32>
    %cst_65 = arith.constant 9.99999974E-6 : f32
    %155 = vector.broadcast %cst_65 : f32 to vector<1x32xf32>
    %156 = arith.addf %154, %155 : vector<1x32xf32>
    %157 = math.rsqrt %156 : vector<1x32xf32>
    %158 = arith.mulf %5, %157 : vector<1x32xf32>
    %159 = vector.broadcast %147 : vector<1x32xf32> to vector<8x32xf32>
    %160 = arith.subf %143, %159 : vector<8x32xf32>
    %161 = vector.broadcast %158 : vector<1x32xf32> to vector<8x32xf32>
    %162 = arith.mulf %160, %161 : vector<8x32xf32>
    %163 = vector.broadcast %6 : vector<1x32xf32> to vector<8x32xf32>
    %164 = arith.addf %162, %163 : vector<8x32xf32>
    %c3 = arith.constant 3 : index
    %c0_66 = arith.constant 0 : index
    %c0_67 = arith.constant 0 : index
    %165 = vector.load %arg18[%c3, %c0_66, %c0_67] : memref<8x8x32xf32, #tpu.memory_space<vmem>>, vector<1x8x32xf32>
    %166 = vector.shape_cast %165 : vector<1x8x32xf32> to vector<8x32xf32>
    %167 = vector.shape_cast %164 : vector<8x32xf32> to vector<1x8x32xf32>
    tpu.vector_store %arg18[%c3, %c0_66, %c0_67], %167 {strides = array<i32>} : memref<8x8x32xf32, #tpu.memory_space<vmem>>, vector<1x8x32xf32>,
    %168 = vector.extract_strided_slice %42 {offsets = [4, 0, 0], sizes = [1, 8, 32], strides = [1, 1, 1]} : vector<8x8x32xf32> to vector<1x8x32xf32>
    %169 = vector.shape_cast %168 : vector<1x8x32xf32> to vector<8x32xf32>
    %170 = vector.broadcast %2 : vector<1x32xf32> to vector<8x32xf32>
    %171 = arith.mulf %164, %170 : vector<8x32xf32>
    %172 = arith.addf %169, %171 : vector<8x32xf32>
    %cst_68 = arith.constant 0.000000e+00 : f32
    %173 = vector.broadcast %cst_68 : f32 to vector<8x32xf32>
    %174 = arith.maximumf %172, %173 : vector<8x32xf32>
    %cst_69 = arith.constant dense<0.000000e+00> : vector<32xf32>
    %175 = vector.multi_reduction <add>, %174, %cst_69 [0] : vector<8x32xf32> to vector<32xf32>
    %176 = vector.shape_cast %175 : vector<32xf32> to vector<1x32xf32>
    %cst_70 = arith.constant 1.250000e-01 : f32
    %177 = vector.broadcast %cst_70 : f32 to vector<1x32xf32>
    %178 = arith.mulf %176, %177 : vector<1x32xf32>
    %179 = arith.mulf %174, %174 : vector<8x32xf32>
    %cst_71 = arith.constant dense<0.000000e+00> : vector<32xf32>
    %180 = vector.multi_reduction <add>, %179, %cst_71 [0] : vector<8x32xf32> to vector<32xf32>
    %181 = vector.shape_cast %180 : vector<32xf32> to vector<1x32xf32>
    %cst_72 = arith.constant 1.250000e-01 : f32
    %182 = vector.broadcast %cst_72 : f32 to vector<1x32xf32>
    %183 = arith.mulf %181, %182 : vector<1x32xf32>
    %184 = arith.mulf %178, %178 : vector<1x32xf32>
    %185 = arith.subf %183, %184 : vector<1x32xf32>
    %cst_73 = arith.constant 9.99999974E-6 : f32
    %186 = vector.broadcast %cst_73 : f32 to vector<1x32xf32>
    %187 = arith.addf %185, %186 : vector<1x32xf32>
    %188 = math.rsqrt %187 : vector<1x32xf32>
    %189 = arith.mulf %5, %188 : vector<1x32xf32>
    %190 = vector.broadcast %178 : vector<1x32xf32> to vector<8x32xf32>
    %191 = arith.subf %174, %190 : vector<8x32xf32>
    %192 = vector.broadcast %189 : vector<1x32xf32> to vector<8x32xf32>
    %193 = arith.mulf %191, %192 : vector<8x32xf32>
    %194 = vector.broadcast %6 : vector<1x32xf32> to vector<8x32xf32>
    %195 = arith.addf %193, %194 : vector<8x32xf32>
    %c4 = arith.constant 4 : index
    %c0_74 = arith.constant 0 : index
    %c0_75 = arith.constant 0 : index
    %196 = vector.load %arg18[%c4, %c0_74, %c0_75] : memref<8x8x32xf32, #tpu.memory_space<vmem>>, vector<1x8x32xf32>
    %197 = vector.shape_cast %196 : vector<1x8x32xf32> to vector<8x32xf32>
    %198 = vector.shape_cast %195 : vector<8x32xf32> to vector<1x8x32xf32>
    tpu.vector_store %arg18[%c4, %c0_74, %c0_75], %198 {strides = array<i32>} : memref<8x8x32xf32, #tpu.memory_space<vmem>>, vector<1x8x32xf32>,
    %199 = vector.extract_strided_slice %42 {offsets = [5, 0, 0], sizes = [1, 8, 32], strides = [1, 1, 1]} : vector<8x8x32xf32> to vector<1x8x32xf32>
    %200 = vector.shape_cast %199 : vector<1x8x32xf32> to vector<8x32xf32>
    %201 = vector.broadcast %2 : vector<1x32xf32> to vector<8x32xf32>
    %202 = arith.mulf %195, %201 : vector<8x32xf32>
    %203 = arith.addf %200, %202 : vector<8x32xf32>
    %cst_76 = arith.constant 0.000000e+00 : f32
    %204 = vector.broadcast %cst_76 : f32 to vector<8x32xf32>
    %205 = arith.maximumf %203, %204 : vector<8x32xf32>
    %cst_77 = arith.constant dense<0.000000e+00> : vector<32xf32>
    %206 = vector.multi_reduction <add>, %205, %cst_77 [0] : vector<8x32xf32> to vector<32xf32>
    %207 = vector.shape_cast %206 : vector<32xf32> to vector<1x32xf32>
    %cst_78 = arith.constant 1.250000e-01 : f32
    %208 = vector.broadcast %cst_78 : f32 to vector<1x32xf32>
    %209 = arith.mulf %207, %208 : vector<1x32xf32>
    %210 = arith.mulf %205, %205 : vector<8x32xf32>
    %cst_79 = arith.constant dense<0.000000e+00> : vector<32xf32>
    %211 = vector.multi_reduction <add>, %210, %cst_79 [0] : vector<8x32xf32> to vector<32xf32>
    %212 = vector.shape_cast %211 : vector<32xf32> to vector<1x32xf32>
    %cst_80 = arith.constant 1.250000e-01 : f32
    %213 = vector.broadcast %cst_80 : f32 to vector<1x32xf32>
    %214 = arith.mulf %212, %213 : vector<1x32xf32>
    %215 = arith.mulf %209, %209 : vector<1x32xf32>
    %216 = arith.subf %214, %215 : vector<1x32xf32>
    %cst_81 = arith.constant 9.99999974E-6 : f32
    %217 = vector.broadcast %cst_81 : f32 to vector<1x32xf32>
    %218 = arith.addf %216, %217 : vector<1x32xf32>
    %219 = math.rsqrt %218 : vector<1x32xf32>
    %220 = arith.mulf %5, %219 : vector<1x32xf32>
    %221 = vector.broadcast %209 : vector<1x32xf32> to vector<8x32xf32>
    %222 = arith.subf %205, %221 : vector<8x32xf32>
    %223 = vector.broadcast %220 : vector<1x32xf32> to vector<8x32xf32>
    %224 = arith.mulf %222, %223 : vector<8x32xf32>
    %225 = vector.broadcast %6 : vector<1x32xf32> to vector<8x32xf32>
    %226 = arith.addf %224, %225 : vector<8x32xf32>
    %c5 = arith.constant 5 : index
    %c0_82 = arith.constant 0 : index
    %c0_83 = arith.constant 0 : index
    %227 = vector.load %arg18[%c5, %c0_82, %c0_83] : memref<8x8x32xf32, #tpu.memory_space<vmem>>, vector<1x8x32xf32>
    %228 = vector.shape_cast %227 : vector<1x8x32xf32> to vector<8x32xf32>
    %229 = vector.shape_cast %226 : vector<8x32xf32> to vector<1x8x32xf32>
    tpu.vector_store %arg18[%c5, %c0_82, %c0_83], %229 {strides = array<i32>} : memref<8x8x32xf32, #tpu.memory_space<vmem>>, vector<1x8x32xf32>,
    %230 = vector.extract_strided_slice %42 {offsets = [6, 0, 0], sizes = [1, 8, 32], strides = [1, 1, 1]} : vector<8x8x32xf32> to vector<1x8x32xf32>
    %231 = vector.shape_cast %230 : vector<1x8x32xf32> to vector<8x32xf32>
    %232 = vector.broadcast %2 : vector<1x32xf32> to vector<8x32xf32>
    %233 = arith.mulf %226, %232 : vector<8x32xf32>
    %234 = arith.addf %231, %233 : vector<8x32xf32>
    %cst_84 = arith.constant 0.000000e+00 : f32
    %235 = vector.broadcast %cst_84 : f32 to vector<8x32xf32>
    %236 = arith.maximumf %234, %235 : vector<8x32xf32>
    %cst_85 = arith.constant dense<0.000000e+00> : vector<32xf32>
    %237 = vector.multi_reduction <add>, %236, %cst_85 [0] : vector<8x32xf32> to vector<32xf32>
    %238 = vector.shape_cast %237 : vector<32xf32> to vector<1x32xf32>
    %cst_86 = arith.constant 1.250000e-01 : f32
    %239 = vector.broadcast %cst_86 : f32 to vector<1x32xf32>
    %240 = arith.mulf %238, %239 : vector<1x32xf32>
    %241 = arith.mulf %236, %236 : vector<8x32xf32>
    %cst_87 = arith.constant dense<0.000000e+00> : vector<32xf32>
    %242 = vector.multi_reduction <add>, %241, %cst_87 [0] : vector<8x32xf32> to vector<32xf32>
    %243 = vector.shape_cast %242 : vector<32xf32> to vector<1x32xf32>
    %cst_88 = arith.constant 1.250000e-01 : f32
    %244 = vector.broadcast %cst_88 : f32 to vector<1x32xf32>
    %245 = arith.mulf %243, %244 : vector<1x32xf32>
    %246 = arith.mulf %240, %240 : vector<1x32xf32>
    %247 = arith.subf %245, %246 : vector<1x32xf32>
    %cst_89 = arith.constant 9.99999974E-6 : f32
    %248 = vector.broadcast %cst_89 : f32 to vector<1x32xf32>
    %249 = arith.addf %247, %248 : vector<1x32xf32>
    %250 = math.rsqrt %249 : vector<1x32xf32>
    %251 = arith.mulf %5, %250 : vector<1x32xf32>
    %252 = vector.broadcast %240 : vector<1x32xf32> to vector<8x32xf32>
    %253 = arith.subf %236, %252 : vector<8x32xf32>
    %254 = vector.broadcast %251 : vector<1x32xf32> to vector<8x32xf32>
    %255 = arith.mulf %253, %254 : vector<8x32xf32>
    %256 = vector.broadcast %6 : vector<1x32xf32> to vector<8x32xf32>
    %257 = arith.addf %255, %256 : vector<8x32xf32>
    %c6 = arith.constant 6 : index
    %c0_90 = arith.constant 0 : index
    %c0_91 = arith.constant 0 : index
    %258 = vector.load %arg18[%c6, %c0_90, %c0_91] : memref<8x8x32xf32, #tpu.memory_space<vmem>>, vector<1x8x32xf32>
    %259 = vector.shape_cast %258 : vector<1x8x32xf32> to vector<8x32xf32>
    %260 = vector.shape_cast %257 : vector<8x32xf32> to vector<1x8x32xf32>
    tpu.vector_store %arg18[%c6, %c0_90, %c0_91], %260 {strides = array<i32>} : memref<8x8x32xf32, #tpu.memory_space<vmem>>, vector<1x8x32xf32>,
    %261 = vector.extract_strided_slice %42 {offsets = [7, 0, 0], sizes = [1, 8, 32], strides = [1, 1, 1]} : vector<8x8x32xf32> to vector<1x8x32xf32>
    %262 = vector.shape_cast %261 : vector<1x8x32xf32> to vector<8x32xf32>
    %263 = vector.broadcast %2 : vector<1x32xf32> to vector<8x32xf32>
    %264 = arith.mulf %257, %263 : vector<8x32xf32>
    %265 = arith.addf %262, %264 : vector<8x32xf32>
    %cst_92 = arith.constant 0.000000e+00 : f32
    %266 = vector.broadcast %cst_92 : f32 to vector<8x32xf32>
    %267 = arith.maximumf %265, %266 : vector<8x32xf32>
    %cst_93 = arith.constant dense<0.000000e+00> : vector<32xf32>
    %268 = vector.multi_reduction <add>, %267, %cst_93 [0] : vector<8x32xf32> to vector<32xf32>
    %269 = vector.shape_cast %268 : vector<32xf32> to vector<1x32xf32>
    %cst_94 = arith.constant 1.250000e-01 : f32
    %270 = vector.broadcast %cst_94 : f32 to vector<1x32xf32>
    %271 = arith.mulf %269, %270 : vector<1x32xf32>
    %272 = arith.mulf %267, %267 : vector<8x32xf32>
    %cst_95 = arith.constant dense<0.000000e+00> : vector<32xf32>
    %273 = vector.multi_reduction <add>, %272, %cst_95 [0] : vector<8x32xf32> to vector<32xf32>
    %274 = vector.shape_cast %273 : vector<32xf32> to vector<1x32xf32>
    %cst_96 = arith.constant 1.250000e-01 : f32
    %275 = vector.broadcast %cst_96 : f32 to vector<1x32xf32>
    %276 = arith.mulf %274, %275 : vector<1x32xf32>
    %277 = arith.mulf %271, %271 : vector<1x32xf32>
    %278 = arith.subf %276, %277 : vector<1x32xf32>
    %cst_97 = arith.constant 9.99999974E-6 : f32
    %279 = vector.broadcast %cst_97 : f32 to vector<1x32xf32>
    %280 = arith.addf %278, %279 : vector<1x32xf32>
    %281 = math.rsqrt %280 : vector<1x32xf32>
    %282 = arith.mulf %5, %281 : vector<1x32xf32>
    %283 = vector.broadcast %271 : vector<1x32xf32> to vector<8x32xf32>
    %284 = arith.subf %267, %283 : vector<8x32xf32>
    %285 = vector.broadcast %282 : vector<1x32xf32> to vector<8x32xf32>
    %286 = arith.mulf %284, %285 : vector<8x32xf32>
    %287 = vector.broadcast %6 : vector<1x32xf32> to vector<8x32xf32>
    %288 = arith.addf %286, %287 : vector<8x32xf32>
    %c7 = arith.constant 7 : index
    %c0_98 = arith.constant 0 : index
    %c0_99 = arith.constant 0 : index
    %289 = vector.load %arg18[%c7, %c0_98, %c0_99] : memref<8x8x32xf32, #tpu.memory_space<vmem>>, vector<1x8x32xf32>
    %290 = vector.shape_cast %289 : vector<1x8x32xf32> to vector<8x32xf32>
    %291 = vector.shape_cast %288 : vector<8x32xf32> to vector<1x8x32xf32>
    tpu.vector_store %arg18[%c7, %c0_98, %c0_99], %291 {strides = array<i32>} : memref<8x8x32xf32, #tpu.memory_space<vmem>>, vector<1x8x32xf32>,
    %c0_100 = arith.constant 0 : index
    %c0_101 = arith.constant 0 : index
    %c0_102 = arith.constant 0 : index
    %292 = vector.load %arg18[%c0_100, %c0_101, %c0_102] : memref<8x8x32xf32, #tpu.memory_space<vmem>>, vector<8x8x32xf32>
    %293 = vector.shape_cast %292 : vector<8x8x32xf32> to vector<64x32xf32>
    %cst_103 = arith.constant dense<0.000000e+00> : vector<64x32xf32>
    %294 = tpu.matmul %293, %7, %cst_103 {dimension_numbers = #tpu.dot_dimension_numbers<[1], [0], [0], [1], [0, 0, 1, 1], [], []>, precision = #tpu.contract_precision<fp32>} : vector<64x32xf32>, vector<32x32xf32>, vector<64x32xf32> -> vector<64x32xf32>
    %295 = vector.broadcast %8 : vector<1x32xf32> to vector<64x32xf32>
    %296 = arith.addf %294, %295 : vector<64x32xf32>
    %297 = vector.shape_cast %296 : vector<64x32xf32> to vector<8x8x32xf32>
    %cst_104 = arith.constant dense<0.000000e+00> : vector<8x32xf32>
    %298 = vector.multi_reduction <add>, %297, %cst_104 [1] : vector<8x8x32xf32> to vector<8x32xf32>
    %299 = vector.shape_cast %298 : vector<8x32xf32> to vector<8x1x32xf32>
    %cst_105 = arith.constant 1.250000e-01 : f32
    %300 = vector.broadcast %cst_105 : f32 to vector<8x1x32xf32>
    %301 = arith.mulf %299, %300 : vector<8x1x32xf32>
    %302 = arith.mulf %297, %297 : vector<8x8x32xf32>
    %cst_106 = arith.constant dense<0.000000e+00> : vector<8x32xf32>
    %303 = vector.multi_reduction <add>, %302, %cst_106 [1] : vector<8x8x32xf32> to vector<8x32xf32>
    %304 = vector.shape_cast %303 : vector<8x32xf32> to vector<8x1x32xf32>
    %cst_107 = arith.constant 1.250000e-01 : f32
    %305 = vector.broadcast %cst_107 : f32 to vector<8x1x32xf32>
    %306 = arith.mulf %304, %305 : vector<8x1x32xf32>
    %307 = arith.mulf %301, %301 : vector<8x1x32xf32>
    %308 = arith.subf %306, %307 : vector<8x1x32xf32>
    %cst_108 = arith.constant 9.99999974E-6 : f32
    %309 = vector.broadcast %cst_108 : f32 to vector<8x1x32xf32>
    %310 = arith.addf %308, %309 : vector<8x1x32xf32>
    %311 = math.rsqrt %310 : vector<8x1x32xf32>
    %312 = vector.shape_cast %10 : vector<1x32xf32> to vector<1x1x32xf32>
    %313 = vector.broadcast %312 : vector<1x1x32xf32> to vector<8x1x32xf32>
    %314 = arith.mulf %313, %311 : vector<8x1x32xf32>
    %315 = vector.broadcast %301 : vector<8x1x32xf32> to vector<8x8x32xf32>
    %316 = arith.subf %297, %315 : vector<8x8x32xf32>
    %317 = vector.broadcast %314 : vector<8x1x32xf32> to vector<8x8x32xf32>
    %318 = arith.mulf %316, %317 : vector<8x8x32xf32>
    %319 = vector.shape_cast %11 : vector<1x32xf32> to vector<1x1x32xf32>
    %320 = vector.broadcast %319 : vector<1x1x32xf32> to vector<8x8x32xf32>
    %321 = arith.addf %318, %320 : vector<8x8x32xf32>
    %cst_109 = arith.constant 0.000000e+00 : f32
    %322 = vector.broadcast %cst_109 : f32 to vector<8x32xf32>
    %323 = vector.extract_strided_slice %321 {offsets = [0, 0, 0], sizes = [1, 8, 32], strides = [1, 1, 1]} : vector<8x8x32xf32> to vector<1x8x32xf32>
    %324 = vector.shape_cast %323 : vector<1x8x32xf32> to vector<8x32xf32>
    %325 = vector.broadcast %9 : vector<1x32xf32> to vector<8x32xf32>
    %326 = arith.mulf %322, %325 : vector<8x32xf32>
    %327 = arith.addf %324, %326 : vector<8x32xf32>
    %cst_110 = arith.constant 0.000000e+00 : f32
    %328 = vector.broadcast %cst_110 : f32 to vector<8x32xf32>
    %329 = arith.maximumf %327, %328 : vector<8x32xf32>
    %cst_111 = arith.constant dense<0.000000e+00> : vector<32xf32>
    %330 = vector.multi_reduction <add>, %329, %cst_111 [0] : vector<8x32xf32> to vector<32xf32>
    %331 = vector.shape_cast %330 : vector<32xf32> to vector<1x32xf32>
    %cst_112 = arith.constant 1.250000e-01 : f32
    %332 = vector.broadcast %cst_112 : f32 to vector<1x32xf32>
    %333 = arith.mulf %331, %332 : vector<1x32xf32>
    %334 = arith.mulf %329, %329 : vector<8x32xf32>
    %cst_113 = arith.constant dense<0.000000e+00> : vector<32xf32>
    %335 = vector.multi_reduction <add>, %334, %cst_113 [0] : vector<8x32xf32> to vector<32xf32>
    %336 = vector.shape_cast %335 : vector<32xf32> to vector<1x32xf32>
    %cst_114 = arith.constant 1.250000e-01 : f32
    %337 = vector.broadcast %cst_114 : f32 to vector<1x32xf32>
    %338 = arith.mulf %336, %337 : vector<1x32xf32>
    %339 = arith.mulf %333, %333 : vector<1x32xf32>
    %340 = arith.subf %338, %339 : vector<1x32xf32>
    %cst_115 = arith.constant 9.99999974E-6 : f32
    %341 = vector.broadcast %cst_115 : f32 to vector<1x32xf32>
    %342 = arith.addf %340, %341 : vector<1x32xf32>
    %343 = math.rsqrt %342 : vector<1x32xf32>
    %344 = arith.mulf %12, %343 : vector<1x32xf32>
    %345 = vector.broadcast %333 : vector<1x32xf32> to vector<8x32xf32>
    %346 = arith.subf %329, %345 : vector<8x32xf32>
    %347 = vector.broadcast %344 : vector<1x32xf32> to vector<8x32xf32>
    %348 = arith.mulf %346, %347 : vector<8x32xf32>
    %349 = vector.broadcast %13 : vector<1x32xf32> to vector<8x32xf32>
    %350 = arith.addf %348, %349 : vector<8x32xf32>
    %c0_116 = arith.constant 0 : index
    %c0_117 = arith.constant 0 : index
    %c0_118 = arith.constant 0 : index
    %351 = vector.load %arg18[%c0_116, %c0_117, %c0_118] : memref<8x8x32xf32, #tpu.memory_space<vmem>>, vector<1x8x32xf32>
    %352 = vector.shape_cast %351 : vector<1x8x32xf32> to vector<8x32xf32>
    %353 = vector.shape_cast %350 : vector<8x32xf32> to vector<1x8x32xf32>
    tpu.vector_store %arg18[%c0_116, %c0_117, %c0_118], %353 {strides = array<i32>} : memref<8x8x32xf32, #tpu.memory_space<vmem>>, vector<1x8x32xf32>,
    %354 = vector.extract_strided_slice %321 {offsets = [1, 0, 0], sizes = [1, 8, 32], strides = [1, 1, 1]} : vector<8x8x32xf32> to vector<1x8x32xf32>
    %355 = vector.shape_cast %354 : vector<1x8x32xf32> to vector<8x32xf32>
    %356 = vector.broadcast %9 : vector<1x32xf32> to vector<8x32xf32>
    %357 = arith.mulf %350, %356 : vector<8x32xf32>
    %358 = arith.addf %355, %357 : vector<8x32xf32>
    %cst_119 = arith.constant 0.000000e+00 : f32
    %359 = vector.broadcast %cst_119 : f32 to vector<8x32xf32>
    %360 = arith.maximumf %358, %359 : vector<8x32xf32>
    %cst_120 = arith.constant dense<0.000000e+00> : vector<32xf32>
    %361 = vector.multi_reduction <add>, %360, %cst_120 [0] : vector<8x32xf32> to vector<32xf32>
    %362 = vector.shape_cast %361 : vector<32xf32> to vector<1x32xf32>
    %cst_121 = arith.constant 1.250000e-01 : f32
    %363 = vector.broadcast %cst_121 : f32 to vector<1x32xf32>
    %364 = arith.mulf %362, %363 : vector<1x32xf32>
    %365 = arith.mulf %360, %360 : vector<8x32xf32>
    %cst_122 = arith.constant dense<0.000000e+00> : vector<32xf32>
    %366 = vector.multi_reduction <add>, %365, %cst_122 [0] : vector<8x32xf32> to vector<32xf32>
    %367 = vector.shape_cast %366 : vector<32xf32> to vector<1x32xf32>
    %cst_123 = arith.constant 1.250000e-01 : f32
    %368 = vector.broadcast %cst_123 : f32 to vector<1x32xf32>
    %369 = arith.mulf %367, %368 : vector<1x32xf32>
    %370 = arith.mulf %364, %364 : vector<1x32xf32>
    %371 = arith.subf %369, %370 : vector<1x32xf32>
    %cst_124 = arith.constant 9.99999974E-6 : f32
    %372 = vector.broadcast %cst_124 : f32 to vector<1x32xf32>
    %373 = arith.addf %371, %372 : vector<1x32xf32>
    %374 = math.rsqrt %373 : vector<1x32xf32>
    %375 = arith.mulf %12, %374 : vector<1x32xf32>
    %376 = vector.broadcast %364 : vector<1x32xf32> to vector<8x32xf32>
    %377 = arith.subf %360, %376 : vector<8x32xf32>
    %378 = vector.broadcast %375 : vector<1x32xf32> to vector<8x32xf32>
    %379 = arith.mulf %377, %378 : vector<8x32xf32>
    %380 = vector.broadcast %13 : vector<1x32xf32> to vector<8x32xf32>
    %381 = arith.addf %379, %380 : vector<8x32xf32>
    %c1_125 = arith.constant 1 : index
    %c0_126 = arith.constant 0 : index
    %c0_127 = arith.constant 0 : index
    %382 = vector.load %arg18[%c1_125, %c0_126, %c0_127] : memref<8x8x32xf32, #tpu.memory_space<vmem>>, vector<1x8x32xf32>
    %383 = vector.shape_cast %382 : vector<1x8x32xf32> to vector<8x32xf32>
    %384 = vector.shape_cast %381 : vector<8x32xf32> to vector<1x8x32xf32>
    tpu.vector_store %arg18[%c1_125, %c0_126, %c0_127], %384 {strides = array<i32>} : memref<8x8x32xf32, #tpu.memory_space<vmem>>, vector<1x8x32xf32>,
    %385 = vector.extract_strided_slice %321 {offsets = [2, 0, 0], sizes = [1, 8, 32], strides = [1, 1, 1]} : vector<8x8x32xf32> to vector<1x8x32xf32>
    %386 = vector.shape_cast %385 : vector<1x8x32xf32> to vector<8x32xf32>
    %387 = vector.broadcast %9 : vector<1x32xf32> to vector<8x32xf32>
    %388 = arith.mulf %381, %387 : vector<8x32xf32>
    %389 = arith.addf %386, %388 : vector<8x32xf32>
    %cst_128 = arith.constant 0.000000e+00 : f32
    %390 = vector.broadcast %cst_128 : f32 to vector<8x32xf32>
    %391 = arith.maximumf %389, %390 : vector<8x32xf32>
    %cst_129 = arith.constant dense<0.000000e+00> : vector<32xf32>
    %392 = vector.multi_reduction <add>, %391, %cst_129 [0] : vector<8x32xf32> to vector<32xf32>
    %393 = vector.shape_cast %392 : vector<32xf32> to vector<1x32xf32>
    %cst_130 = arith.constant 1.250000e-01 : f32
    %394 = vector.broadcast %cst_130 : f32 to vector<1x32xf32>
    %395 = arith.mulf %393, %394 : vector<1x32xf32>
    %396 = arith.mulf %391, %391 : vector<8x32xf32>
    %cst_131 = arith.constant dense<0.000000e+00> : vector<32xf32>
    %397 = vector.multi_reduction <add>, %396, %cst_131 [0] : vector<8x32xf32> to vector<32xf32>
    %398 = vector.shape_cast %397 : vector<32xf32> to vector<1x32xf32>
    %cst_132 = arith.constant 1.250000e-01 : f32
    %399 = vector.broadcast %cst_132 : f32 to vector<1x32xf32>
    %400 = arith.mulf %398, %399 : vector<1x32xf32>
    %401 = arith.mulf %395, %395 : vector<1x32xf32>
    %402 = arith.subf %400, %401 : vector<1x32xf32>
    %cst_133 = arith.constant 9.99999974E-6 : f32
    %403 = vector.broadcast %cst_133 : f32 to vector<1x32xf32>
    %404 = arith.addf %402, %403 : vector<1x32xf32>
    %405 = math.rsqrt %404 : vector<1x32xf32>
    %406 = arith.mulf %12, %405 : vector<1x32xf32>
    %407 = vector.broadcast %395 : vector<1x32xf32> to vector<8x32xf32>
    %408 = arith.subf %391, %407 : vector<8x32xf32>
    %409 = vector.broadcast %406 : vector<1x32xf32> to vector<8x32xf32>
    %410 = arith.mulf %408, %409 : vector<8x32xf32>
    %411 = vector.broadcast %13 : vector<1x32xf32> to vector<8x32xf32>
    %412 = arith.addf %410, %411 : vector<8x32xf32>
    %c2_134 = arith.constant 2 : index
    %c0_135 = arith.constant 0 : index
    %c0_136 = arith.constant 0 : index
    %413 = vector.load %arg18[%c2_134, %c0_135, %c0_136] : memref<8x8x32xf32, #tpu.memory_space<vmem>>, vector<1x8x32xf32>
    %414 = vector.shape_cast %413 : vector<1x8x32xf32> to vector<8x32xf32>
    %415 = vector.shape_cast %412 : vector<8x32xf32> to vector<1x8x32xf32>
    tpu.vector_store %arg18[%c2_134, %c0_135, %c0_136], %415 {strides = array<i32>} : memref<8x8x32xf32, #tpu.memory_space<vmem>>, vector<1x8x32xf32>,
    %416 = vector.extract_strided_slice %321 {offsets = [3, 0, 0], sizes = [1, 8, 32], strides = [1, 1, 1]} : vector<8x8x32xf32> to vector<1x8x32xf32>
    %417 = vector.shape_cast %416 : vector<1x8x32xf32> to vector<8x32xf32>
    %418 = vector.broadcast %9 : vector<1x32xf32> to vector<8x32xf32>
    %419 = arith.mulf %412, %418 : vector<8x32xf32>
    %420 = arith.addf %417, %419 : vector<8x32xf32>
    %cst_137 = arith.constant 0.000000e+00 : f32
    %421 = vector.broadcast %cst_137 : f32 to vector<8x32xf32>
    %422 = arith.maximumf %420, %421 : vector<8x32xf32>
    %cst_138 = arith.constant dense<0.000000e+00> : vector<32xf32>
    %423 = vector.multi_reduction <add>, %422, %cst_138 [0] : vector<8x32xf32> to vector<32xf32>
    %424 = vector.shape_cast %423 : vector<32xf32> to vector<1x32xf32>
    %cst_139 = arith.constant 1.250000e-01 : f32
    %425 = vector.broadcast %cst_139 : f32 to vector<1x32xf32>
    %426 = arith.mulf %424, %425 : vector<1x32xf32>
    %427 = arith.mulf %422, %422 : vector<8x32xf32>
    %cst_140 = arith.constant dense<0.000000e+00> : vector<32xf32>
    %428 = vector.multi_reduction <add>, %427, %cst_140 [0] : vector<8x32xf32> to vector<32xf32>
    %429 = vector.shape_cast %428 : vector<32xf32> to vector<1x32xf32>
    %cst_141 = arith.constant 1.250000e-01 : f32
    %430 = vector.broadcast %cst_141 : f32 to vector<1x32xf32>
    %431 = arith.mulf %429, %430 : vector<1x32xf32>
    %432 = arith.mulf %426, %426 : vector<1x32xf32>
    %433 = arith.subf %431, %432 : vector<1x32xf32>
    %cst_142 = arith.constant 9.99999974E-6 : f32
    %434 = vector.broadcast %cst_142 : f32 to vector<1x32xf32>
    %435 = arith.addf %433, %434 : vector<1x32xf32>
    %436 = math.rsqrt %435 : vector<1x32xf32>
    %437 = arith.mulf %12, %436 : vector<1x32xf32>
    %438 = vector.broadcast %426 : vector<1x32xf32> to vector<8x32xf32>
    %439 = arith.subf %422, %438 : vector<8x32xf32>
    %440 = vector.broadcast %437 : vector<1x32xf32> to vector<8x32xf32>
    %441 = arith.mulf %439, %440 : vector<8x32xf32>
    %442 = vector.broadcast %13 : vector<1x32xf32> to vector<8x32xf32>
    %443 = arith.addf %441, %442 : vector<8x32xf32>
    %c3_143 = arith.constant 3 : index
    %c0_144 = arith.constant 0 : index
    %c0_145 = arith.constant 0 : index
    %444 = vector.load %arg18[%c3_143, %c0_144, %c0_145] : memref<8x8x32xf32, #tpu.memory_space<vmem>>, vector<1x8x32xf32>
    %445 = vector.shape_cast %444 : vector<1x8x32xf32> to vector<8x32xf32>
    %446 = vector.shape_cast %443 : vector<8x32xf32> to vector<1x8x32xf32>
    tpu.vector_store %arg18[%c3_143, %c0_144, %c0_145], %446 {strides = array<i32>} : memref<8x8x32xf32, #tpu.memory_space<vmem>>, vector<1x8x32xf32>,
    %447 = vector.extract_strided_slice %321 {offsets = [4, 0, 0], sizes = [1, 8, 32], strides = [1, 1, 1]} : vector<8x8x32xf32> to vector<1x8x32xf32>
    %448 = vector.shape_cast %447 : vector<1x8x32xf32> to vector<8x32xf32>
    %449 = vector.broadcast %9 : vector<1x32xf32> to vector<8x32xf32>
    %450 = arith.mulf %443, %449 : vector<8x32xf32>
    %451 = arith.addf %448, %450 : vector<8x32xf32>
    %cst_146 = arith.constant 0.000000e+00 : f32
    %452 = vector.broadcast %cst_146 : f32 to vector<8x32xf32>
    %453 = arith.maximumf %451, %452 : vector<8x32xf32>
    %cst_147 = arith.constant dense<0.000000e+00> : vector<32xf32>
    %454 = vector.multi_reduction <add>, %453, %cst_147 [0] : vector<8x32xf32> to vector<32xf32>
    %455 = vector.shape_cast %454 : vector<32xf32> to vector<1x32xf32>
    %cst_148 = arith.constant 1.250000e-01 : f32
    %456 = vector.broadcast %cst_148 : f32 to vector<1x32xf32>
    %457 = arith.mulf %455, %456 : vector<1x32xf32>
    %458 = arith.mulf %453, %453 : vector<8x32xf32>
    %cst_149 = arith.constant dense<0.000000e+00> : vector<32xf32>
    %459 = vector.multi_reduction <add>, %458, %cst_149 [0] : vector<8x32xf32> to vector<32xf32>
    %460 = vector.shape_cast %459 : vector<32xf32> to vector<1x32xf32>
    %cst_150 = arith.constant 1.250000e-01 : f32
    %461 = vector.broadcast %cst_150 : f32 to vector<1x32xf32>
    %462 = arith.mulf %460, %461 : vector<1x32xf32>
    %463 = arith.mulf %457, %457 : vector<1x32xf32>
    %464 = arith.subf %462, %463 : vector<1x32xf32>
    %cst_151 = arith.constant 9.99999974E-6 : f32
    %465 = vector.broadcast %cst_151 : f32 to vector<1x32xf32>
    %466 = arith.addf %464, %465 : vector<1x32xf32>
    %467 = math.rsqrt %466 : vector<1x32xf32>
    %468 = arith.mulf %12, %467 : vector<1x32xf32>
    %469 = vector.broadcast %457 : vector<1x32xf32> to vector<8x32xf32>
    %470 = arith.subf %453, %469 : vector<8x32xf32>
    %471 = vector.broadcast %468 : vector<1x32xf32> to vector<8x32xf32>
    %472 = arith.mulf %470, %471 : vector<8x32xf32>
    %473 = vector.broadcast %13 : vector<1x32xf32> to vector<8x32xf32>
    %474 = arith.addf %472, %473 : vector<8x32xf32>
    %c4_152 = arith.constant 4 : index
    %c0_153 = arith.constant 0 : index
    %c0_154 = arith.constant 0 : index
    %475 = vector.load %arg18[%c4_152, %c0_153, %c0_154] : memref<8x8x32xf32, #tpu.memory_space<vmem>>, vector<1x8x32xf32>
    %476 = vector.shape_cast %475 : vector<1x8x32xf32> to vector<8x32xf32>
    %477 = vector.shape_cast %474 : vector<8x32xf32> to vector<1x8x32xf32>
    tpu.vector_store %arg18[%c4_152, %c0_153, %c0_154], %477 {strides = array<i32>} : memref<8x8x32xf32, #tpu.memory_space<vmem>>, vector<1x8x32xf32>,
    %478 = vector.extract_strided_slice %321 {offsets = [5, 0, 0], sizes = [1, 8, 32], strides = [1, 1, 1]} : vector<8x8x32xf32> to vector<1x8x32xf32>
    %479 = vector.shape_cast %478 : vector<1x8x32xf32> to vector<8x32xf32>
    %480 = vector.broadcast %9 : vector<1x32xf32> to vector<8x32xf32>
    %481 = arith.mulf %474, %480 : vector<8x32xf32>
    %482 = arith.addf %479, %481 : vector<8x32xf32>
    %cst_155 = arith.constant 0.000000e+00 : f32
    %483 = vector.broadcast %cst_155 : f32 to vector<8x32xf32>
    %484 = arith.maximumf %482, %483 : vector<8x32xf32>
    %cst_156 = arith.constant dense<0.000000e+00> : vector<32xf32>
    %485 = vector.multi_reduction <add>, %484, %cst_156 [0] : vector<8x32xf32> to vector<32xf32>
    %486 = vector.shape_cast %485 : vector<32xf32> to vector<1x32xf32>
    %cst_157 = arith.constant 1.250000e-01 : f32
    %487 = vector.broadcast %cst_157 : f32 to vector<1x32xf32>
    %488 = arith.mulf %486, %487 : vector<1x32xf32>
    %489 = arith.mulf %484, %484 : vector<8x32xf32>
    %cst_158 = arith.constant dense<0.000000e+00> : vector<32xf32>
    %490 = vector.multi_reduction <add>, %489, %cst_158 [0] : vector<8x32xf32> to vector<32xf32>
    %491 = vector.shape_cast %490 : vector<32xf32> to vector<1x32xf32>
    %cst_159 = arith.constant 1.250000e-01 : f32
    %492 = vector.broadcast %cst_159 : f32 to vector<1x32xf32>
    %493 = arith.mulf %491, %492 : vector<1x32xf32>
    %494 = arith.mulf %488, %488 : vector<1x32xf32>
    %495 = arith.subf %493, %494 : vector<1x32xf32>
    %cst_160 = arith.constant 9.99999974E-6 : f32
    %496 = vector.broadcast %cst_160 : f32 to vector<1x32xf32>
    %497 = arith.addf %495, %496 : vector<1x32xf32>
    %498 = math.rsqrt %497 : vector<1x32xf32>
    %499 = arith.mulf %12, %498 : vector<1x32xf32>
    %500 = vector.broadcast %488 : vector<1x32xf32> to vector<8x32xf32>
    %501 = arith.subf %484, %500 : vector<8x32xf32>
    %502 = vector.broadcast %499 : vector<1x32xf32> to vector<8x32xf32>
    %503 = arith.mulf %501, %502 : vector<8x32xf32>
    %504 = vector.broadcast %13 : vector<1x32xf32> to vector<8x32xf32>
    %505 = arith.addf %503, %504 : vector<8x32xf32>
    %c5_161 = arith.constant 5 : index
    %c0_162 = arith.constant 0 : index
    %c0_163 = arith.constant 0 : index
    %506 = vector.load %arg18[%c5_161, %c0_162, %c0_163] : memref<8x8x32xf32, #tpu.memory_space<vmem>>, vector<1x8x32xf32>
    %507 = vector.shape_cast %506 : vector<1x8x32xf32> to vector<8x32xf32>
    %508 = vector.shape_cast %505 : vector<8x32xf32> to vector<1x8x32xf32>
    tpu.vector_store %arg18[%c5_161, %c0_162, %c0_163], %508 {strides = array<i32>} : memref<8x8x32xf32, #tpu.memory_space<vmem>>, vector<1x8x32xf32>,
    %509 = vector.extract_strided_slice %321 {offsets = [6, 0, 0], sizes = [1, 8, 32], strides = [1, 1, 1]} : vector<8x8x32xf32> to vector<1x8x32xf32>
    %510 = vector.shape_cast %509 : vector<1x8x32xf32> to vector<8x32xf32>
    %511 = vector.broadcast %9 : vector<1x32xf32> to vector<8x32xf32>
    %512 = arith.mulf %505, %511 : vector<8x32xf32>
    %513 = arith.addf %510, %512 : vector<8x32xf32>
    %cst_164 = arith.constant 0.000000e+00 : f32
    %514 = vector.broadcast %cst_164 : f32 to vector<8x32xf32>
    %515 = arith.maximumf %513, %514 : vector<8x32xf32>
    %cst_165 = arith.constant dense<0.000000e+00> : vector<32xf32>
    %516 = vector.multi_reduction <add>, %515, %cst_165 [0] : vector<8x32xf32> to vector<32xf32>
    %517 = vector.shape_cast %516 : vector<32xf32> to vector<1x32xf32>
    %cst_166 = arith.constant 1.250000e-01 : f32
    %518 = vector.broadcast %cst_166 : f32 to vector<1x32xf32>
    %519 = arith.mulf %517, %518 : vector<1x32xf32>
    %520 = arith.mulf %515, %515 : vector<8x32xf32>
    %cst_167 = arith.constant dense<0.000000e+00> : vector<32xf32>
    %521 = vector.multi_reduction <add>, %520, %cst_167 [0] : vector<8x32xf32> to vector<32xf32>
    %522 = vector.shape_cast %521 : vector<32xf32> to vector<1x32xf32>
    %cst_168 = arith.constant 1.250000e-01 : f32
    %523 = vector.broadcast %cst_168 : f32 to vector<1x32xf32>
    %524 = arith.mulf %522, %523 : vector<1x32xf32>
    %525 = arith.mulf %519, %519 : vector<1x32xf32>
    %526 = arith.subf %524, %525 : vector<1x32xf32>
    %cst_169 = arith.constant 9.99999974E-6 : f32
    %527 = vector.broadcast %cst_169 : f32 to vector<1x32xf32>
    %528 = arith.addf %526, %527 : vector<1x32xf32>
    %529 = math.rsqrt %528 : vector<1x32xf32>
    %530 = arith.mulf %12, %529 : vector<1x32xf32>
    %531 = vector.broadcast %519 : vector<1x32xf32> to vector<8x32xf32>
    %532 = arith.subf %515, %531 : vector<8x32xf32>
    %533 = vector.broadcast %530 : vector<1x32xf32> to vector<8x32xf32>
    %534 = arith.mulf %532, %533 : vector<8x32xf32>
    %535 = vector.broadcast %13 : vector<1x32xf32> to vector<8x32xf32>
    %536 = arith.addf %534, %535 : vector<8x32xf32>
    %c6_170 = arith.constant 6 : index
    %c0_171 = arith.constant 0 : index
    %c0_172 = arith.constant 0 : index
    %537 = vector.load %arg18[%c6_170, %c0_171, %c0_172] : memref<8x8x32xf32, #tpu.memory_space<vmem>>, vector<1x8x32xf32>
    %538 = vector.shape_cast %537 : vector<1x8x32xf32> to vector<8x32xf32>
    %539 = vector.shape_cast %536 : vector<8x32xf32> to vector<1x8x32xf32>
    tpu.vector_store %arg18[%c6_170, %c0_171, %c0_172], %539 {strides = array<i32>} : memref<8x8x32xf32, #tpu.memory_space<vmem>>, vector<1x8x32xf32>,
    %540 = vector.extract_strided_slice %321 {offsets = [7, 0, 0], sizes = [1, 8, 32], strides = [1, 1, 1]} : vector<8x8x32xf32> to vector<1x8x32xf32>
    %541 = vector.shape_cast %540 : vector<1x8x32xf32> to vector<8x32xf32>
    %542 = vector.broadcast %9 : vector<1x32xf32> to vector<8x32xf32>
    %543 = arith.mulf %536, %542 : vector<8x32xf32>
    %544 = arith.addf %541, %543 : vector<8x32xf32>
    %cst_173 = arith.constant 0.000000e+00 : f32
    %545 = vector.broadcast %cst_173 : f32 to vector<8x32xf32>
    %546 = arith.maximumf %544, %545 : vector<8x32xf32>
    %cst_174 = arith.constant dense<0.000000e+00> : vector<32xf32>
    %547 = vector.multi_reduction <add>, %546, %cst_174 [0] : vector<8x32xf32> to vector<32xf32>
    %548 = vector.shape_cast %547 : vector<32xf32> to vector<1x32xf32>
    %cst_175 = arith.constant 1.250000e-01 : f32
    %549 = vector.broadcast %cst_175 : f32 to vector<1x32xf32>
    %550 = arith.mulf %548, %549 : vector<1x32xf32>
    %551 = arith.mulf %546, %546 : vector<8x32xf32>
    %cst_176 = arith.constant dense<0.000000e+00> : vector<32xf32>
    %552 = vector.multi_reduction <add>, %551, %cst_176 [0] : vector<8x32xf32> to vector<32xf32>
    %553 = vector.shape_cast %552 : vector<32xf32> to vector<1x32xf32>
    %cst_177 = arith.constant 1.250000e-01 : f32
    %554 = vector.broadcast %cst_177 : f32 to vector<1x32xf32>
    %555 = arith.mulf %553, %554 : vector<1x32xf32>
    %556 = arith.mulf %550, %550 : vector<1x32xf32>
    %557 = arith.subf %555, %556 : vector<1x32xf32>
    %cst_178 = arith.constant 9.99999974E-6 : f32
    %558 = vector.broadcast %cst_178 : f32 to vector<1x32xf32>
    %559 = arith.addf %557, %558 : vector<1x32xf32>
    %560 = math.rsqrt %559 : vector<1x32xf32>
    %561 = arith.mulf %12, %560 : vector<1x32xf32>
    %562 = vector.broadcast %550 : vector<1x32xf32> to vector<8x32xf32>
    %563 = arith.subf %546, %562 : vector<8x32xf32>
    %564 = vector.broadcast %561 : vector<1x32xf32> to vector<8x32xf32>
    %565 = arith.mulf %563, %564 : vector<8x32xf32>
    %566 = vector.broadcast %13 : vector<1x32xf32> to vector<8x32xf32>
    %567 = arith.addf %565, %566 : vector<8x32xf32>
    %c7_179 = arith.constant 7 : index
    %c0_180 = arith.constant 0 : index
    %c0_181 = arith.constant 0 : index
    %568 = vector.load %arg18[%c7_179, %c0_180, %c0_181] : memref<8x8x32xf32, #tpu.memory_space<vmem>>, vector<1x8x32xf32>
    %569 = vector.shape_cast %568 : vector<1x8x32xf32> to vector<8x32xf32>
    %570 = vector.shape_cast %567 : vector<8x32xf32> to vector<1x8x32xf32>
    tpu.vector_store %arg18[%c7_179, %c0_180, %c0_181], %570 {strides = array<i32>} : memref<8x8x32xf32, #tpu.memory_space<vmem>>, vector<1x8x32xf32>,
    %c0_182 = arith.constant 0 : index
    %c0_183 = arith.constant 0 : index
    %c0_184 = arith.constant 0 : index
    %571 = vector.load %arg18[%c0_182, %c0_183, %c0_184] : memref<8x8x32xf32, #tpu.memory_space<vmem>>, vector<8x8x32xf32>
    %572 = vector.shape_cast %571 : vector<8x8x32xf32> to vector<64x32xf32>
    %cst_185 = arith.constant dense<0.000000e+00> : vector<64x32xf32>
    %573 = tpu.matmul %572, %7, %cst_185 {dimension_numbers = #tpu.dot_dimension_numbers<[1], [0], [0], [1], [0, 0, 1, 1], [], []>, precision = #tpu.contract_precision<fp32>} : vector<64x32xf32>, vector<32x32xf32>, vector<64x32xf32> -> vector<64x32xf32>
    %574 = vector.broadcast %8 : vector<1x32xf32> to vector<64x32xf32>
    %575 = arith.addf %573, %574 : vector<64x32xf32>
    %576 = vector.shape_cast %575 : vector<64x32xf32> to vector<8x8x32xf32>
    %cst_186 = arith.constant dense<0.000000e+00> : vector<8x32xf32>
    %577 = vector.multi_reduction <add>, %576, %cst_186 [1] : vector<8x8x32xf32> to vector<8x32xf32>
    %578 = vector.shape_cast %577 : vector<8x32xf32> to vector<8x1x32xf32>
    %cst_187 = arith.constant 1.250000e-01 : f32
    %579 = vector.broadcast %cst_187 : f32 to vector<8x1x32xf32>
    %580 = arith.mulf %578, %579 : vector<8x1x32xf32>
    %581 = arith.mulf %576, %576 : vector<8x8x32xf32>
    %cst_188 = arith.constant dense<0.000000e+00> : vector<8x32xf32>
    %582 = vector.multi_reduction <add>, %581, %cst_188 [1] : vector<8x8x32xf32> to vector<8x32xf32>
    %583 = vector.shape_cast %582 : vector<8x32xf32> to vector<8x1x32xf32>
    %cst_189 = arith.constant 1.250000e-01 : f32
    %584 = vector.broadcast %cst_189 : f32 to vector<8x1x32xf32>
    %585 = arith.mulf %583, %584 : vector<8x1x32xf32>
    %586 = arith.mulf %580, %580 : vector<8x1x32xf32>
    %587 = arith.subf %585, %586 : vector<8x1x32xf32>
    %cst_190 = arith.constant 9.99999974E-6 : f32
    %588 = vector.broadcast %cst_190 : f32 to vector<8x1x32xf32>
    %589 = arith.addf %587, %588 : vector<8x1x32xf32>
    %590 = math.rsqrt %589 : vector<8x1x32xf32>
    %591 = vector.shape_cast %10 : vector<1x32xf32> to vector<1x1x32xf32>
    %592 = vector.broadcast %591 : vector<1x1x32xf32> to vector<8x1x32xf32>
    %593 = arith.mulf %592, %590 : vector<8x1x32xf32>
    %594 = vector.broadcast %580 : vector<8x1x32xf32> to vector<8x8x32xf32>
    %595 = arith.subf %576, %594 : vector<8x8x32xf32>
    %596 = vector.broadcast %593 : vector<8x1x32xf32> to vector<8x8x32xf32>
    %597 = arith.mulf %595, %596 : vector<8x8x32xf32>
    %598 = vector.shape_cast %11 : vector<1x32xf32> to vector<1x1x32xf32>
    %599 = vector.broadcast %598 : vector<1x1x32xf32> to vector<8x8x32xf32>
    %600 = arith.addf %597, %599 : vector<8x8x32xf32>
    %cst_191 = arith.constant 0.000000e+00 : f32
    %601 = vector.broadcast %cst_191 : f32 to vector<8x32xf32>
    %602 = vector.extract_strided_slice %600 {offsets = [0, 0, 0], sizes = [1, 8, 32], strides = [1, 1, 1]} : vector<8x8x32xf32> to vector<1x8x32xf32>
    %603 = vector.shape_cast %602 : vector<1x8x32xf32> to vector<8x32xf32>
    %604 = vector.broadcast %9 : vector<1x32xf32> to vector<8x32xf32>
    %605 = arith.mulf %601, %604 : vector<8x32xf32>
    %606 = arith.addf %603, %605 : vector<8x32xf32>
    %cst_192 = arith.constant 0.000000e+00 : f32
    %607 = vector.broadcast %cst_192 : f32 to vector<8x32xf32>
    %608 = arith.maximumf %606, %607 : vector<8x32xf32>
    %cst_193 = arith.constant dense<0.000000e+00> : vector<32xf32>
    %609 = vector.multi_reduction <add>, %608, %cst_193 [0] : vector<8x32xf32> to vector<32xf32>
    %610 = vector.shape_cast %609 : vector<32xf32> to vector<1x32xf32>
    %cst_194 = arith.constant 1.250000e-01 : f32
    %611 = vector.broadcast %cst_194 : f32 to vector<1x32xf32>
    %612 = arith.mulf %610, %611 : vector<1x32xf32>
    %613 = arith.mulf %608, %608 : vector<8x32xf32>
    %cst_195 = arith.constant dense<0.000000e+00> : vector<32xf32>
    %614 = vector.multi_reduction <add>, %613, %cst_195 [0] : vector<8x32xf32> to vector<32xf32>
    %615 = vector.shape_cast %614 : vector<32xf32> to vector<1x32xf32>
    %cst_196 = arith.constant 1.250000e-01 : f32
    %616 = vector.broadcast %cst_196 : f32 to vector<1x32xf32>
    %617 = arith.mulf %615, %616 : vector<1x32xf32>
    %618 = arith.mulf %612, %612 : vector<1x32xf32>
    %619 = arith.subf %617, %618 : vector<1x32xf32>
    %cst_197 = arith.constant 9.99999974E-6 : f32
    %620 = vector.broadcast %cst_197 : f32 to vector<1x32xf32>
    %621 = arith.addf %619, %620 : vector<1x32xf32>
    %622 = math.rsqrt %621 : vector<1x32xf32>
    %623 = arith.mulf %12, %622 : vector<1x32xf32>
    %624 = vector.broadcast %612 : vector<1x32xf32> to vector<8x32xf32>
    %625 = arith.subf %608, %624 : vector<8x32xf32>
    %626 = vector.broadcast %623 : vector<1x32xf32> to vector<8x32xf32>
    %627 = arith.mulf %625, %626 : vector<8x32xf32>
    %628 = vector.broadcast %13 : vector<1x32xf32> to vector<8x32xf32>
    %629 = arith.addf %627, %628 : vector<8x32xf32>
    %630 = vector.extract_strided_slice %600 {offsets = [1, 0, 0], sizes = [1, 8, 32], strides = [1, 1, 1]} : vector<8x8x32xf32> to vector<1x8x32xf32>
    %631 = vector.shape_cast %630 : vector<1x8x32xf32> to vector<8x32xf32>
    %632 = vector.broadcast %9 : vector<1x32xf32> to vector<8x32xf32>
    %633 = arith.mulf %629, %632 : vector<8x32xf32>
    %634 = arith.addf %631, %633 : vector<8x32xf32>
    %cst_198 = arith.constant 0.000000e+00 : f32
    %635 = vector.broadcast %cst_198 : f32 to vector<8x32xf32>
    %636 = arith.maximumf %634, %635 : vector<8x32xf32>
    %cst_199 = arith.constant dense<0.000000e+00> : vector<32xf32>
    %637 = vector.multi_reduction <add>, %636, %cst_199 [0] : vector<8x32xf32> to vector<32xf32>
    %638 = vector.shape_cast %637 : vector<32xf32> to vector<1x32xf32>
    %cst_200 = arith.constant 1.250000e-01 : f32
    %639 = vector.broadcast %cst_200 : f32 to vector<1x32xf32>
    %640 = arith.mulf %638, %639 : vector<1x32xf32>
    %641 = arith.mulf %636, %636 : vector<8x32xf32>
    %cst_201 = arith.constant dense<0.000000e+00> : vector<32xf32>
    %642 = vector.multi_reduction <add>, %641, %cst_201 [0] : vector<8x32xf32> to vector<32xf32>
    %643 = vector.shape_cast %642 : vector<32xf32> to vector<1x32xf32>
    %cst_202 = arith.constant 1.250000e-01 : f32
    %644 = vector.broadcast %cst_202 : f32 to vector<1x32xf32>
    %645 = arith.mulf %643, %644 : vector<1x32xf32>
    %646 = arith.mulf %640, %640 : vector<1x32xf32>
    %647 = arith.subf %645, %646 : vector<1x32xf32>
    %cst_203 = arith.constant 9.99999974E-6 : f32
    %648 = vector.broadcast %cst_203 : f32 to vector<1x32xf32>
    %649 = arith.addf %647, %648 : vector<1x32xf32>
    %650 = math.rsqrt %649 : vector<1x32xf32>
    %651 = arith.mulf %12, %650 : vector<1x32xf32>
    %652 = vector.broadcast %640 : vector<1x32xf32> to vector<8x32xf32>
    %653 = arith.subf %636, %652 : vector<8x32xf32>
    %654 = vector.broadcast %651 : vector<1x32xf32> to vector<8x32xf32>
    %655 = arith.mulf %653, %654 : vector<8x32xf32>
    %656 = vector.broadcast %13 : vector<1x32xf32> to vector<8x32xf32>
    %657 = arith.addf %655, %656 : vector<8x32xf32>
    %658 = vector.extract_strided_slice %600 {offsets = [2, 0, 0], sizes = [1, 8, 32], strides = [1, 1, 1]} : vector<8x8x32xf32> to vector<1x8x32xf32>
    %659 = vector.shape_cast %658 : vector<1x8x32xf32> to vector<8x32xf32>
    %660 = vector.broadcast %9 : vector<1x32xf32> to vector<8x32xf32>
    %661 = arith.mulf %657, %660 : vector<8x32xf32>
    %662 = arith.addf %659, %661 : vector<8x32xf32>
    %cst_204 = arith.constant 0.000000e+00 : f32
    %663 = vector.broadcast %cst_204 : f32 to vector<8x32xf32>
    %664 = arith.maximumf %662, %663 : vector<8x32xf32>
    %cst_205 = arith.constant dense<0.000000e+00> : vector<32xf32>
    %665 = vector.multi_reduction <add>, %664, %cst_205 [0] : vector<8x32xf32> to vector<32xf32>
    %666 = vector.shape_cast %665 : vector<32xf32> to vector<1x32xf32>
    %cst_206 = arith.constant 1.250000e-01 : f32
    %667 = vector.broadcast %cst_206 : f32 to vector<1x32xf32>
    %668 = arith.mulf %666, %667 : vector<1x32xf32>
    %669 = arith.mulf %664, %664 : vector<8x32xf32>
    %cst_207 = arith.constant dense<0.000000e+00> : vector<32xf32>
    %670 = vector.multi_reduction <add>, %669, %cst_207 [0] : vector<8x32xf32> to vector<32xf32>
    %671 = vector.shape_cast %670 : vector<32xf32> to vector<1x32xf32>
    %cst_208 = arith.constant 1.250000e-01 : f32
    %672 = vector.broadcast %cst_208 : f32 to vector<1x32xf32>
    %673 = arith.mulf %671, %672 : vector<1x32xf32>
    %674 = arith.mulf %668, %668 : vector<1x32xf32>
    %675 = arith.subf %673, %674 : vector<1x32xf32>
    %cst_209 = arith.constant 9.99999974E-6 : f32
    %676 = vector.broadcast %cst_209 : f32 to vector<1x32xf32>
    %677 = arith.addf %675, %676 : vector<1x32xf32>
    %678 = math.rsqrt %677 : vector<1x32xf32>
    %679 = arith.mulf %12, %678 : vector<1x32xf32>
    %680 = vector.broadcast %668 : vector<1x32xf32> to vector<8x32xf32>
    %681 = arith.subf %664, %680 : vector<8x32xf32>
    %682 = vector.broadcast %679 : vector<1x32xf32> to vector<8x32xf32>
    %683 = arith.mulf %681, %682 : vector<8x32xf32>
    %684 = vector.broadcast %13 : vector<1x32xf32> to vector<8x32xf32>
    %685 = arith.addf %683, %684 : vector<8x32xf32>
    %686 = vector.extract_strided_slice %600 {offsets = [3, 0, 0], sizes = [1, 8, 32], strides = [1, 1, 1]} : vector<8x8x32xf32> to vector<1x8x32xf32>
    %687 = vector.shape_cast %686 : vector<1x8x32xf32> to vector<8x32xf32>
    %688 = vector.broadcast %9 : vector<1x32xf32> to vector<8x32xf32>
    %689 = arith.mulf %685, %688 : vector<8x32xf32>
    %690 = arith.addf %687, %689 : vector<8x32xf32>
    %cst_210 = arith.constant 0.000000e+00 : f32
    %691 = vector.broadcast %cst_210 : f32 to vector<8x32xf32>
    %692 = arith.maximumf %690, %691 : vector<8x32xf32>
    %cst_211 = arith.constant dense<0.000000e+00> : vector<32xf32>
    %693 = vector.multi_reduction <add>, %692, %cst_211 [0] : vector<8x32xf32> to vector<32xf32>
    %694 = vector.shape_cast %693 : vector<32xf32> to vector<1x32xf32>
    %cst_212 = arith.constant 1.250000e-01 : f32
    %695 = vector.broadcast %cst_212 : f32 to vector<1x32xf32>
    %696 = arith.mulf %694, %695 : vector<1x32xf32>
    %697 = arith.mulf %692, %692 : vector<8x32xf32>
    %cst_213 = arith.constant dense<0.000000e+00> : vector<32xf32>
    %698 = vector.multi_reduction <add>, %697, %cst_213 [0] : vector<8x32xf32> to vector<32xf32>
    %699 = vector.shape_cast %698 : vector<32xf32> to vector<1x32xf32>
    %cst_214 = arith.constant 1.250000e-01 : f32
    %700 = vector.broadcast %cst_214 : f32 to vector<1x32xf32>
    %701 = arith.mulf %699, %700 : vector<1x32xf32>
    %702 = arith.mulf %696, %696 : vector<1x32xf32>
    %703 = arith.subf %701, %702 : vector<1x32xf32>
    %cst_215 = arith.constant 9.99999974E-6 : f32
    %704 = vector.broadcast %cst_215 : f32 to vector<1x32xf32>
    %705 = arith.addf %703, %704 : vector<1x32xf32>
    %706 = math.rsqrt %705 : vector<1x32xf32>
    %707 = arith.mulf %12, %706 : vector<1x32xf32>
    %708 = vector.broadcast %696 : vector<1x32xf32> to vector<8x32xf32>
    %709 = arith.subf %692, %708 : vector<8x32xf32>
    %710 = vector.broadcast %707 : vector<1x32xf32> to vector<8x32xf32>
    %711 = arith.mulf %709, %710 : vector<8x32xf32>
    %712 = vector.broadcast %13 : vector<1x32xf32> to vector<8x32xf32>
    %713 = arith.addf %711, %712 : vector<8x32xf32>
    %714 = vector.extract_strided_slice %600 {offsets = [4, 0, 0], sizes = [1, 8, 32], strides = [1, 1, 1]} : vector<8x8x32xf32> to vector<1x8x32xf32>
    %715 = vector.shape_cast %714 : vector<1x8x32xf32> to vector<8x32xf32>
    %716 = vector.broadcast %9 : vector<1x32xf32> to vector<8x32xf32>
    %717 = arith.mulf %713, %716 : vector<8x32xf32>
    %718 = arith.addf %715, %717 : vector<8x32xf32>
    %cst_216 = arith.constant 0.000000e+00 : f32
    %719 = vector.broadcast %cst_216 : f32 to vector<8x32xf32>
    %720 = arith.maximumf %718, %719 : vector<8x32xf32>
    %cst_217 = arith.constant dense<0.000000e+00> : vector<32xf32>
    %721 = vector.multi_reduction <add>, %720, %cst_217 [0] : vector<8x32xf32> to vector<32xf32>
    %722 = vector.shape_cast %721 : vector<32xf32> to vector<1x32xf32>
    %cst_218 = arith.constant 1.250000e-01 : f32
    %723 = vector.broadcast %cst_218 : f32 to vector<1x32xf32>
    %724 = arith.mulf %722, %723 : vector<1x32xf32>
    %725 = arith.mulf %720, %720 : vector<8x32xf32>
    %cst_219 = arith.constant dense<0.000000e+00> : vector<32xf32>
    %726 = vector.multi_reduction <add>, %725, %cst_219 [0] : vector<8x32xf32> to vector<32xf32>
    %727 = vector.shape_cast %726 : vector<32xf32> to vector<1x32xf32>
    %cst_220 = arith.constant 1.250000e-01 : f32
    %728 = vector.broadcast %cst_220 : f32 to vector<1x32xf32>
    %729 = arith.mulf %727, %728 : vector<1x32xf32>
    %730 = arith.mulf %724, %724 : vector<1x32xf32>
    %731 = arith.subf %729, %730 : vector<1x32xf32>
    %cst_221 = arith.constant 9.99999974E-6 : f32
    %732 = vector.broadcast %cst_221 : f32 to vector<1x32xf32>
    %733 = arith.addf %731, %732 : vector<1x32xf32>
    %734 = math.rsqrt %733 : vector<1x32xf32>
    %735 = arith.mulf %12, %734 : vector<1x32xf32>
    %736 = vector.broadcast %724 : vector<1x32xf32> to vector<8x32xf32>
    %737 = arith.subf %720, %736 : vector<8x32xf32>
    %738 = vector.broadcast %735 : vector<1x32xf32> to vector<8x32xf32>
    %739 = arith.mulf %737, %738 : vector<8x32xf32>
    %740 = vector.broadcast %13 : vector<1x32xf32> to vector<8x32xf32>
    %741 = arith.addf %739, %740 : vector<8x32xf32>
    %742 = vector.extract_strided_slice %600 {offsets = [5, 0, 0], sizes = [1, 8, 32], strides = [1, 1, 1]} : vector<8x8x32xf32> to vector<1x8x32xf32>
    %743 = vector.shape_cast %742 : vector<1x8x32xf32> to vector<8x32xf32>
    %744 = vector.broadcast %9 : vector<1x32xf32> to vector<8x32xf32>
    %745 = arith.mulf %741, %744 : vector<8x32xf32>
    %746 = arith.addf %743, %745 : vector<8x32xf32>
    %cst_222 = arith.constant 0.000000e+00 : f32
    %747 = vector.broadcast %cst_222 : f32 to vector<8x32xf32>
    %748 = arith.maximumf %746, %747 : vector<8x32xf32>
    %cst_223 = arith.constant dense<0.000000e+00> : vector<32xf32>
    %749 = vector.multi_reduction <add>, %748, %cst_223 [0] : vector<8x32xf32> to vector<32xf32>
    %750 = vector.shape_cast %749 : vector<32xf32> to vector<1x32xf32>
    %cst_224 = arith.constant 1.250000e-01 : f32
    %751 = vector.broadcast %cst_224 : f32 to vector<1x32xf32>
    %752 = arith.mulf %750, %751 : vector<1x32xf32>
    %753 = arith.mulf %748, %748 : vector<8x32xf32>
    %cst_225 = arith.constant dense<0.000000e+00> : vector<32xf32>
    %754 = vector.multi_reduction <add>, %753, %cst_225 [0] : vector<8x32xf32> to vector<32xf32>
    %755 = vector.shape_cast %754 : vector<32xf32> to vector<1x32xf32>
    %cst_226 = arith.constant 1.250000e-01 : f32
    %756 = vector.broadcast %cst_226 : f32 to vector<1x32xf32>
    %757 = arith.mulf %755, %756 : vector<1x32xf32>
    %758 = arith.mulf %752, %752 : vector<1x32xf32>
    %759 = arith.subf %757, %758 : vector<1x32xf32>
    %cst_227 = arith.constant 9.99999974E-6 : f32
    %760 = vector.broadcast %cst_227 : f32 to vector<1x32xf32>
    %761 = arith.addf %759, %760 : vector<1x32xf32>
    %762 = math.rsqrt %761 : vector<1x32xf32>
    %763 = arith.mulf %12, %762 : vector<1x32xf32>
    %764 = vector.broadcast %752 : vector<1x32xf32> to vector<8x32xf32>
    %765 = arith.subf %748, %764 : vector<8x32xf32>
    %766 = vector.broadcast %763 : vector<1x32xf32> to vector<8x32xf32>
    %767 = arith.mulf %765, %766 : vector<8x32xf32>
    %768 = vector.broadcast %13 : vector<1x32xf32> to vector<8x32xf32>
    %769 = arith.addf %767, %768 : vector<8x32xf32>
    %770 = vector.extract_strided_slice %600 {offsets = [6, 0, 0], sizes = [1, 8, 32], strides = [1, 1, 1]} : vector<8x8x32xf32> to vector<1x8x32xf32>
    %771 = vector.shape_cast %770 : vector<1x8x32xf32> to vector<8x32xf32>
    %772 = vector.broadcast %9 : vector<1x32xf32> to vector<8x32xf32>
    %773 = arith.mulf %769, %772 : vector<8x32xf32>
    %774 = arith.addf %771, %773 : vector<8x32xf32>
    %cst_228 = arith.constant 0.000000e+00 : f32
    %775 = vector.broadcast %cst_228 : f32 to vector<8x32xf32>
    %776 = arith.maximumf %774, %775 : vector<8x32xf32>
    %cst_229 = arith.constant dense<0.000000e+00> : vector<32xf32>
    %777 = vector.multi_reduction <add>, %776, %cst_229 [0] : vector<8x32xf32> to vector<32xf32>
    %778 = vector.shape_cast %777 : vector<32xf32> to vector<1x32xf32>
    %cst_230 = arith.constant 1.250000e-01 : f32
    %779 = vector.broadcast %cst_230 : f32 to vector<1x32xf32>
    %780 = arith.mulf %778, %779 : vector<1x32xf32>
    %781 = arith.mulf %776, %776 : vector<8x32xf32>
    %cst_231 = arith.constant dense<0.000000e+00> : vector<32xf32>
    %782 = vector.multi_reduction <add>, %781, %cst_231 [0] : vector<8x32xf32> to vector<32xf32>
    %783 = vector.shape_cast %782 : vector<32xf32> to vector<1x32xf32>
    %cst_232 = arith.constant 1.250000e-01 : f32
    %784 = vector.broadcast %cst_232 : f32 to vector<1x32xf32>
    %785 = arith.mulf %783, %784 : vector<1x32xf32>
    %786 = arith.mulf %780, %780 : vector<1x32xf32>
    %787 = arith.subf %785, %786 : vector<1x32xf32>
    %cst_233 = arith.constant 9.99999974E-6 : f32
    %788 = vector.broadcast %cst_233 : f32 to vector<1x32xf32>
    %789 = arith.addf %787, %788 : vector<1x32xf32>
    %790 = math.rsqrt %789 : vector<1x32xf32>
    %791 = arith.mulf %12, %790 : vector<1x32xf32>
    %792 = vector.broadcast %780 : vector<1x32xf32> to vector<8x32xf32>
    %793 = arith.subf %776, %792 : vector<8x32xf32>
    %794 = vector.broadcast %791 : vector<1x32xf32> to vector<8x32xf32>
    %795 = arith.mulf %793, %794 : vector<8x32xf32>
    %796 = vector.broadcast %13 : vector<1x32xf32> to vector<8x32xf32>
    %797 = arith.addf %795, %796 : vector<8x32xf32>
    %798 = vector.extract_strided_slice %600 {offsets = [7, 0, 0], sizes = [1, 8, 32], strides = [1, 1, 1]} : vector<8x8x32xf32> to vector<1x8x32xf32>
    %799 = vector.shape_cast %798 : vector<1x8x32xf32> to vector<8x32xf32>
    %800 = vector.broadcast %9 : vector<1x32xf32> to vector<8x32xf32>
    %801 = arith.mulf %797, %800 : vector<8x32xf32>
    %802 = arith.addf %799, %801 : vector<8x32xf32>
    %cst_234 = arith.constant 0.000000e+00 : f32
    %803 = vector.broadcast %cst_234 : f32 to vector<8x32xf32>
    %804 = arith.maximumf %802, %803 : vector<8x32xf32>
    %cst_235 = arith.constant dense<0.000000e+00> : vector<32xf32>
    %805 = vector.multi_reduction <add>, %804, %cst_235 [0] : vector<8x32xf32> to vector<32xf32>
    %806 = vector.shape_cast %805 : vector<32xf32> to vector<1x32xf32>
    %cst_236 = arith.constant 1.250000e-01 : f32
    %807 = vector.broadcast %cst_236 : f32 to vector<1x32xf32>
    %808 = arith.mulf %806, %807 : vector<1x32xf32>
    %809 = arith.mulf %804, %804 : vector<8x32xf32>
    %cst_237 = arith.constant dense<0.000000e+00> : vector<32xf32>
    %810 = vector.multi_reduction <add>, %809, %cst_237 [0] : vector<8x32xf32> to vector<32xf32>
    %811 = vector.shape_cast %810 : vector<32xf32> to vector<1x32xf32>
    %cst_238 = arith.constant 1.250000e-01 : f32
    %812 = vector.broadcast %cst_238 : f32 to vector<1x32xf32>
    %813 = arith.mulf %811, %812 : vector<1x32xf32>
    %814 = arith.mulf %808, %808 : vector<1x32xf32>
    %815 = arith.subf %813, %814 : vector<1x32xf32>
    %cst_239 = arith.constant 9.99999974E-6 : f32
    %816 = vector.broadcast %cst_239 : f32 to vector<1x32xf32>
    %817 = arith.addf %815, %816 : vector<1x32xf32>
    %818 = math.rsqrt %817 : vector<1x32xf32>
    %819 = arith.mulf %12, %818 : vector<1x32xf32>
    %820 = vector.broadcast %808 : vector<1x32xf32> to vector<8x32xf32>
    %821 = arith.subf %804, %820 : vector<8x32xf32>
    %822 = vector.broadcast %819 : vector<1x32xf32> to vector<8x32xf32>
    %823 = arith.mulf %821, %822 : vector<8x32xf32>
    %824 = vector.broadcast %13 : vector<1x32xf32> to vector<8x32xf32>
    %825 = arith.addf %823, %824 : vector<8x32xf32>
    %c0_240 = arith.constant 0 : index
    %c0_241 = arith.constant 0 : index
    %826 = vector.load %arg15[%c0_240, %c0_241] : memref<32x8xf32, #tpu.memory_space<vmem>>, vector<32x8xf32>
    %cst_242 = arith.constant dense<0.000000e+00> : vector<8x8xf32>
    %827 = tpu.matmul %825, %826, %cst_242 {dimension_numbers = #tpu.dot_dimension_numbers<[1], [0], [0], [1], [0, 0, 1, 1], [], []>, precision = #tpu.contract_precision<fp32>} : vector<8x32xf32>, vector<32x8xf32>, vector<8x8xf32> -> vector<8x8xf32>
    %c0_243 = arith.constant 0 : index
    %c0_244 = arith.constant 0 : index
    %828 = vector.load %arg16[%c0_243, %c0_244] : memref<1x8xf32, #tpu.memory_space<vmem>>, vector<1x8xf32>
    %829 = vector.broadcast %828 : vector<1x8xf32> to vector<8x8xf32>
    %830 = arith.addf %827, %829 : vector<8x8xf32>
    %cst_245 = arith.constant dense<0xFF800000> : vector<8xf32>
    %831 = vector.multi_reduction <maximumf>, %830, %cst_245 [1] : vector<8x8xf32> to vector<8xf32>
    %832 = vector.shape_cast %831 : vector<8xf32> to vector<8x1xf32>
    %833 = vector.broadcast %832 : vector<8x1xf32> to vector<8x8xf32>
    %834 = arith.subf %830, %833 : vector<8x8xf32>
    %835 = math.exp %834 : vector<8x8xf32>
    %cst_246 = arith.constant dense<0.000000e+00> : vector<8xf32>
    %836 = vector.multi_reduction <add>, %835, %cst_246 [1] : vector<8x8xf32> to vector<8xf32>
    %837 = vector.shape_cast %836 : vector<8xf32> to vector<8x1xf32>
    %838 = math.log %837 : vector<8x1xf32>
    %839 = vector.broadcast %838 : vector<8x1xf32> to vector<8x8xf32>
    %840 = arith.subf %834, %839 : vector<8x8xf32>
    %c0_247 = arith.constant 0 : index
    %c0_248 = arith.constant 0 : index
    %841 = vector.load %arg17[%c0_247, %c0_248] : memref<8x8xf32, #tpu.memory_space<vmem>>, vector<8x8xf32>
    tpu.vector_store %arg17[%c0_247, %c0_248], %840 {strides = array<i32>} : memref<8x8xf32, #tpu.memory_space<vmem>>, vector<8x8xf32>,
    return
  }
}

</mosaic_0001>

<llo_original>
// kernel: indrnn_forward.1
$region0: #{indrnn_forward.1}
  #allocation0 [shape = 'u32[]', space=smem, size = 0x4, offset = 0x4, fixed_abs, tag = 'smem constant byte address 0x4 - core index']
  #allocation1 [shape = 'u32[144,128]{1,0:T(1,128)}', space=vmem, size = 0x12000, scoped, tag = 'internal scratch']
  #allocation2 [shape = 'f32[8,8,32]{2,1,0:T(8,128)}', space=vmem, size = 0x8000, scoped, tag = 'scratch operand']
  %s0 = inlined_call_operand.vmem [shape: f32[64,16], index: 0, kind: input, shape index: {}]
  %s1 = inlined_call_operand.vmem [shape: f32[16,32], index: 1, kind: input, shape index: {}]
  %s2 = inlined_call_operand.vmem [shape: f32[1,32], index: 2, kind: input, shape index: {}]
  %s3 = inlined_call_operand.vmem [shape: f32[1,32], index: 3, kind: input, shape index: {}]
  %s4 = inlined_call_operand.vmem [shape: f32[1,32], index: 4, kind: input, shape index: {}]
  %s5 = inlined_call_operand.vmem [shape: f32[1,32], index: 5, kind: input, shape index: {}]
  %s6 = inlined_call_operand.vmem [shape: f32[1,32], index: 6, kind: input, shape index: {}]
  %s7 = inlined_call_operand.vmem [shape: f32[1,32], index: 7, kind: input, shape index: {}]
  %s8 = inlined_call_operand.vmem [shape: f32[32,32], index: 8, kind: input, shape index: {}]
  %s9 = inlined_call_operand.vmem [shape: f32[1,32], index: 9, kind: input, shape index: {}]
  %s10 = inlined_call_operand.vmem [shape: f32[1,32], index: 10, kind: input, shape index: {}]
  %s11 = inlined_call_operand.vmem [shape: f32[1,32], index: 11, kind: input, shape index: {}]
  %s12 = inlined_call_operand.vmem [shape: f32[1,32], index: 12, kind: input, shape index: {}]
  %s13 = inlined_call_operand.vmem [shape: f32[1,32], index: 13, kind: input, shape index: {}]
  %s14 = inlined_call_operand.vmem [shape: f32[1,32], index: 14, kind: input, shape index: {}]
  %s15 = inlined_call_operand.vmem [shape: f32[32,8], index: 15, kind: input, shape index: {}]
  %s16 = inlined_call_operand.vmem [shape: f32[1,8], index: 16, kind: input, shape index: {}]
  %s17 = inlined_call_operand.hbm [shape: f32[8,8], index: 17, kind: output, shape index: {}]
  %s18 = sld [smem:[#allocation0]]
  $region78: #{indrnn_forward.1} parent=0
    _
  %s20 = ssub.s32 1, %s18
  %s21 = scalar_select 0, %s20, %s18
  $region1: #{indrnn_forward.1} parent=0
    #allocation3 [shape = 'u8[4096]{0}', space=vmem, size = 0x1000, scoped, tag = 'output window, operand 0, single buffered']
    #allocation4 [shape = 's32[1]{0}', space=sflag, size = 0x4, scoped, tag = 'scoped memory for indrnn_forward.1']
    %22 = vsyncpa [#allocation4], 0
    // Predicated region
    $region2: #{indrnn_forward.1} parent=1 // pred_check
      _
    $region3: #{indrnn_forward.1} parent=1 // pred_check_branch
      %24 = sbr.rel (0) target = $region5
    $region4: #{indrnn_forward.1} parent=1 // pred_region
      _
    $region5: #{indrnn_forward.1} parent=1 // pred_fallthru
      _
    // Predicated region
    $region6: #{indrnn_forward.1} parent=1 // pred_check
      _
    $region7: #{indrnn_forward.1} parent=1 // pred_check_branch
      %26 = sbr.rel (0) target = $region9
    $region8: #{indrnn_forward.1} parent=1 // pred_region
      _
    $region9: #{indrnn_forward.1} parent=1 // pred_fallthru
      _
    // Predicated region
    $region10: #{indrnn_forward.1} parent=1 // pred_check
      _
    $region11: #{indrnn_forward.1} parent=1 // pred_check_branch
      %28 = sbr.rel (0) target = $region13
    $region12: #{indrnn_forward.1} parent=1 // pred_region
      _
    $region13: #{indrnn_forward.1} parent=1 // pred_fallthru
      _
    // Predicated region
    $region14: #{indrnn_forward.1} parent=1 // pred_check
      _
    $region15: #{indrnn_forward.1} parent=1 // pred_check_branch
      %30 = sbr.rel (0) target = $region17
    $region16: #{indrnn_forward.1} parent=1 // pred_region
      _
    $region17: #{indrnn_forward.1} parent=1 // pred_fallthru
      _
    // Predicated region
    $region18: #{indrnn_forward.1} parent=1 // pred_check
      _
    $region19: #{indrnn_forward.1} parent=1 // pred_check_branch
      %32 = sbr.rel (0) target = $region21
    $region20: #{indrnn_forward.1} parent=1 // pred_region
      _
    $region21: #{indrnn_forward.1} parent=1 // pred_fallthru
      _
    // Predicated region
    $region22: #{indrnn_forward.1} parent=1 // pred_check
      _
    $region23: #{indrnn_forward.1} parent=1 // pred_check_branch
      %34 = sbr.rel (0) target = $region25
    $region24: #{indrnn_forward.1} parent=1 // pred_region
      _
    $region25: #{indrnn_forward.1} parent=1 // pred_fallthru
      _
    // Predicated region
    $region26: #{indrnn_forward.1} parent=1 // pred_check
      _
    $region27: #{indrnn_forward.1} parent=1 // pred_check_branch
      %36 = sbr.rel (0) target = $region29
    $region28: #{indrnn_forward.1} parent=1 // pred_region
      _
    $region29: #{indrnn_forward.1} parent=1 // pred_fallthru
      _
    // Predicated region
    $region30: #{indrnn_forward.1} parent=1 // pred_check
      _
    $region31: #{indrnn_forward.1} parent=1 // pred_check_branch
      %38 = sbr.rel (0) target = $region33
    $region32: #{indrnn_forward.1} parent=1 // pred_region
      _
    $region33: #{indrnn_forward.1} parent=1 // pred_fallthru
      _
    // Predicated region
    $region34: #{indrnn_forward.1} parent=1 // pred_check
      _
    $region35: #{indrnn_forward.1} parent=1 // pred_check_branch
      %40 = sbr.rel (0) target = $region37
    $region36: #{indrnn_forward.1} parent=1 // pred_region
      _
    $region37: #{indrnn_forward.1} parent=1 // pred_fallthru
      _
    // Predicated region
    $region38: #{indrnn_forward.1} parent=1 // pred_check
      _
    $region39: #{indrnn_forward.1} parent=1 // pred_check_branch
      %42 = sbr.rel (0) target = $region41
    $region40: #{indrnn_forward.1} parent=1 // pred_region
      _
    $region41: #{indrnn_forward.1} parent=1 // pred_fallthru
      _
    // Predicated region
    $region42: #{indrnn_forward.1} parent=1 // pred_check
      _
    $region43: #{indrnn_forward.1} parent=1 // pred_check_branch
      %44 = sbr.rel (0) target = $region45
    $region44: #{indrnn_forward.1} parent=1 // pred_region
      _
    $region45: #{indrnn_forward.1} parent=1 // pred_fallthru
      _
    // Predicated region
    $region46: #{indrnn_forward.1} parent=1 // pred_check
      _
    $region47: #{indrnn_forward.1} parent=1 // pred_check_branch
      %46 = sbr.rel (0) target = $region49
    $region48: #{indrnn_forward.1} parent=1 // pred_region
      _
    $region49: #{indrnn_forward.1} parent=1 // pred_fallthru
      _
    // Predicated region
    $region50: #{indrnn_forward.1} parent=1 // pred_check
      _
    $region51: #{indrnn_forward.1} parent=1 // pred_check_branch
      %48 = sbr.rel (0) target = $region53
    $region52: #{indrnn_forward.1} parent=1 // pred_region
      _
    $region53: #{indrnn_forward.1} parent=1 // pred_fallthru
      _
    // Predicated region
    $region54: #{indrnn_forward.1} parent=1 // pred_check
      _
    $region55: #{indrnn_forward.1} parent=1 // pred_check_branch
      %50 = sbr.rel (0) target = $region57
    $region56: #{indrnn_forward.1} parent=1 // pred_region
      _
    $region57: #{indrnn_forward.1} parent=1 // pred_fallthru
      _
    // Predicated region
    $region58: #{indrnn_forward.1} parent=1 // pred_check
      _
    $region59: #{indrnn_forward.1} parent=1 // pred_check_branch
      %52 = sbr.rel (0) target = $region61
    $region60: #{indrnn_forward.1} parent=1 // pred_region
      _
    $region61: #{indrnn_forward.1} parent=1 // pred_fallthru
      _
    // Predicated region
    $region62: #{indrnn_forward.1} parent=1 // pred_check
      _
    $region63: #{indrnn_forward.1} parent=1 // pred_check_branch
      %54 = sbr.rel (0) target = $region65
    $region64: #{indrnn_forward.1} parent=1 // pred_region
      _
    $region65: #{indrnn_forward.1} parent=1 // pred_fallthru
      _
    // Predicated region
    $region66: #{indrnn_forward.1} parent=1 // pred_check
      _
    $region67: #{indrnn_forward.1} parent=1 // pred_check_branch
      %56 = sbr.rel (0) target = $region69
    $region68: #{indrnn_forward.1} parent=1 // pred_region
      _
    $region69: #{indrnn_forward.1} parent=1 // pred_fallthru
      _
    %v57 = vld [vmem:[%s1] sm:$0xff]
    %v58 = vld [vmem:[%s1 + $0x8] sm:$0xff]
    %v59 = vld [vmem:[%s2] sm:$0x1]
    %v60 = vld [vmem:[%s3] sm:$0x1]
    %v61 = vld [vmem:[%s4] sm:$0x1]
    %v62 = vld [vmem:[%s5] sm:$0x1]
    %v63 = vld [vmem:[%s6] sm:$0x1]
    %v64 = vld [vmem:[%s7] sm:$0x1]
    %v65 = vld [vmem:[%s8] sm:$0xff]
    %v66 = vld [vmem:[%s8 + $0x8] sm:$0xff]
    %v67 = vld [vmem:[%s8 + $0x10] sm:$0xff]
    %v68 = vld [vmem:[%s8 + $0x18] sm:$0xff]
    %v69 = vld [vmem:[%s9] sm:$0x1]
    %v70 = vld [vmem:[%s10] sm:$0x1]
    %v71 = vld [vmem:[%s11] sm:$0x1]
    %v72 = vld [vmem:[%s12] sm:$0x1]
    %v73 = vld [vmem:[%s13] sm:$0x1]
    %v74 = vld [vmem:[%s14] sm:$0x1]
    %v75 = vld [vmem:[%s0] sm:$0xff]
    %v76 = vld [vmem:[%s0 + $0x8] sm:$0xff]
    %v77 = vld [vmem:[%s0 + $0x10] sm:$0xff]
    %v78 = vld [vmem:[%s0 + $0x18] sm:$0xff]
    %v79 = vld [vmem:[%s0 + $0x20] sm:$0xff]
    %v80 = vld [vmem:[%s0 + $0x28] sm:$0xff]
    %v81 = vld [vmem:[%s0 + $0x30] sm:$0xff]
    %v82 = vld [vmem:[%s0 + $0x38] sm:$0xff]
    %v84 = vlaneseq
    %v85 = vshrl.u32 %v84, 7
    %v86 = vsub.s32 0, %v85
    %v87 = vrot.slane %v59, %v86
    %vm89 = vcmask 130048
    %v91 = vsel %vm89, %v75, 0
    %v94 = vsel %vm89, %v76, 0
    %v97 = vsel %vm89, %v77, 0
    %v100 = vsel %vm89, %v78, 0
    %v103 = vsel %vm89, %v79, 0
    %v106 = vsel %vm89, %v80, 0
    %v109 = vsel %vm89, %v81, 0
    %v112 = vsel %vm89, %v82, 0
    %114 = vmatprep.subr.mxu0 0.0
    %v115 = vand.u32 %v57, 4294901760
    %116 = vmatpush1.msra.mxu0 %v115
    %117 = vmatprep.subr.mxu0 0.0
    %v118 = vand.u32 %v58, 4294901760
    %119 = vmatpush1.msra.mxu0 %v118
    %120 = vmatprep.subr.mxu0 0.0
    %121 = vmatpush1.msra.mxu0 0.0
    %122 = vmatprep.subr.mxu0 0.0
    %123 = vmatpush1.msra.mxu0 0.0
    %124 = vmatprep.subr.mxu0 0.0
    %125 = vmatpush1.msra.mxu0 0.0
    %126 = vmatprep.subr.mxu0 0.0
    %127 = vmatpush1.msra.mxu0 0.0
    %128 = vmatprep.subr.mxu0 0.0
    %129 = vmatpush1.msra.mxu0 0.0
    %130 = vmatprep.subr.mxu0 0.0
    %131 = vmatpush1.msra.mxu0 0.0
    %132 = vmatprep.subr.mxu0 0.0
    %133 = vmatpush1.msra.mxu0 0.0
    %134 = vmatprep.subr.mxu0 0.0
    %135 = vmatpush1.msra.mxu0 0.0
    %136 = vmatprep.subr.mxu0 0.0
    %137 = vmatpush1.msra.mxu0 0.0
    %138 = vmatprep.subr.mxu0 0.0
    %139 = vmatpush1.msra.mxu0 0.0
    %140 = vmatprep.subr.mxu0 0.0
    %141 = vmatpush1.msra.mxu0 0.0
    %142 = vmatprep.subr.mxu0 0.0
    %143 = vmatpush1.msra.mxu0 0.0
    %144 = vmatprep.subr.mxu0 0.0
    %145 = vmatpush1.msra.mxu0 0.0
    %146 = vmatprep.subr.mxu0 0.0
    %147 = vmatpush1.msra.mxu0 0.0
    %148 = vmatprep.subr.mxu0 0.0
    %149 = vmatpush1.msra.mxu0 0.0
    %150 = vmatprep.subr.mxu0 0.0
    %151 = vmatpush1.msra.mxu0 0.0
    %152 = vmatprep.subr.mxu0 0.0
    %153 = vmatpush1.msra.mxu0 0.0
    %154 = vmatprep.subr.mxu0 0.0
    %155 = vmatpush1.msra.mxu0 0.0
    %156 = vmatprep.subr.mxu0 0.0
    %157 = vmatpush1.msra.mxu0 0.0
    %158 = vmatprep.subr.mxu0 0.0
    %159 = vmatpush1.msra.mxu0 0.0
    %160 = vmatprep.subr.mxu0 0.0
    %161 = vmatpush1.msra.mxu0 0.0
    %162 = vmatprep.subr.mxu0 0.0
    %163 = vmatpush1.msra.mxu0 0.0
    %164 = vmatprep.subr.mxu0 0.0
    %165 = vmatpush1.msra.mxu0 0.0
    %166 = vmatprep.subr.mxu0 0.0
    %167 = vmatpush1.msra.mxu0 0.0
    %168 = vmatprep.subr.mxu0 0.0
    %169 = vmatpush1.msra.mxu0 0.0
    %170 = vmatprep.subr.mxu0 0.0
    %171 = vmatpush1.msra.mxu0 0.0
    %172 = vmatprep.subr.mxu0 0.0
    %173 = vmatpush1.msra.mxu0 0.0
    %174 = vmatprep.subr.mxu0 0.0
    %175 = vmatpush1.msra.mxu0 0.0
    %176 = vmatprep.subr.mxu0 0.0
    %177 = vmatpush1.msra.mxu0 0.0
    %178 = vmatprep.subr.mxu0 0.0
    %179 = vmatpush1.msra.mxu0 0.0
    %180 = vmatprep.mubr.f32.mxu0 0.0
    %v181 = vand.u32 %v91, 4294901760
    %v182 = vsub.f32 %v91, %v181
    %v183 = vand.u32 %v182, 4294901760
    %v184 = vsub.f32 %v182, %v183
    %v185 = vand.u32 %v184, 4294901760
    %186 = vmatmul.mubr.f32.gmra.mrb[0].mxu0 %v185
    %v187 = vpop.f32.mrb[0].mxu0
    %v188 = vadd.f32 %v87, %v187
    %v189 = vpop.f32.mrb[0].mxu0
    %190 = vmatprep.mubr.f32.mxu0 0.0
    %v191 = vand.u32 %v94, 4294901760
    %v192 = vsub.f32 %v94, %v191
    %v193 = vand.u32 %v192, 4294901760
    %v194 = vsub.f32 %v192, %v193
    %v195 = vand.u32 %v194, 4294901760
    %196 = vmatmul.mubr.f32.gmra.mrb[0].mxu0 %v195
    %v197 = vpop.f32.mrb[0].mxu0
    %v198 = vadd.f32 %v87, %v197
    %v199 = vpop.f32.mrb[0].mxu0
    %200 = vmatprep.mubr.f32.mxu0 0.0
    %v201 = vand.u32 %v97, 4294901760
    %v202 = vsub.f32 %v97, %v201
    %v203 = vand.u32 %v202, 4294901760
    %v204 = vsub.f32 %v202, %v203
    %v205 = vand.u32 %v204, 4294901760
    %206 = vmatmul.mubr.f32.gmra.mrb[0].mxu0 %v205
    %v207 = vpop.f32.mrb[0].mxu0
    %v208 = vadd.f32 %v87, %v207
    %v209 = vpop.f32.mrb[0].mxu0
    %210 = vmatprep.mubr.f32.mxu0 0.0
    %v211 = vand.u32 %v100, 4294901760
    %v212 = vsub.f32 %v100, %v211
    %v213 = vand.u32 %v212, 4294901760
    %v214 = vsub.f32 %v212, %v213
    %v215 = vand.u32 %v214, 4294901760
    %216 = vmatmul.mubr.f32.gmra.mrb[0].mxu0 %v215
    %v217 = vpop.f32.mrb[0].mxu0
    %v218 = vadd.f32 %v87, %v217
    %v219 = vpop.f32.mrb[0].mxu0
    %220 = vmatprep.mubr.f32.mxu0 0.0
    %v221 = vand.u32 %v103, 4294901760
    %v222 = vsub.f32 %v103, %v221
    %v223 = vand.u32 %v222, 4294901760
    %v224 = vsub.f32 %v222, %v223
    %v225 = vand.u32 %v224, 4294901760
    %226 = vmatmul.mubr.f32.gmra.mrb[0].mxu0 %v225
    %v227 = vpop.f32.mrb[0].mxu0
    %v228 = vadd.f32 %v87, %v227
    %v229 = vpop.f32.mrb[0].mxu0
    %230 = vmatprep.mubr.f32.mxu0 0.0
    %v231 = vand.u32 %v106, 4294901760
    %v232 = vsub.f32 %v106, %v231
    %v233 = vand.u32 %v232, 4294901760
    %v234 = vsub.f32 %v232, %v233
    %v235 = vand.u32 %v234, 4294901760
    %236 = vmatmul.mubr.f32.gmra.mrb[0].mxu0 %v235
    %v237 = vpop.f32.mrb[0].mxu0
    %v238 = vadd.f32 %v87, %v237
    %v239 = vpop.f32.mrb[0].mxu0
    %240 = vmatprep.mubr.f32.mxu0 0.0
    %v241 = vand.u32 %v109, 4294901760
    %v242 = vsub.f32 %v109, %v241
    %v243 = vand.u32 %v242, 4294901760
    %v244 = vsub.f32 %v242, %v243
    %v245 = vand.u32 %v244, 4294901760
    %246 = vmatmul.mubr.f32.gmra.mrb[0].mxu0 %v245
    %v247 = vpop.f32.mrb[0].mxu0
    %v248 = vadd.f32 %v87, %v247
    %v249 = vpop.f32.mrb[0].mxu0
    %250 = vmatprep.mubr.f32.mxu0 0.0
    %v251 = vand.u32 %v112, 4294901760
    %v252 = vsub.f32 %v112, %v251
    %v253 = vand.u32 %v252, 4294901760
    %v254 = vsub.f32 %v252, %v253
    %v255 = vand.u32 %v254, 4294901760
    %256 = vmatmul.mubr.f32.gmra.mrb[0].mxu0 %v255
    %v257 = vpop.f32.mrb[0].mxu0
    %v258 = vadd.f32 %v87, %v257
    %v259 = vpop.f32.mrb[0].mxu0
    %260 = vdwg.mxu0
    %261 = vmatprep.subr.mxu0 0.0
    %v262 = vand.u32 %v57, 4294901760
    %v263 = vsub.f32 %v57, %v262
    %v264 = vand.u32 %v263, 4294901760
    %v265 = vsub.f32 %v263, %v264
    %v266 = vand.u32 %v265, 4294901760
    %267 = vmatpush1.msra.mxu0 %v266
    %268 = vmatprep.subr.mxu0 0.0
    %v269 = vand.u32 %v58, 4294901760
    %v270 = vsub.f32 %v58, %v269
    %v271 = vand.u32 %v270, 4294901760
    %v272 = vsub.f32 %v270, %v271
    %v273 = vand.u32 %v272, 4294901760
    %274 = vmatpush1.msra.mxu0 %v273
    %275 = vmatprep.subr.mxu0 0.0
    %276 = vmatpush1.msra.mxu0 0.0
    %277 = vmatprep.subr.mxu0 0.0
    %278 = vmatpush1.msra.mxu0 0.0
    %279 = vmatprep.subr.mxu0 0.0
    %280 = vmatpush1.msra.mxu0 0.0
    %281 = vmatprep.subr.mxu0 0.0
    %282 = vmatpush1.msra.mxu0 0.0
    %283 = vmatprep.subr.mxu0 0.0
    %284 = vmatpush1.msra.mxu0 0.0
    %285 = vmatprep.subr.mxu0 0.0
    %286 = vmatpush1.msra.mxu0 0.0
    %287 = vmatprep.subr.mxu0 0.0
    %288 = vmatpush1.msra.mxu0 0.0
    %289 = vmatprep.subr.mxu0 0.0
    %290 = vmatpush1.msra.mxu0 0.0
    %291 = vmatprep.subr.mxu0 0.0
    %292 = vmatpush1.msra.mxu0 0.0
    %293 = vmatprep.subr.mxu0 0.0
    %294 = vmatpush1.msra.mxu0 0.0
    %295 = vmatprep.subr.mxu0 0.0
    %296 = vmatpush1.msra.mxu0 0.0
    %297 = vmatprep.subr.mxu0 0.0
    %298 = vmatpush1.msra.mxu0 0.0
    %299 = vmatprep.subr.mxu0 0.0
    %300 = vmatpush1.msra.mxu0 0.0
    %301 = vmatprep.subr.mxu0 0.0
    %302 = vmatpush1.msra.mxu0 0.0
    %303 = vmatprep.subr.mxu0 0.0
    %304 = vmatpush1.msra.mxu0 0.0
    %305 = vmatprep.subr.mxu0 0.0
    %306 = vmatpush1.msra.mxu0 0.0
    %307 = vmatprep.subr.mxu0 0.0
    %308 = vmatpush1.msra.mxu0 0.0
    %309 = vmatprep.subr.mxu0 0.0
    %310 = vmatpush1.msra.mxu0 0.0
    %311 = vmatprep.subr.mxu0 0.0
    %312 = vmatpush1.msra.mxu0 0.0
    %313 = vmatprep.subr.mxu0 0.0
    %314 = vmatpush1.msra.mxu0 0.0
    %315 = vmatprep.subr.mxu0 0.0
    %316 = vmatpush1.msra.mxu0 0.0
    %317 = vmatprep.subr.mxu0 0.0
    %318 = vmatpush1.msra.mxu0 0.0
    %319 = vmatprep.subr.mxu0 0.0
    %320 = vmatpush1.msra.mxu0 0.0
    %321 = vmatprep.subr.mxu0 0.0
    %322 = vmatpush1.msra.mxu0 0.0
    %323 = vmatprep.subr.mxu0 0.0
    %324 = vmatpush1.msra.mxu0 0.0
    %325 = vmatprep.subr.mxu0 0.0
    %326 = vmatpush1.msra.mxu0 0.0
    %327 = vmatprep.subr.mxu0 0.0
    %328 = vmatpush1.msra.mxu0 0.0
    %329 = vmatprep.subr.mxu0 0.0
    %330 = vmatpush1.msra.mxu0 0.0
    %331 = vmatprep.subr.mxu0 0.0
    %332 = vmatpush1.msra.mxu0 0.0
    %333 = vmatprep.subr.mxu0 0.0
    %334 = vmatpush1.msra.mxu0 0.0
    %335 = vmatprep.mubr.f32.mxu0 0.0
    %v336 = vand.u32 %v91, 4294901760
    %337 = vmatmul.mubr.f32.gmra.mrb[0].mxu0 %v336
    %v338 = vpop.f32.mrb[0].mxu0
    %v339 = vadd.f32 %v188, %v338
    %v340 = vpop.f32.mrb[0].mxu0
    %341 = vmatprep.mubr.f32.mxu0 0.0
    %v342 = vand.u32 %v94, 4294901760
    %343 = vmatmul.mubr.f32.gmra.mrb[0].mxu0 %v342
    %v344 = vpop.f32.mrb[0].mxu0
    %v345 = vadd.f32 %v198, %v344
    %v346 = vpop.f32.mrb[0].mxu0
    %347 = vmatprep.mubr.f32.mxu0 0.0
    %v348 = vand.u32 %v97, 4294901760
    %349 = vmatmul.mubr.f32.gmra.mrb[0].mxu0 %v348
    %v350 = vpop.f32.mrb[0].mxu0
    %v351 = vadd.f32 %v208, %v350
    %v352 = vpop.f32.mrb[0].mxu0
    %353 = vmatprep.mubr.f32.mxu0 0.0
    %v354 = vand.u32 %v100, 4294901760
    %355 = vmatmul.mubr.f32.gmra.mrb[0].mxu0 %v354
    %v356 = vpop.f32.mrb[0].mxu0
    %v357 = vadd.f32 %v218, %v356
    %v358 = vpop.f32.mrb[0].mxu0
    %359 = vmatprep.mubr.f32.mxu0 0.0
    %v360 = vand.u32 %v103, 4294901760
    %361 = vmatmul.mubr.f32.gmra.mrb[0].mxu0 %v360
    %v362 = vpop.f32.mrb[0].mxu0
    %v363 = vadd.f32 %v228, %v362
    %v364 = vpop.f32.mrb[0].mxu0
    %365 = vmatprep.mubr.f32.mxu0 0.0
    %v366 = vand.u32 %v106, 4294901760
    %367 = vmatmul.mubr.f32.gmra.mrb[0].mxu0 %v366
    %v368 = vpop.f32.mrb[0].mxu0
    %v369 = vadd.f32 %v238, %v368
    %v370 = vpop.f32.mrb[0].mxu0
    %371 = vmatprep.mubr.f32.mxu0 0.0
    %v372 = vand.u32 %v109, 4294901760
    %373 = vmatmul.mubr.f32.gmra.mrb[0].mxu0 %v372
    %v374 = vpop.f32.mrb[0].mxu0
    %v375 = vadd.f32 %v248, %v374
    %v376 = vpop.f32.mrb[0].mxu0
    %377 = vmatprep.mubr.f32.mxu0 0.0
    %v378 = vand.u32 %v112, 4294901760
    %379 = vmatmul.mubr.f32.gmra.mrb[0].mxu0 %v378
    %v380 = vpop.f32.mrb[0].mxu0
    %v381 = vadd.f32 %v258, %v380
    %v382 = vpop.f32.mrb[0].mxu0
    %383 = vdwg.mxu0
    %384 = vmatprep.subr.mxu0 0.0
    %v385 = vand.u32 %v57, 4294901760
    %v386 = vsub.f32 %v57, %v385
    %387 = vmatpush1.msra.mxu0 %v386
    %388 = vmatprep.subr.mxu0 0.0
    %v389 = vand.u32 %v58, 4294901760
    %v390 = vsub.f32 %v58, %v389
    %391 = vmatpush1.msra.mxu0 %v390
    %392 = vmatprep.subr.mxu0 0.0
    %393 = vmatpush1.msra.mxu0 0.0
    %394 = vmatprep.subr.mxu0 0.0
    %395 = vmatpush1.msra.mxu0 0.0
    %396 = vmatprep.subr.mxu0 0.0
    %397 = vmatpush1.msra.mxu0 0.0
    %398 = vmatprep.subr.mxu0 0.0
    %399 = vmatpush1.msra.mxu0 0.0
    %400 = vmatprep.subr.mxu0 0.0
    %401 = vmatpush1.msra.mxu0 0.0
    %402 = vmatprep.subr.mxu0 0.0
    %403 = vmatpush1.msra.mxu0 0.0
    %404 = vmatprep.subr.mxu0 0.0
    %405 = vmatpush1.msra.mxu0 0.0
    %406 = vmatprep.subr.mxu0 0.0
    %407 = vmatpush1.msra.mxu0 0.0
    %408 = vmatprep.subr.mxu0 0.0
    %409 = vmatpush1.msra.mxu0 0.0
    %410 = vmatprep.subr.mxu0 0.0
    %411 = vmatpush1.msra.mxu0 0.0
    %412 = vmatprep.subr.mxu0 0.0
    %413 = vmatpush1.msra.mxu0 0.0
    %414 = vmatprep.subr.mxu0 0.0
    %415 = vmatpush1.msra.mxu0 0.0
    %416 = vmatprep.subr.mxu0 0.0
    %417 = vmatpush1.msra.mxu0 0.0
    %418 = vmatprep.subr.mxu0 0.0
    %419 = vmatpush1.msra.mxu0 0.0
    %420 = vmatprep.subr.mxu0 0.0
    %421 = vmatpush1.msra.mxu0 0.0
    %422 = vmatprep.subr.mxu0 0.0
    %423 = vmatpush1.msra.mxu0 0.0
    %424 = vmatprep.subr.mxu0 0.0
    %425 = vmatpush1.msra.mxu0 0.0
    %426 = vmatprep.subr.mxu0 0.0
    %427 = vmatpush1.msra.mxu0 0.0
    %428 = vmatprep.subr.mxu0 0.0
    %429 = vmatpush1.msra.mxu0 0.0
    %430 = vmatprep.subr.mxu0 0.0
    %431 = vmatpush1.msra.mxu0 0.0
    %432 = vmatprep.subr.mxu0 0.0
    %433 = vmatpush1.msra.mxu0 0.0
    %434 = vmatprep.subr.mxu0 0.0
    %435 = vmatpush1.msra.mxu0 0.0
    %436 = vmatprep.subr.mxu0 0.0
    %437 = vmatpush1.msra.mxu0 0.0
    %438 = vmatprep.subr.mxu0 0.0
    %439 = vmatpush1.msra.mxu0 0.0
    %440 = vmatprep.subr.mxu0 0.0
    %441 = vmatpush1.msra.mxu0 0.0
    %442 = vmatprep.subr.mxu0 0.0
    %443 = vmatpush1.msra.mxu0 0.0
    %444 = vmatprep.subr.mxu0 0.0
    %445 = vmatpush1.msra.mxu0 0.0
    %446 = vmatprep.subr.mxu0 0.0
    %447 = vmatpush1.msra.mxu0 0.0
    %448 = vmatprep.subr.mxu0 0.0
    %449 = vmatpush1.msra.mxu0 0.0
    %450 = vmatprep.subr.mxu0 0.0
    %451 = vmatpush1.msra.mxu0 0.0
    %452 = vmatprep.mubr.f32.mxu0 0.0
    %v453 = vand.u32 %v91, 4294901760
    %v454 = vsub.f32 %v91, %v453
    %455 = vmatmul.mubr.f32.gmra.mrb[0].mxu0 %v454
    %v456 = vpop.f32.mrb[0].mxu0
    %v457 = vadd.f32 %v339, %v456
    %v458 = vpop.f32.mrb[0].mxu0
    %459 = vmatprep.mubr.f32.mxu0 0.0
    %v460 = vand.u32 %v94, 4294901760
    %v461 = vsub.f32 %v94, %v460
    %462 = vmatmul.mubr.f32.gmra.mrb[0].mxu0 %v461
    %v463 = vpop.f32.mrb[0].mxu0
    %v464 = vadd.f32 %v345, %v463
    %v465 = vpop.f32.mrb[0].mxu0
    %466 = vmatprep.mubr.f32.mxu0 0.0
    %v467 = vand.u32 %v97, 4294901760
    %v468 = vsub.f32 %v97, %v467
    %469 = vmatmul.mubr.f32.gmra.mrb[0].mxu0 %v468
    %v470 = vpop.f32.mrb[0].mxu0
    %v471 = vadd.f32 %v351, %v470
    %v472 = vpop.f32.mrb[0].mxu0
    %473 = vmatprep.mubr.f32.mxu0 0.0
    %v474 = vand.u32 %v100, 4294901760
    %v475 = vsub.f32 %v100, %v474
    %476 = vmatmul.mubr.f32.gmra.mrb[0].mxu0 %v475
    %v477 = vpop.f32.mrb[0].mxu0
    %v478 = vadd.f32 %v357, %v477
    %v479 = vpop.f32.mrb[0].mxu0
    %480 = vmatprep.mubr.f32.mxu0 0.0
    %v481 = vand.u32 %v103, 4294901760
    %v482 = vsub.f32 %v103, %v481
    %483 = vmatmul.mubr.f32.gmra.mrb[0].mxu0 %v482
    %v484 = vpop.f32.mrb[0].mxu0
    %v485 = vadd.f32 %v363, %v484
    %v486 = vpop.f32.mrb[0].mxu0
    %487 = vmatprep.mubr.f32.mxu0 0.0
    %v488 = vand.u32 %v106, 4294901760
    %v489 = vsub.f32 %v106, %v488
    %490 = vmatmul.mubr.f32.gmra.mrb[0].mxu0 %v489
    %v491 = vpop.f32.mrb[0].mxu0
    %v492 = vadd.f32 %v369, %v491
    %v493 = vpop.f32.mrb[0].mxu0
    %494 = vmatprep.mubr.f32.mxu0 0.0
    %v495 = vand.u32 %v109, 4294901760
    %v496 = vsub.f32 %v109, %v495
    %497 = vmatmul.mubr.f32.gmra.mrb[0].mxu0 %v496
    %v498 = vpop.f32.mrb[0].mxu0
    %v499 = vadd.f32 %v375, %v498
    %v500 = vpop.f32.mrb[0].mxu0
    %501 = vmatprep.mubr.f32.mxu0 0.0
    %v502 = vand.u32 %v112, 4294901760
    %v503 = vsub.f32 %v112, %v502
    %504 = vmatmul.mubr.f32.gmra.mrb[0].mxu0 %v503
    %v505 = vpop.f32.mrb[0].mxu0
    %v506 = vadd.f32 %v381, %v505
    %v507 = vpop.f32.mrb[0].mxu0
    %508 = vdwg.mxu0
    %509 = vmatprep.subr.mxu0 0.0
    %v510 = vand.u32 %v57, 4294901760
    %511 = vmatpush1.msra.mxu0 %v510
    %512 = vmatprep.subr.mxu0 0.0
    %v513 = vand.u32 %v58, 4294901760
    %514 = vmatpush1.msra.mxu0 %v513
    %515 = vmatprep.subr.mxu0 0.0
    %516 = vmatpush1.msra.mxu0 0.0
    %517 = vmatprep.subr.mxu0 0.0
    %518 = vmatpush1.msra.mxu0 0.0
    %519 = vmatprep.subr.mxu0 0.0
    %520 = vmatpush1.msra.mxu0 0.0
    %521 = vmatprep.subr.mxu0 0.0
    %522 = vmatpush1.msra.mxu0 0.0
    %523 = vmatprep.subr.mxu0 0.0
    %524 = vmatpush1.msra.mxu0 0.0
    %525 = vmatprep.subr.mxu0 0.0
    %526 = vmatpush1.msra.mxu0 0.0
    %527 = vmatprep.subr.mxu0 0.0
    %528 = vmatpush1.msra.mxu0 0.0
    %529 = vmatprep.subr.mxu0 0.0
    %530 = vmatpush1.msra.mxu0 0.0
    %531 = vmatprep.subr.mxu0 0.0
    %532 = vmatpush1.msra.mxu0 0.0
    %533 = vmatprep.subr.mxu0 0.0
    %534 = vmatpush1.msra.mxu0 0.0
    %535 = vmatprep.subr.mxu0 0.0
    %536 = vmatpush1.msra.mxu0 0.0
    %537 = vmatprep.subr.mxu0 0.0
    %538 = vmatpush1.msra.mxu0 0.0
    %539 = vmatprep.subr.mxu0 0.0
    %540 = vmatpush1.msra.mxu0 0.0
    %541 = vmatprep.subr.mxu0 0.0
    %542 = vmatpush1.msra.mxu0 0.0
    %543 = vmatprep.subr.mxu0 0.0
    %544 = vmatpush1.msra.mxu0 0.0
    %545 = vmatprep.subr.mxu0 0.0
    %546 = vmatpush1.msra.mxu0 0.0
    %547 = vmatprep.subr.mxu0 0.0
    %548 = vmatpush1.msra.mxu0 0.0
    %549 = vmatprep.subr.mxu0 0.0
    %550 = vmatpush1.msra.mxu0 0.0
    %551 = vmatprep.subr.mxu0 0.0
    %552 = vmatpush1.msra.mxu0 0.0
    %553 = vmatprep.subr.mxu0 0.0
    %554 = vmatpush1.msra.mxu0 0.0
    %555 = vmatprep.subr.mxu0 0.0
    %556 = vmatpush1.msra.mxu0 0.0
    %557 = vmatprep.subr.mxu0 0.0
    %558 = vmatpush1.msra.mxu0 0.0
    %559 = vmatprep.subr.mxu0 0.0
    %560 = vmatpush1.msra.mxu0 0.0
    %561 = vmatprep.subr.mxu0 0.0
    %562 = vmatpush1.msra.mxu0 0.0
    %563 = vmatprep.subr.mxu0 0.0
    %564 = vmatpush1.msra.mxu0 0.0
    %565 = vmatprep.subr.mxu0 0.0
    %566 = vmatpush1.msra.mxu0 0.0
    %567 = vmatprep.subr.mxu0 0.0
    %568 = vmatpush1.msra.mxu0 0.0
    %569 = vmatprep.subr.mxu0 0.0
    %570 = vmatpush1.msra.mxu0 0.0
    %571 = vmatprep.subr.mxu0 0.0
    %572 = vmatpush1.msra.mxu0 0.0
    %573 = vmatprep.subr.mxu0 0.0
    %574 = vmatpush1.msra.mxu0 0.0
    %575 = vmatprep.mubr.f32.mxu0 0.0
    %v576 = vand.u32 %v91, 4294901760
    %v577 = vsub.f32 %v91, %v576
    %v578 = vand.u32 %v577, 4294901760
    %579 = vmatmul.mubr.f32.gmra.mrb[0].mxu0 %v578
    %v580 = vpop.f32.mrb[0].mxu0
    %v581 = vadd.f32 %v457, %v580
    %v582 = vpop.f32.mrb[0].mxu0
    %583 = vmatprep.mubr.f32.mxu0 0.0
    %v584 = vand.u32 %v94, 4294901760
    %v585 = vsub.f32 %v94, %v584
    %v586 = vand.u32 %v585, 4294901760
    %587 = vmatmul.mubr.f32.gmra.mrb[0].mxu0 %v586
    %v588 = vpop.f32.mrb[0].mxu0
    %v589 = vadd.f32 %v464, %v588
    %v590 = vpop.f32.mrb[0].mxu0
    %591 = vmatprep.mubr.f32.mxu0 0.0
    %v592 = vand.u32 %v97, 4294901760
    %v593 = vsub.f32 %v97, %v592
    %v594 = vand.u32 %v593, 4294901760
    %595 = vmatmul.mubr.f32.gmra.mrb[0].mxu0 %v594
    %v596 = vpop.f32.mrb[0].mxu0
    %v597 = vadd.f32 %v471, %v596
    %v598 = vpop.f32.mrb[0].mxu0
    %599 = vmatprep.mubr.f32.mxu0 0.0
    %v600 = vand.u32 %v100, 4294901760
    %v601 = vsub.f32 %v100, %v600
    %v602 = vand.u32 %v601, 4294901760
    %603 = vmatmul.mubr.f32.gmra.mrb[0].mxu0 %v602
    %v604 = vpop.f32.mrb[0].mxu0
    %v605 = vadd.f32 %v478, %v604
    %v606 = vpop.f32.mrb[0].mxu0
    %607 = vmatprep.mubr.f32.mxu0 0.0
    %v608 = vand.u32 %v103, 4294901760
    %v609 = vsub.f32 %v103, %v608
    %v610 = vand.u32 %v609, 4294901760
    %611 = vmatmul.mubr.f32.gmra.mrb[0].mxu0 %v610
    %v612 = vpop.f32.mrb[0].mxu0
    %v613 = vadd.f32 %v485, %v612
    %v614 = vpop.f32.mrb[0].mxu0
    %615 = vmatprep.mubr.f32.mxu0 0.0
    %v616 = vand.u32 %v106, 4294901760
    %v617 = vsub.f32 %v106, %v616
    %v618 = vand.u32 %v617, 4294901760
    %619 = vmatmul.mubr.f32.gmra.mrb[0].mxu0 %v618
    %v620 = vpop.f32.mrb[0].mxu0
    %v621 = vadd.f32 %v492, %v620
    %v622 = vpop.f32.mrb[0].mxu0
    %623 = vmatprep.mubr.f32.mxu0 0.0
    %v624 = vand.u32 %v109, 4294901760
    %v625 = vsub.f32 %v109, %v624
    %v626 = vand.u32 %v625, 4294901760
    %627 = vmatmul.mubr.f32.gmra.mrb[0].mxu0 %v626
    %v628 = vpop.f32.mrb[0].mxu0
    %v629 = vadd.f32 %v499, %v628
    %v630 = vpop.f32.mrb[0].mxu0
    %631 = vmatprep.mubr.f32.mxu0 0.0
    %v632 = vand.u32 %v112, 4294901760
    %v633 = vsub.f32 %v112, %v632
    %v634 = vand.u32 %v633, 4294901760
    %635 = vmatmul.mubr.f32.gmra.mrb[0].mxu0 %v634
    %v636 = vpop.f32.mrb[0].mxu0
    %v637 = vadd.f32 %v506, %v636
    %v638 = vpop.f32.mrb[0].mxu0
    %639 = vdwg.mxu0
    %640 = vmatprep.subr.mxu0 0.0
    %v641 = vand.u32 %v57, 4294901760
    %v642 = vsub.f32 %v57, %v641
    %v643 = vand.u32 %v642, 4294901760
    %644 = vmatpush1.msra.mxu0 %v643
    %645 = vmatprep.subr.mxu0 0.0
    %v646 = vand.u32 %v58, 4294901760
    %v647 = vsub.f32 %v58, %v646
    %v648 = vand.u32 %v647, 4294901760
    %649 = vmatpush1.msra.mxu0 %v648
    %650 = vmatprep.subr.mxu0 0.0
    %651 = vmatpush1.msra.mxu0 0.0
    %652 = vmatprep.subr.mxu0 0.0
    %653 = vmatpush1.msra.mxu0 0.0
    %654 = vmatprep.subr.mxu0 0.0
    %655 = vmatpush1.msra.mxu0 0.0
    %656 = vmatprep.subr.mxu0 0.0
    %657 = vmatpush1.msra.mxu0 0.0
    %658 = vmatprep.subr.mxu0 0.0
    %659 = vmatpush1.msra.mxu0 0.0
    %660 = vmatprep.subr.mxu0 0.0
    %661 = vmatpush1.msra.mxu0 0.0
    %662 = vmatprep.subr.mxu0 0.0
    %663 = vmatpush1.msra.mxu0 0.0
    %664 = vmatprep.subr.mxu0 0.0
    %665 = vmatpush1.msra.mxu0 0.0
    %666 = vmatprep.subr.mxu0 0.0
    %667 = vmatpush1.msra.mxu0 0.0
    %668 = vmatprep.subr.mxu0 0.0
    %669 = vmatpush1.msra.mxu0 0.0
    %670 = vmatprep.subr.mxu0 0.0
    %671 = vmatpush1.msra.mxu0 0.0
    %672 = vmatprep.subr.mxu0 0.0
    %673 = vmatpush1.msra.mxu0 0.0
    %674 = vmatprep.subr.mxu0 0.0
    %675 = vmatpush1.msra.mxu0 0.0
    %676 = vmatprep.subr.mxu0 0.0
    %677 = vmatpush1.msra.mxu0 0.0
    %678 = vmatprep.subr.mxu0 0.0
    %679 = vmatpush1.msra.mxu0 0.0
    %680 = vmatprep.subr.mxu0 0.0
    %681 = vmatpush1.msra.mxu0 0.0
    %682 = vmatprep.subr.mxu0 0.0
    %683 = vmatpush1.msra.mxu0 0.0
    %684 = vmatprep.subr.mxu0 0.0
    %685 = vmatpush1.msra.mxu0 0.0
    %686 = vmatprep.subr.mxu0 0.0
    %687 = vmatpush1.msra.mxu0 0.0
    %688 = vmatprep.subr.mxu0 0.0
    %689 = vmatpush1.msra.mxu0 0.0
    %690 = vmatprep.subr.mxu0 0.0
    %691 = vmatpush1.msra.mxu0 0.0
    %692 = vmatprep.subr.mxu0 0.0
    %693 = vmatpush1.msra.mxu0 0.0
    %694 = vmatprep.subr.mxu0 0.0
    %695 = vmatpush1.msra.mxu0 0.0
    %696 = vmatprep.subr.mxu0 0.0
    %697 = vmatpush1.msra.mxu0 0.0
    %698 = vmatprep.subr.mxu0 0.0
    %699 = vmatpush1.msra.mxu0 0.0
    %700 = vmatprep.subr.mxu0 0.0
    %701 = vmatpush1.msra.mxu0 0.0
    %702 = vmatprep.subr.mxu0 0.0
    %703 = vmatpush1.msra.mxu0 0.0
    %704 = vmatprep.subr.mxu0 0.0
    %705 = vmatpush1.msra.mxu0 0.0
    %706 = vmatprep.subr.mxu0 0.0
    %707 = vmatpush1.msra.mxu0 0.0
    %708 = vmatprep.subr.mxu0 0.0
    %709 = vmatpush1.msra.mxu0 0.0
    %710 = vmatprep.mubr.f32.mxu0 0.0
    %v711 = vand.u32 %v91, 4294901760
    %712 = vmatmul.mubr.f32.gmra.mrb[0].mxu0 %v711
    %v713 = vpop.f32.mrb[0].mxu0
    %v714 = vadd.f32 %v581, %v713
    %v715 = vpop.f32.mrb[0].mxu0
    %716 = vmatprep.mubr.f32.mxu0 0.0
    %v717 = vand.u32 %v94, 4294901760
    %718 = vmatmul.mubr.f32.gmra.mrb[0].mxu0 %v717
    %v719 = vpop.f32.mrb[0].mxu0
    %v720 = vadd.f32 %v589, %v719
    %v721 = vpop.f32.mrb[0].mxu0
    %722 = vmatprep.mubr.f32.mxu0 0.0
    %v723 = vand.u32 %v97, 4294901760
    %724 = vmatmul.mubr.f32.gmra.mrb[0].mxu0 %v723
    %v725 = vpop.f32.mrb[0].mxu0
    %v726 = vadd.f32 %v597, %v725
    %v727 = vpop.f32.mrb[0].mxu0
    %728 = vmatprep.mubr.f32.mxu0 0.0
    %v729 = vand.u32 %v100, 4294901760
    %730 = vmatmul.mubr.f32.gmra.mrb[0].mxu0 %v729
    %v731 = vpop.f32.mrb[0].mxu0
    %v732 = vadd.f32 %v605, %v731
    %v733 = vpop.f32.mrb[0].mxu0
    %734 = vmatprep.mubr.f32.mxu0 0.0
    %v735 = vand.u32 %v103, 4294901760
    %736 = vmatmul.mubr.f32.gmra.mrb[0].mxu0 %v735
    %v737 = vpop.f32.mrb[0].mxu0
    %v738 = vadd.f32 %v613, %v737
    %v739 = vpop.f32.mrb[0].mxu0
    %740 = vmatprep.mubr.f32.mxu0 0.0
    %v741 = vand.u32 %v106, 4294901760
    %742 = vmatmul.mubr.f32.gmra.mrb[0].mxu0 %v741
    %v743 = vpop.f32.mrb[0].mxu0
    %v744 = vadd.f32 %v621, %v743
    %v745 = vpop.f32.mrb[0].mxu0
    %746 = vmatprep.mubr.f32.mxu0 0.0
    %v747 = vand.u32 %v109, 4294901760
    %748 = vmatmul.mubr.f32.gmra.mrb[0].mxu0 %v747
    %v749 = vpop.f32.mrb[0].mxu0
    %v750 = vadd.f32 %v629, %v749
    %v751 = vpop.f32.mrb[0].mxu0
    %752 = vmatprep.mubr.f32.mxu0 0.0
    %v753 = vand.u32 %v112, 4294901760
    %754 = vmatmul.mubr.f32.gmra.mrb[0].mxu0 %v753
    %v755 = vpop.f32.mrb[0].mxu0
    %v756 = vadd.f32 %v637, %v755
    %v757 = vpop.f32.mrb[0].mxu0
    %758 = vdwg.mxu0
    %759 = vmatprep.subr.mxu0 0.0
    %v760 = vand.u32 %v57, 4294901760
    %761 = vmatpush1.msra.mxu0 %v760
    %762 = vmatprep.subr.mxu0 0.0
    %v763 = vand.u32 %v58, 4294901760
    %764 = vmatpush1.msra.mxu0 %v763
    %765 = vmatprep.subr.mxu0 0.0
    %766 = vmatpush1.msra.mxu0 0.0
    %767 = vmatprep.subr.mxu0 0.0
    %768 = vmatpush1.msra.mxu0 0.0
    %769 = vmatprep.subr.mxu0 0.0
    %770 = vmatpush1.msra.mxu0 0.0
    %771 = vmatprep.subr.mxu0 0.0
    %772 = vmatpush1.msra.mxu0 0.0
    %773 = vmatprep.subr.mxu0 0.0
    %774 = vmatpush1.msra.mxu0 0.0
    %775 = vmatprep.subr.mxu0 0.0
    %776 = vmatpush1.msra.mxu0 0.0
    %777 = vmatprep.subr.mxu0 0.0
    %778 = vmatpush1.msra.mxu0 0.0
    %779 = vmatprep.subr.mxu0 0.0
    %780 = vmatpush1.msra.mxu0 0.0
    %781 = vmatprep.subr.mxu0 0.0
    %782 = vmatpush1.msra.mxu0 0.0
    %783 = vmatprep.subr.mxu0 0.0
    %784 = vmatpush1.msra.mxu0 0.0
    %785 = vmatprep.subr.mxu0 0.0
    %786 = vmatpush1.msra.mxu0 0.0
    %787 = vmatprep.subr.mxu0 0.0
    %788 = vmatpush1.msra.mxu0 0.0
    %789 = vmatprep.subr.mxu0 0.0
    %790 = vmatpush1.msra.mxu0 0.0
    %791 = vmatprep.subr.mxu0 0.0
    %792 = vmatpush1.msra.mxu0 0.0
    %793 = vmatprep.subr.mxu0 0.0
    %794 = vmatpush1.msra.mxu0 0.0
    %795 = vmatprep.subr.mxu0 0.0
    %796 = vmatpush1.msra.mxu0 0.0
    %797 = vmatprep.subr.mxu0 0.0
    %798 = vmatpush1.msra.mxu0 0.0
    %799 = vmatprep.subr.mxu0 0.0
    %800 = vmatpush1.msra.mxu0 0.0
    %801 = vmatprep.subr.mxu0 0.0
    %802 = vmatpush1.msra.mxu0 0.0
    %803 = vmatprep.subr.mxu0 0.0
    %804 = vmatpush1.msra.mxu0 0.0
    %805 = vmatprep.subr.mxu0 0.0
    %806 = vmatpush1.msra.mxu0 0.0
    %807 = vmatprep.subr.mxu0 0.0
    %808 = vmatpush1.msra.mxu0 0.0
    %809 = vmatprep.subr.mxu0 0.0
    %810 = vmatpush1.msra.mxu0 0.0
    %811 = vmatprep.subr.mxu0 0.0
    %812 = vmatpush1.msra.mxu0 0.0
    %813 = vmatprep.subr.mxu0 0.0
    %814 = vmatpush1.msra.mxu0 0.0
    %815 = vmatprep.subr.mxu0 0.0
    %816 = vmatpush1.msra.mxu0 0.0
    %817 = vmatprep.subr.mxu0 0.0
    %818 = vmatpush1.msra.mxu0 0.0
    %819 = vmatprep.subr.mxu0 0.0
    %820 = vmatpush1.msra.mxu0 0.0
    %821 = vmatprep.subr.mxu0 0.0
    %822 = vmatpush1.msra.mxu0 0.0
    %823 = vmatprep.subr.mxu0 0.0
    %824 = vmatpush1.msra.mxu0 0.0
    %825 = vmatprep.mubr.f32.mxu0 0.0
    %v826 = vand.u32 %v91, 4294901760
    %827 = vmatmul.mubr.f32.gmra.mrb[0].mxu0 %v826
    %v828 = vpop.f32.mrb[0].mxu0
    %v829 = vadd.f32 %v714, %v828
    %v830 = vpop.f32.mrb[0].mxu0
    %831 = vmatprep.mubr.f32.mxu0 0.0
    %v832 = vand.u32 %v94, 4294901760
    %833 = vmatmul.mubr.f32.gmra.mrb[0].mxu0 %v832
    %v834 = vpop.f32.mrb[0].mxu0
    %v835 = vadd.f32 %v720, %v834
    %v836 = vpop.f32.mrb[0].mxu0
    %837 = vmatprep.mubr.f32.mxu0 0.0
    %v838 = vand.u32 %v97, 4294901760
    %839 = vmatmul.mubr.f32.gmra.mrb[0].mxu0 %v838
    %v840 = vpop.f32.mrb[0].mxu0
    %v841 = vadd.f32 %v726, %v840
    %v842 = vpop.f32.mrb[0].mxu0
    %843 = vmatprep.mubr.f32.mxu0 0.0
    %v844 = vand.u32 %v100, 4294901760
    %845 = vmatmul.mubr.f32.gmra.mrb[0].mxu0 %v844
    %v846 = vpop.f32.mrb[0].mxu0
    %v847 = vadd.f32 %v732, %v846
    %v848 = vpop.f32.mrb[0].mxu0
    %849 = vmatprep.mubr.f32.mxu0 0.0
    %v850 = vand.u32 %v103, 4294901760
    %851 = vmatmul.mubr.f32.gmra.mrb[0].mxu0 %v850
    %v852 = vpop.f32.mrb[0].mxu0
    %v853 = vadd.f32 %v738, %v852
    %v854 = vpop.f32.mrb[0].mxu0
    %855 = vmatprep.mubr.f32.mxu0 0.0
    %v856 = vand.u32 %v106, 4294901760
    %857 = vmatmul.mubr.f32.gmra.mrb[0].mxu0 %v856
    %v858 = vpop.f32.mrb[0].mxu0
    %v859 = vadd.f32 %v744, %v858
    %v860 = vpop.f32.mrb[0].mxu0
    %861 = vmatprep.mubr.f32.mxu0 0.0
    %v862 = vand.u32 %v109, 4294901760
    %863 = vmatmul.mubr.f32.gmra.mrb[0].mxu0 %v862
    %v864 = vpop.f32.mrb[0].mxu0
    %v865 = vadd.f32 %v750, %v864
    %v866 = vpop.f32.mrb[0].mxu0
    %867 = vmatprep.mubr.f32.mxu0 0.0
    %v868 = vand.u32 %v112, 4294901760
    %869 = vmatmul.mubr.f32.gmra.mrb[0].mxu0 %v868
    %v870 = vpop.f32.mrb[0].mxu0
    %v871 = vadd.f32 %v756, %v870
    %v872 = vpop.f32.mrb[0].mxu0
    %873 = vdwg.mxu0
    %vm874 = vcmask 261120
    %v875 = vsel %vm874, %v829, 0.0
    %v876 = vrot.slane %v875, 4
    %v877 = vadd.f32 %v875, %v876
    %v878 = vrot.slane %v877, 2
    %v879 = vadd.f32 %v877, %v878
    %v880 = vrot.slane %v879, 1
    %v881 = vadd.f32 %v879, %v880
    %v882 = vsel %vm874, %v835, 0.0
    %v883 = vrot.slane %v882, 4
    %v884 = vadd.f32 %v882, %v883
    %v885 = vrot.slane %v884, 2
    %v886 = vadd.f32 %v884, %v885
    %v887 = vrot.slane %v886, 1
    %v888 = vadd.f32 %v886, %v887
    %v889 = vsel %vm874, %v841, 0.0
    %v890 = vrot.slane %v889, 4
    %v891 = vadd.f32 %v889, %v890
    %v892 = vrot.slane %v891, 2
    %v893 = vadd.f32 %v891, %v892
    %v894 = vrot.slane %v893, 1
    %v895 = vadd.f32 %v893, %v894
    %v896 = vsel %vm874, %v847, 0.0
    %v897 = vrot.slane %v896, 4
    %v898 = vadd.f32 %v896, %v897
    %v899 = vrot.slane %v898, 2
    %v900 = vadd.f32 %v898, %v899
    %v901 = vrot.slane %v900, 1
    %v902 = vadd.f32 %v900, %v901
    %v903 = vsel %vm874, %v853, 0.0
    %v904 = vrot.slane %v903, 4
    %v905 = vadd.f32 %v903, %v904
    %v906 = vrot.slane %v905, 2
    %v907 = vadd.f32 %v905, %v906
    %v908 = vrot.slane %v907, 1
    %v909 = vadd.f32 %v907, %v908
    %v910 = vsel %vm874, %v859, 0.0
    %v911 = vrot.slane %v910, 4
    %v912 = vadd.f32 %v910, %v911
    %v913 = vrot.slane %v912, 2
    %v914 = vadd.f32 %v912, %v913
    %v915 = vrot.slane %v914, 1
    %v916 = vadd.f32 %v914, %v915
    %v917 = vsel %vm874, %v865, 0.0
    %v918 = vrot.slane %v917, 4
    %v919 = vadd.f32 %v917, %v918
    %v920 = vrot.slane %v919, 2
    %v921 = vadd.f32 %v919, %v920
    %v922 = vrot.slane %v921, 1
    %v923 = vadd.f32 %v921, %v922
    %v924 = vsel %vm874, %v871, 0.0
    %v925 = vrot.slane %v924, 4
    %v926 = vadd.f32 %v924, %v925
    %v927 = vrot.slane %v926, 2
    %v928 = vadd.f32 %v926, %v927
    %v929 = vrot.slane %v928, 1
    %v930 = vadd.f32 %v928, %v929
    %v931 = vmul.f32 %v881, 0.125
    %v932 = vmul.f32 %v888, 0.125
    %v933 = vmul.f32 %v895, 0.125
    %v934 = vmul.f32 %v902, 0.125
    %v935 = vmul.f32 %v909, 0.125
    %v936 = vmul.f32 %v916, 0.125
    %v937 = vmul.f32 %v923, 0.125
    %v938 = vmul.f32 %v930, 0.125
    %v939 = vmul.f32 %v829, %v829
    %v940 = vmul.f32 %v835, %v835
    %v941 = vmul.f32 %v841, %v841
    %v942 = vmul.f32 %v847, %v847
    %v943 = vmul.f32 %v853, %v853
    %v944 = vmul.f32 %v859, %v859
    %v945 = vmul.f32 %v865, %v865
    %v946 = vmul.f32 %v871, %v871
    %v947 = vsel %vm874, %v939, 0.0
    %v948 = vrot.slane %v947, 4
    %v949 = vadd.f32 %v947, %v948
    %v950 = vrot.slane %v949, 2
    %v951 = vadd.f32 %v949, %v950
    %v952 = vrot.slane %v951, 1
    %v953 = vadd.f32 %v951, %v952
    %v954 = vsel %vm874, %v940, 0.0
    %v955 = vrot.slane %v954, 4
    %v956 = vadd.f32 %v954, %v955
    %v957 = vrot.slane %v956, 2
    %v958 = vadd.f32 %v956, %v957
    %v959 = vrot.slane %v958, 1
    %v960 = vadd.f32 %v958, %v959
    %v961 = vsel %vm874, %v941, 0.0
    %v962 = vrot.slane %v961, 4
    %v963 = vadd.f32 %v961, %v962
    %v964 = vrot.slane %v963, 2
    %v965 = vadd.f32 %v963, %v964
    %v966 = vrot.slane %v965, 1
    %v967 = vadd.f32 %v965, %v966
    %v968 = vsel %vm874, %v942, 0.0
    %v969 = vrot.slane %v968, 4
    %v970 = vadd.f32 %v968, %v969
    %v971 = vrot.slane %v970, 2
    %v972 = vadd.f32 %v970, %v971
    %v973 = vrot.slane %v972, 1
    %v974 = vadd.f32 %v972, %v973
    %v975 = vsel %vm874, %v943, 0.0
    %v976 = vrot.slane %v975, 4
    %v977 = vadd.f32 %v975, %v976
    %v978 = vrot.slane %v977, 2
    %v979 = vadd.f32 %v977, %v978
    %v980 = vrot.slane %v979, 1
    %v981 = vadd.f32 %v979, %v980
    %v982 = vsel %vm874, %v944, 0.0
    %v983 = vrot.slane %v982, 4
    %v984 = vadd.f32 %v982, %v983
    %v985 = vrot.slane %v984, 2
    %v986 = vadd.f32 %v984, %v985
    %v987 = vrot.slane %v986, 1
    %v988 = vadd.f32 %v986, %v987
    %v989 = vsel %vm874, %v945, 0.0
    %v990 = vrot.slane %v989, 4
    %v991 = vadd.f32 %v989, %v990
    %v992 = vrot.slane %v991, 2
    %v993 = vadd.f32 %v991, %v992
    %v994 = vrot.slane %v993, 1
    %v995 = vadd.f32 %v993, %v994
    %v996 = vsel %vm874, %v946, 0.0
    %v997 = vrot.slane %v996, 4
    %v998 = vadd.f32 %v996, %v997
    %v999 = vrot.slane %v998, 2
    %v1000 = vadd.f32 %v998, %v999
    %v1001 = vrot.slane %v1000, 1
    %v1002 = vadd.f32 %v1000, %v1001
    %v1003 = vmul.f32 %v953, 0.125
    %v1004 = vmul.f32 %v960, 0.125
    %v1005 = vmul.f32 %v967, 0.125
    %v1006 = vmul.f32 %v974, 0.125
    %v1007 = vmul.f32 %v981, 0.125
    %v1008 = vmul.f32 %v988, 0.125
    %v1009 = vmul.f32 %v995, 0.125
    %v1010 = vmul.f32 %v1002, 0.125
    %v1011 = vmul.f32 %v931, %v931
    %v1012 = vmul.f32 %v932, %v932
    %v1013 = vmul.f32 %v933, %v933
    %v1014 = vmul.f32 %v934, %v934
    %v1015 = vmul.f32 %v935, %v935
    %v1016 = vmul.f32 %v936, %v936
    %v1017 = vmul.f32 %v937, %v937
    %v1018 = vmul.f32 %v938, %v938
    %v1019 = vsub.f32 %v1003, %v1011
    %v1020 = vsub.f32 %v1004, %v1012
    %v1021 = vsub.f32 %v1005, %v1013
    %v1022 = vsub.f32 %v1006, %v1014
    %v1023 = vsub.f32 %v1007, %v1015
    %v1024 = vsub.f32 %v1008, %v1016
    %v1025 = vsub.f32 %v1009, %v1017
    %v1026 = vsub.f32 %v1010, %v1018
    %v1027 = vadd.f32 %v1019, 1e-05
    %v1028 = vadd.f32 %v1020, 1e-05
    %v1029 = vadd.f32 %v1021, 1e-05
    %v1030 = vadd.f32 %v1022, 1e-05
    %v1031 = vadd.f32 %v1023, 1e-05
    %v1032 = vadd.f32 %v1024, 1e-05
    %v1033 = vadd.f32 %v1025, 1e-05
    %v1034 = vadd.f32 %v1026, 1e-05
    %v1035 = vrsqrt.pop %v1027
    %v1036 = vrsqrt.pop %v1028
    %v1037 = vrsqrt.pop %v1029
    %v1038 = vrsqrt.pop %v1030
    %v1039 = vrsqrt.pop %v1031
    %v1040 = vrsqrt.pop %v1032
    %v1041 = vrsqrt.pop %v1033
    %v1042 = vrsqrt.pop %v1034
    %v1043 = vmul.f32 %v61, %v1035
    %v1044 = vmul.f32 %v61, %v1036
    %v1045 = vmul.f32 %v61, %v1037
    %v1046 = vmul.f32 %v61, %v1038
    %v1047 = vmul.f32 %v61, %v1039
    %v1048 = vmul.f32 %v61, %v1040
    %v1049 = vmul.f32 %v61, %v1041
    %v1050 = vmul.f32 %v61, %v1042
    %v1051 = vsub.f32 %v829, %v931
    %v1052 = vsub.f32 %v835, %v932
    %v1053 = vsub.f32 %v841, %v933
    %v1054 = vsub.f32 %v847, %v934
    %v1055 = vsub.f32 %v853, %v935
    %v1056 = vsub.f32 %v859, %v936
    %v1057 = vsub.f32 %v865, %v937
    %v1058 = vsub.f32 %v871, %v938
    %v1067 = vlaneseq
    %v1068 = vshrl.u32 %v1067, 7
    %v1069 = vsub.s32 0, %v1068
    %v1070 = vrot.slane %v1043, %v1069
    %v1071 = vlaneseq
    %v1072 = vshrl.u32 %v1071, 7
    %v1073 = vsub.s32 0, %v1072
    %v1074 = vrot.slane %v1044, %v1073
    %v1075 = vlaneseq
    %v1076 = vshrl.u32 %v1075, 7
    %v1077 = vsub.s32 0, %v1076
    %v1078 = vrot.slane %v1045, %v1077
    %v1079 = vlaneseq
    %v1080 = vshrl.u32 %v1079, 7
    %v1081 = vsub.s32 0, %v1080
    %v1082 = vrot.slane %v1046, %v1081
    %v1083 = vlaneseq
    %v1084 = vshrl.u32 %v1083, 7
    %v1085 = vsub.s32 0, %v1084
    %v1086 = vrot.slane %v1047, %v1085
    %v1087 = vlaneseq
    %v1088 = vshrl.u32 %v1087, 7
    %v1089 = vsub.s32 0, %v1088
    %v1090 = vrot.slane %v1048, %v1089
    %v1091 = vlaneseq
    %v1092 = vshrl.u32 %v1091, 7
    %v1093 = vsub.s32 0, %v1092
    %v1094 = vrot.slane %v1049, %v1093
    %v1095 = vlaneseq
    %v1096 = vshrl.u32 %v1095, 7
    %v1097 = vsub.s32 0, %v1096
    %v1098 = vrot.slane %v1050, %v1097
    %v1107 = vmul.f32 %v1051, %v1070
    %v1108 = vmul.f32 %v1052, %v1074
    %v1109 = vmul.f32 %v1053, %v1078
    %v1110 = vmul.f32 %v1054, %v1082
    %v1111 = vmul.f32 %v1055, %v1086
    %v1112 = vmul.f32 %v1056, %v1090
    %v1113 = vmul.f32 %v1057, %v1094
    %v1114 = vmul.f32 %v1058, %v1098
    %v1116 = vlaneseq
    %v1117 = vshrl.u32 %v1116, 7
    %v1118 = vsub.s32 0, %v1117
    %v1119 = vrot.slane %v62, %v1118
    %v1121 = vadd.f32 %v1107, %v1119
    %v1122 = vadd.f32 %v1108, %v1119
    %v1123 = vadd.f32 %v1109, %v1119
    %v1124 = vadd.f32 %v1110, %v1119
    %v1125 = vadd.f32 %v1111, %v1119
    %v1126 = vadd.f32 %v1112, %v1119
    %v1127 = vadd.f32 %v1113, %v1119
    %v1128 = vadd.f32 %v1114, %v1119
    %v1130 = vlaneseq
    %v1131 = vshrl.u32 %v1130, 7
    %v1132 = vsub.s32 0, %v1131
    %v1133 = vrot.slane %v60, %v1132
    %v1135 = vmul.f32 %v1133, 0.0
    %v1136 = vadd.f32 %v1121, %v1135
    %v1137 = vmax.f32 %v1136, 0.0
    %v1138 = vsel %vm874, %v1137, 0.0
    %v1139 = vrot.slane %v1138, 4
    %v1140 = vadd.f32 %v1138, %v1139
    %v1141 = vrot.slane %v1140, 2
    %v1142 = vadd.f32 %v1140, %v1141
    %v1143 = vrot.slane %v1142, 1
    %v1144 = vadd.f32 %v1142, %v1143
    %v1145 = vmul.f32 %v1144, 0.125
    %v1146 = vmul.f32 %v1137, %v1137
    %v1147 = vsel %vm874, %v1146, 0.0
    %v1148 = vrot.slane %v1147, 4
    %v1149 = vadd.f32 %v1147, %v1148
    %v1150 = vrot.slane %v1149, 2
    %v1151 = vadd.f32 %v1149, %v1150
    %v1152 = vrot.slane %v1151, 1
    %v1153 = vadd.f32 %v1151, %v1152
    %v1154 = vmul.f32 %v1153, 0.125
    %v1155 = vmul.f32 %v1145, %v1145
    %v1156 = vsub.f32 %v1154, %v1155
    %v1157 = vadd.f32 %v1156, 1e-05
    %v1158 = vrsqrt.pop %v1157
    %v1159 = vmul.f32 %v63, %v1158
    %v1160 = vsub.f32 %v1137, %v1145
    %v1162 = vlaneseq
    %v1163 = vshrl.u32 %v1162, 7
    %v1164 = vsub.s32 0, %v1163
    %v1165 = vrot.slane %v1159, %v1164
    %v1167 = vmul.f32 %v1160, %v1165
    %v1169 = vlaneseq
    %v1170 = vshrl.u32 %v1169, 7
    %v1171 = vsub.s32 0, %v1170
    %v1172 = vrot.slane %v64, %v1171
    %v1174 = vadd.f32 %v1167, %v1172
    %1175 = vst.msk [vmem:[#allocation2] sm:$0xff] %vm874, %v1174
    %v1176 = vmul.f32 %v1174, %v1133
    %v1177 = vadd.f32 %v1122, %v1176
    %v1178 = vmax.f32 %v1177, 0.0
    %v1179 = vsel %vm874, %v1178, 0.0
    %v1180 = vrot.slane %v1179, 4
    %v1181 = vadd.f32 %v1179, %v1180
    %v1182 = vrot.slane %v1181, 2
    %v1183 = vadd.f32 %v1181, %v1182
    %v1184 = vrot.slane %v1183, 1
    %v1185 = vadd.f32 %v1183, %v1184
    %v1186 = vmul.f32 %v1185, 0.125
    %v1187 = vmul.f32 %v1178, %v1178
    %v1188 = vsel %vm874, %v1187, 0.0
    %v1189 = vrot.slane %v1188, 4
    %v1190 = vadd.f32 %v1188, %v1189
    %v1191 = vrot.slane %v1190, 2
    %v1192 = vadd.f32 %v1190, %v1191
    %v1193 = vrot.slane %v1192, 1
    %v1194 = vadd.f32 %v1192, %v1193
    %v1195 = vmul.f32 %v1194, 0.125
    %v1196 = vmul.f32 %v1186, %v1186
    %v1197 = vsub.f32 %v1195, %v1196
    %v1198 = vadd.f32 %v1197, 1e-05
    %v1199 = vrsqrt.pop %v1198
    %v1200 = vmul.f32 %v63, %v1199
    %v1201 = vsub.f32 %v1178, %v1186
    %v1203 = vlaneseq
    %v1204 = vshrl.u32 %v1203, 7
    %v1205 = vsub.s32 0, %v1204
    %v1206 = vrot.slane %v1200, %v1205
    %v1208 = vmul.f32 %v1201, %v1206
    %v1209 = vadd.f32 %v1208, %v1172
    %s1210 = scalar_lea.vmem [#allocation2], 8
    %1211 = vst.msk [vmem:[%s1210] sm:$0xff] %vm874, %v1209
    %v1212 = vmul.f32 %v1209, %v1133
    %v1213 = vadd.f32 %v1123, %v1212
    %v1214 = vmax.f32 %v1213, 0.0
    %v1215 = vsel %vm874, %v1214, 0.0
    %v1216 = vrot.slane %v1215, 4
    %v1217 = vadd.f32 %v1215, %v1216
    %v1218 = vrot.slane %v1217, 2
    %v1219 = vadd.f32 %v1217, %v1218
    %v1220 = vrot.slane %v1219, 1
    %v1221 = vadd.f32 %v1219, %v1220
    %v1222 = vmul.f32 %v1221, 0.125
    %v1223 = vmul.f32 %v1214, %v1214
    %v1224 = vsel %vm874, %v1223, 0.0
    %v1225 = vrot.slane %v1224, 4
    %v1226 = vadd.f32 %v1224, %v1225
    %v1227 = vrot.slane %v1226, 2
    %v1228 = vadd.f32 %v1226, %v1227
    %v1229 = vrot.slane %v1228, 1
    %v1230 = vadd.f32 %v1228, %v1229
    %v1231 = vmul.f32 %v1230, 0.125
    %v1232 = vmul.f32 %v1222, %v1222
    %v1233 = vsub.f32 %v1231, %v1232
    %v1234 = vadd.f32 %v1233, 1e-05
    %v1235 = vrsqrt.pop %v1234
    %v1236 = vmul.f32 %v63, %v1235
    %v1237 = vsub.f32 %v1214, %v1222
    %v1239 = vlaneseq
    %v1240 = vshrl.u32 %v1239, 7
    %v1241 = vsub.s32 0, %v1240
    %v1242 = vrot.slane %v1236, %v1241
    %v1244 = vmul.f32 %v1237, %v1242
    %v1245 = vadd.f32 %v1244, %v1172
    %s1246 = scalar_lea.vmem [#allocation2], 16
    %1247 = vst.msk [vmem:[%s1246] sm:$0xff] %vm874, %v1245
    %v1248 = vmul.f32 %v1245, %v1133
    %v1249 = vadd.f32 %v1124, %v1248
    %v1250 = vmax.f32 %v1249, 0.0
    %v1251 = vsel %vm874, %v1250, 0.0
    %v1252 = vrot.slane %v1251, 4
    %v1253 = vadd.f32 %v1251, %v1252
    %v1254 = vrot.slane %v1253, 2
    %v1255 = vadd.f32 %v1253, %v1254
    %v1256 = vrot.slane %v1255, 1
    %v1257 = vadd.f32 %v1255, %v1256
    %v1258 = vmul.f32 %v1257, 0.125
    %v1259 = vmul.f32 %v1250, %v1250
    %v1260 = vsel %vm874, %v1259, 0.0
    %v1261 = vrot.slane %v1260, 4
    %v1262 = vadd.f32 %v1260, %v1261
    %v1263 = vrot.slane %v1262, 2
    %v1264 = vadd.f32 %v1262, %v1263
    %v1265 = vrot.slane %v1264, 1
    %v1266 = vadd.f32 %v1264, %v1265
    %v1267 = vmul.f32 %v1266, 0.125
    %v1268 = vmul.f32 %v1258, %v1258
    %v1269 = vsub.f32 %v1267, %v1268
    %v1270 = vadd.f32 %v1269, 1e-05
    %v1271 = vrsqrt.pop %v1270
    %v1272 = vmul.f32 %v63, %v1271
    %v1273 = vsub.f32 %v1250, %v1258
    %v1275 = vlaneseq
    %v1276 = vshrl.u32 %v1275, 7
    %v1277 = vsub.s32 0, %v1276
    %v1278 = vrot.slane %v1272, %v1277
    %v1280 = vmul.f32 %v1273, %v1278
    %v1281 = vadd.f32 %v1280, %v1172
    %s1282 = scalar_lea.vmem [#allocation2], 24
    %1283 = vst.msk [vmem:[%s1282] sm:$0xff] %vm874, %v1281
    %v1284 = vmul.f32 %v1281, %v1133
    %v1285 = vadd.f32 %v1125, %v1284
    %v1286 = vmax.f32 %v1285, 0.0
    %v1287 = vsel %vm874, %v1286, 0.0
    %v1288 = vrot.slane %v1287, 4
    %v1289 = vadd.f32 %v1287, %v1288
    %v1290 = vrot.slane %v1289, 2
    %v1291 = vadd.f32 %v1289, %v1290
    %v1292 = vrot.slane %v1291, 1
    %v1293 = vadd.f32 %v1291, %v1292
    %v1294 = vmul.f32 %v1293, 0.125
    %v1295 = vmul.f32 %v1286, %v1286
    %v1296 = vsel %vm874, %v1295, 0.0
    %v1297 = vrot.slane %v1296, 4
    %v1298 = vadd.f32 %v1296, %v1297
    %v1299 = vrot.slane %v1298, 2
    %v1300 = vadd.f32 %v1298, %v1299
    %v1301 = vrot.slane %v1300, 1
    %v1302 = vadd.f32 %v1300, %v1301
    %v1303 = vmul.f32 %v1302, 0.125
    %v1304 = vmul.f32 %v1294, %v1294
    %v1305 = vsub.f32 %v1303, %v1304
    %v1306 = vadd.f32 %v1305, 1e-05
    %v1307 = vrsqrt.pop %v1306
    %v1308 = vmul.f32 %v63, %v1307
    %v1309 = vsub.f32 %v1286, %v1294
    %v1311 = vlaneseq
    %v1312 = vshrl.u32 %v1311, 7
    %v1313 = vsub.s32 0, %v1312
    %v1314 = vrot.slane %v1308, %v1313
    %v1316 = vmul.f32 %v1309, %v1314
    %v1317 = vadd.f32 %v1316, %v1172
    %s1318 = scalar_lea.vmem [#allocation2], 32
    %1319 = vst.msk [vmem:[%s1318] sm:$0xff] %vm874, %v1317
    %v1320 = vmul.f32 %v1317, %v1133
    %v1321 = vadd.f32 %v1126, %v1320
    %v1322 = vmax.f32 %v1321, 0.0
    %v1323 = vsel %vm874, %v1322, 0.0
    %v1324 = vrot.slane %v1323, 4
    %v1325 = vadd.f32 %v1323, %v1324
    %v1326 = vrot.slane %v1325, 2
    %v1327 = vadd.f32 %v1325, %v1326
    %v1328 = vrot.slane %v1327, 1
    %v1329 = vadd.f32 %v1327, %v1328
    %v1330 = vmul.f32 %v1329, 0.125
    %v1331 = vmul.f32 %v1322, %v1322
    %v1332 = vsel %vm874, %v1331, 0.0
    %v1333 = vrot.slane %v1332, 4
    %v1334 = vadd.f32 %v1332, %v1333
    %v1335 = vrot.slane %v1334, 2
    %v1336 = vadd.f32 %v1334, %v1335
    %v1337 = vrot.slane %v1336, 1
    %v1338 = vadd.f32 %v1336, %v1337
    %v1339 = vmul.f32 %v1338, 0.125
    %v1340 = vmul.f32 %v1330, %v1330
    %v1341 = vsub.f32 %v1339, %v1340
    %v1342 = vadd.f32 %v1341, 1e-05
    %v1343 = vrsqrt.pop %v1342
    %v1344 = vmul.f32 %v63, %v1343
    %v1345 = vsub.f32 %v1322, %v1330
    %v1347 = vlaneseq
    %v1348 = vshrl.u32 %v1347, 7
    %v1349 = vsub.s32 0, %v1348
    %v1350 = vrot.slane %v1344, %v1349
    %v1352 = vmul.f32 %v1345, %v1350
    %v1353 = vadd.f32 %v1352, %v1172
    %s1354 = scalar_lea.vmem [#allocation2], 40
    %1355 = vst.msk [vmem:[%s1354] sm:$0xff] %vm874, %v1353
    %v1356 = vmul.f32 %v1353, %v1133
    %v1357 = vadd.f32 %v1127, %v1356
    %v1358 = vmax.f32 %v1357, 0.0
    %v1359 = vsel %vm874, %v1358, 0.0
    %v1360 = vrot.slane %v1359, 4
    %v1361 = vadd.f32 %v1359, %v1360
    %v1362 = vrot.slane %v1361, 2
    %v1363 = vadd.f32 %v1361, %v1362
    %v1364 = vrot.slane %v1363, 1
    %v1365 = vadd.f32 %v1363, %v1364
    %v1366 = vmul.f32 %v1365, 0.125
    %v1367 = vmul.f32 %v1358, %v1358
    %v1368 = vsel %vm874, %v1367, 0.0
    %v1369 = vrot.slane %v1368, 4
    %v1370 = vadd.f32 %v1368, %v1369
    %v1371 = vrot.slane %v1370, 2
    %v1372 = vadd.f32 %v1370, %v1371
    %v1373 = vrot.slane %v1372, 1
    %v1374 = vadd.f32 %v1372, %v1373
    %v1375 = vmul.f32 %v1374, 0.125
    %v1376 = vmul.f32 %v1366, %v1366
    %v1377 = vsub.f32 %v1375, %v1376
    %v1378 = vadd.f32 %v1377, 1e-05
    %v1379 = vrsqrt.pop %v1378
    %v1380 = vmul.f32 %v63, %v1379
    %v1381 = vsub.f32 %v1358, %v1366
    %v1383 = vlaneseq
    %v1384 = vshrl.u32 %v1383, 7
    %v1385 = vsub.s32 0, %v1384
    %v1386 = vrot.slane %v1380, %v1385
    %v1388 = vmul.f32 %v1381, %v1386
    %v1389 = vadd.f32 %v1388, %v1172
    %s1390 = scalar_lea.vmem [#allocation2], 48
    %1391 = vst.msk [vmem:[%s1390] sm:$0xff] %vm874, %v1389
    %v1392 = vmul.f32 %v1389, %v1133
    %v1393 = vadd.f32 %v1128, %v1392
    %v1394 = vmax.f32 %v1393, 0.0
    %v1395 = vsel %vm874, %v1394, 0.0
    %v1396 = vrot.slane %v1395, 4
    %v1397 = vadd.f32 %v1395, %v1396
    %v1398 = vrot.slane %v1397, 2
    %v1399 = vadd.f32 %v1397, %v1398
    %v1400 = vrot.slane %v1399, 1
    %v1401 = vadd.f32 %v1399, %v1400
    %v1402 = vmul.f32 %v1401, 0.125
    %v1403 = vmul.f32 %v1394, %v1394
    %v1404 = vsel %vm874, %v1403, 0.0
    %v1405 = vrot.slane %v1404, 4
    %v1406 = vadd.f32 %v1404, %v1405
    %v1407 = vrot.slane %v1406, 2
    %v1408 = vadd.f32 %v1406, %v1407
    %v1409 = vrot.slane %v1408, 1
    %v1410 = vadd.f32 %v1408, %v1409
    %v1411 = vmul.f32 %v1410, 0.125
    %v1412 = vmul.f32 %v1402, %v1402
    %v1413 = vsub.f32 %v1411, %v1412
    %v1414 = vadd.f32 %v1413, 1e-05
    %v1415 = vrsqrt.pop %v1414
    %v1416 = vmul.f32 %v63, %v1415
    %v1417 = vsub.f32 %v1394, %v1402
    %v1419 = vlaneseq
    %v1420 = vshrl.u32 %v1419, 7
    %v1421 = vsub.s32 0, %v1420
    %v1422 = vrot.slane %v1416, %v1421
    %v1424 = vmul.f32 %v1417, %v1422
    %v1425 = vadd.f32 %v1424, %v1172
    %s1426 = scalar_lea.vmem [#allocation2], 56
    %1427 = vst.msk [vmem:[%s1426] sm:$0xff] %vm874, %v1425
    %v1428 = vld [vmem:[#allocation2] sm:$0xff]
    %v1429 = vld [vmem:[#allocation2 + $0x8] sm:$0xff]
    %v1430 = vld [vmem:[#allocation2 + $0x10] sm:$0xff]
    %v1431 = vld [vmem:[#allocation2 + $0x18] sm:$0xff]
    %v1432 = vld [vmem:[#allocation2 + $0x20] sm:$0xff]
    %v1433 = vld [vmem:[#allocation2 + $0x28] sm:$0xff]
    %v1434 = vld [vmem:[#allocation2 + $0x30] sm:$0xff]
    %v1435 = vld [vmem:[#allocation2 + $0x38] sm:$0xff]
    %v1437 = vlaneseq
    %v1438 = vshrl.u32 %v1437, 7
    %v1439 = vsub.s32 0, %v1438
    %v1440 = vrot.slane %v69, %v1439
    %v1443 = vsel %vm874, %v1428, 0
    %v1446 = vsel %vm874, %v1429, 0
    %v1449 = vsel %vm874, %v1430, 0
    %v1452 = vsel %vm874, %v1431, 0
    %v1455 = vsel %vm874, %v1432, 0
    %v1458 = vsel %vm874, %v1433, 0
    %v1461 = vsel %vm874, %v1434, 0
    %v1464 = vsel %vm874, %v1435, 0
    %1466 = vmatprep.subr.mxu0 0.0
    %v1467 = vand.u32 %v65, 4294901760
    %1468 = vmatpush1.msra.mxu0 %v1467
    %1469 = vmatprep.subr.mxu0 0.0
    %v1470 = vand.u32 %v66, 4294901760
    %1471 = vmatpush1.msra.mxu0 %v1470
    %1472 = vmatprep.subr.mxu0 0.0
    %v1473 = vand.u32 %v67, 4294901760
    %1474 = vmatpush1.msra.mxu0 %v1473
    %1475 = vmatprep.subr.mxu0 0.0
    %v1476 = vand.u32 %v68, 4294901760
    %1477 = vmatpush1.msra.mxu0 %v1476
    %1478 = vmatprep.subr.mxu0 0.0
    %1479 = vmatpush1.msra.mxu0 0.0
    %1480 = vmatprep.subr.mxu0 0.0
    %1481 = vmatpush1.msra.mxu0 0.0
    %1482 = vmatprep.subr.mxu0 0.0
    %1483 = vmatpush1.msra.mxu0 0.0
    %1484 = vmatprep.subr.mxu0 0.0
    %1485 = vmatpush1.msra.mxu0 0.0
    %1486 = vmatprep.subr.mxu0 0.0
    %1487 = vmatpush1.msra.mxu0 0.0
    %1488 = vmatprep.subr.mxu0 0.0
    %1489 = vmatpush1.msra.mxu0 0.0
    %1490 = vmatprep.subr.mxu0 0.0
    %1491 = vmatpush1.msra.mxu0 0.0
    %1492 = vmatprep.subr.mxu0 0.0
    %1493 = vmatpush1.msra.mxu0 0.0
    %1494 = vmatprep.subr.mxu0 0.0
    %1495 = vmatpush1.msra.mxu0 0.0
    %1496 = vmatprep.subr.mxu0 0.0
    %1497 = vmatpush1.msra.mxu0 0.0
    %1498 = vmatprep.subr.mxu0 0.0
    %1499 = vmatpush1.msra.mxu0 0.0
    %1500 = vmatprep.subr.mxu0 0.0
    %1501 = vmatpush1.msra.mxu0 0.0
    %1502 = vmatprep.subr.mxu0 0.0
    %1503 = vmatpush1.msra.mxu0 0.0
    %1504 = vmatprep.subr.mxu0 0.0
    %1505 = vmatpush1.msra.mxu0 0.0
    %1506 = vmatprep.subr.mxu0 0.0
    %1507 = vmatpush1.msra.mxu0 0.0
    %1508 = vmatprep.subr.mxu0 0.0
    %1509 = vmatpush1.msra.mxu0 0.0
    %1510 = vmatprep.subr.mxu0 0.0
    %1511 = vmatpush1.msra.mxu0 0.0
    %1512 = vmatprep.subr.mxu0 0.0
    %1513 = vmatpush1.msra.mxu0 0.0
    %1514 = vmatprep.subr.mxu0 0.0
    %1515 = vmatpush1.msra.mxu0 0.0
    %1516 = vmatprep.subr.mxu0 0.0
    %1517 = vmatpush1.msra.mxu0 0.0
    %1518 = vmatprep.subr.mxu0 0.0
    %1519 = vmatpush1.msra.mxu0 0.0
    %1520 = vmatprep.subr.mxu0 0.0
    %1521 = vmatpush1.msra.mxu0 0.0
    %1522 = vmatprep.subr.mxu0 0.0
    %1523 = vmatpush1.msra.mxu0 0.0
    %1524 = vmatprep.subr.mxu0 0.0
    %1525 = vmatpush1.msra.mxu0 0.0
    %1526 = vmatprep.subr.mxu0 0.0
    %1527 = vmatpush1.msra.mxu0 0.0
    %1528 = vmatprep.subr.mxu0 0.0
    %1529 = vmatpush1.msra.mxu0 0.0
    %1530 = vmatprep.subr.mxu0 0.0
    %1531 = vmatpush1.msra.mxu0 0.0
    %1532 = vmatprep.subr.mxu0 0.0
    %1533 = vmatpush1.msra.mxu0 0.0
    %1534 = vmatprep.mubr.f32.mxu0 0.0
    %v1535 = vand.u32 %v1443, 4294901760
    %v1536 = vsub.f32 %v1443, %v1535
    %v1537 = vand.u32 %v1536, 4294901760
    %v1538 = vsub.f32 %v1536, %v1537
    %v1539 = vand.u32 %v1538, 4294901760
    %1540 = vmatmul.mubr.f32.gmra.mrb[0].mxu0 %v1539
    %v1541 = vpop.f32.mrb[0].mxu0
    %v1542 = vadd.f32 %v1440, %v1541
    %v1543 = vpop.f32.mrb[0].mxu0
    %1544 = vmatprep.mubr.f32.mxu0 0.0
    %v1545 = vand.u32 %v1446, 4294901760
    %v1546 = vsub.f32 %v1446, %v1545
    %v1547 = vand.u32 %v1546, 4294901760
    %v1548 = vsub.f32 %v1546, %v1547
    %v1549 = vand.u32 %v1548, 4294901760
    %1550 = vmatmul.mubr.f32.gmra.mrb[0].mxu0 %v1549
    %v1551 = vpop.f32.mrb[0].mxu0
    %v1552 = vadd.f32 %v1440, %v1551
    %v1553 = vpop.f32.mrb[0].mxu0
    %1554 = vmatprep.mubr.f32.mxu0 0.0
    %v1555 = vand.u32 %v1449, 4294901760
    %v1556 = vsub.f32 %v1449, %v1555
    %v1557 = vand.u32 %v1556, 4294901760
    %v1558 = vsub.f32 %v1556, %v1557
    %v1559 = vand.u32 %v1558, 4294901760
    %1560 = vmatmul.mubr.f32.gmra.mrb[0].mxu0 %v1559
    %v1561 = vpop.f32.mrb[0].mxu0
    %v1562 = vadd.f32 %v1440, %v1561
    %v1563 = vpop.f32.mrb[0].mxu0
    %1564 = vmatprep.mubr.f32.mxu0 0.0
    %v1565 = vand.u32 %v1452, 4294901760
    %v1566 = vsub.f32 %v1452, %v1565
    %v1567 = vand.u32 %v1566, 4294901760
    %v1568 = vsub.f32 %v1566, %v1567
    %v1569 = vand.u32 %v1568, 4294901760
    %1570 = vmatmul.mubr.f32.gmra.mrb[0].mxu0 %v1569
    %v1571 = vpop.f32.mrb[0].mxu0
    %v1572 = vadd.f32 %v1440, %v1571
    %v1573 = vpop.f32.mrb[0].mxu0
    %1574 = vmatprep.mubr.f32.mxu0 0.0
    %v1575 = vand.u32 %v1455, 4294901760
    %v1576 = vsub.f32 %v1455, %v1575
    %v1577 = vand.u32 %v1576, 4294901760
    %v1578 = vsub.f32 %v1576, %v1577
    %v1579 = vand.u32 %v1578, 4294901760
    %1580 = vmatmul.mubr.f32.gmra.mrb[0].mxu0 %v1579
    %v1581 = vpop.f32.mrb[0].mxu0
    %v1582 = vadd.f32 %v1440, %v1581
    %v1583 = vpop.f32.mrb[0].mxu0
    %1584 = vmatprep.mubr.f32.mxu0 0.0
    %v1585 = vand.u32 %v1458, 4294901760
    %v1586 = vsub.f32 %v1458, %v1585
    %v1587 = vand.u32 %v1586, 4294901760
    %v1588 = vsub.f32 %v1586, %v1587
    %v1589 = vand.u32 %v1588, 4294901760
    %1590 = vmatmul.mubr.f32.gmra.mrb[0].mxu0 %v1589
    %v1591 = vpop.f32.mrb[0].mxu0
    %v1592 = vadd.f32 %v1440, %v1591
    %v1593 = vpop.f32.mrb[0].mxu0
    %1594 = vmatprep.mubr.f32.mxu0 0.0
    %v1595 = vand.u32 %v1461, 4294901760
    %v1596 = vsub.f32 %v1461, %v1595
    %v1597 = vand.u32 %v1596, 4294901760
    %v1598 = vsub.f32 %v1596, %v1597
    %v1599 = vand.u32 %v1598, 4294901760
    %1600 = vmatmul.mubr.f32.gmra.mrb[0].mxu0 %v1599
    %v1601 = vpop.f32.mrb[0].mxu0
    %v1602 = vadd.f32 %v1440, %v1601
    %v1603 = vpop.f32.mrb[0].mxu0
    %1604 = vmatprep.mubr.f32.mxu0 0.0
    %v1605 = vand.u32 %v1464, 4294901760
    %v1606 = vsub.f32 %v1464, %v1605
    %v1607 = vand.u32 %v1606, 4294901760
    %v1608 = vsub.f32 %v1606, %v1607
    %v1609 = vand.u32 %v1608, 4294901760
    %1610 = vmatmul.mubr.f32.gmra.mrb[0].mxu0 %v1609
    %v1611 = vpop.f32.mrb[0].mxu0
    %v1612 = vadd.f32 %v1440, %v1611
    %v1613 = vpop.f32.mrb[0].mxu0
    %1614 = vdwg.mxu0
    %1615 = vmatprep.subr.mxu0 0.0
    %v1616 = vand.u32 %v65, 4294901760
    %v1617 = vsub.f32 %v65, %v1616
    %v1618 = vand.u32 %v1617, 4294901760
    %v1619 = vsub.f32 %v1617, %v1618
    %v1620 = vand.u32 %v1619, 4294901760
    %1621 = vmatpush1.msra.mxu0 %v1620
    %1622 = vmatprep.subr.mxu0 0.0
    %v1623 = vand.u32 %v66, 4294901760
    %v1624 = vsub.f32 %v66, %v1623
    %v1625 = vand.u32 %v1624, 4294901760
    %v1626 = vsub.f32 %v1624, %v1625
    %v1627 = vand.u32 %v1626, 4294901760
    %1628 = vmatpush1.msra.mxu0 %v1627
    %1629 = vmatprep.subr.mxu0 0.0
    %v1630 = vand.u32 %v67, 4294901760
    %v1631 = vsub.f32 %v67, %v1630
    %v1632 = vand.u32 %v1631, 4294901760
    %v1633 = vsub.f32 %v1631, %v1632
    %v1634 = vand.u32 %v1633, 4294901760
    %1635 = vmatpush1.msra.mxu0 %v1634
    %1636 = vmatprep.subr.mxu0 0.0
    %v1637 = vand.u32 %v68, 4294901760
    %v1638 = vsub.f32 %v68, %v1637
    %v1639 = vand.u32 %v1638, 4294901760
    %v1640 = vsub.f32 %v1638, %v1639
    %v1641 = vand.u32 %v1640, 4294901760
    %1642 = vmatpush1.msra.mxu0 %v1641
    %1643 = vmatprep.subr.mxu0 0.0
    %1644 = vmatpush1.msra.mxu0 0.0
    %1645 = vmatprep.subr.mxu0 0.0
    %1646 = vmatpush1.msra.mxu0 0.0
    %1647 = vmatprep.subr.mxu0 0.0
    %1648 = vmatpush1.msra.mxu0 0.0
    %1649 = vmatprep.subr.mxu0 0.0
    %1650 = vmatpush1.msra.mxu0 0.0
    %1651 = vmatprep.subr.mxu0 0.0
    %1652 = vmatpush1.msra.mxu0 0.0
    %1653 = vmatprep.subr.mxu0 0.0
    %1654 = vmatpush1.msra.mxu0 0.0
    %1655 = vmatprep.subr.mxu0 0.0
    %1656 = vmatpush1.msra.mxu0 0.0
    %1657 = vmatprep.subr.mxu0 0.0
    %1658 = vmatpush1.msra.mxu0 0.0
    %1659 = vmatprep.subr.mxu0 0.0
    %1660 = vmatpush1.msra.mxu0 0.0
    %1661 = vmatprep.subr.mxu0 0.0
    %1662 = vmatpush1.msra.mxu0 0.0
    %1663 = vmatprep.subr.mxu0 0.0
    %1664 = vmatpush1.msra.mxu0 0.0
    %1665 = vmatprep.subr.mxu0 0.0
    %1666 = vmatpush1.msra.mxu0 0.0
    %1667 = vmatprep.subr.mxu0 0.0
    %1668 = vmatpush1.msra.mxu0 0.0
    %1669 = vmatprep.subr.mxu0 0.0
    %1670 = vmatpush1.msra.mxu0 0.0
    %1671 = vmatprep.subr.mxu0 0.0
    %1672 = vmatpush1.msra.mxu0 0.0
    %1673 = vmatprep.subr.mxu0 0.0
    %1674 = vmatpush1.msra.mxu0 0.0
    %1675 = vmatprep.subr.mxu0 0.0
    %1676 = vmatpush1.msra.mxu0 0.0
    %1677 = vmatprep.subr.mxu0 0.0
    %1678 = vmatpush1.msra.mxu0 0.0
    %1679 = vmatprep.subr.mxu0 0.0
    %1680 = vmatpush1.msra.mxu0 0.0
    %1681 = vmatprep.subr.mxu0 0.0
    %1682 = vmatpush1.msra.mxu0 0.0
    %1683 = vmatprep.subr.mxu0 0.0
    %1684 = vmatpush1.msra.mxu0 0.0
    %1685 = vmatprep.subr.mxu0 0.0
    %1686 = vmatpush1.msra.mxu0 0.0
    %1687 = vmatprep.subr.mxu0 0.0
    %1688 = vmatpush1.msra.mxu0 0.0
    %1689 = vmatprep.subr.mxu0 0.0
    %1690 = vmatpush1.msra.mxu0 0.0
    %1691 = vmatprep.subr.mxu0 0.0
    %1692 = vmatpush1.msra.mxu0 0.0
    %1693 = vmatprep.subr.mxu0 0.0
    %1694 = vmatpush1.msra.mxu0 0.0
    %1695 = vmatprep.subr.mxu0 0.0
    %1696 = vmatpush1.msra.mxu0 0.0
    %1697 = vmatprep.subr.mxu0 0.0
    %1698 = vmatpush1.msra.mxu0 0.0
    %1699 = vmatprep.mubr.f32.mxu0 0.0
    %v1700 = vand.u32 %v1443, 4294901760
    %1701 = vmatmul.mubr.f32.gmra.mrb[0].mxu0 %v1700
    %v1702 = vpop.f32.mrb[0].mxu0
    %v1703 = vadd.f32 %v1542, %v1702
    %v1704 = vpop.f32.mrb[0].mxu0
    %1705 = vmatprep.mubr.f32.mxu0 0.0
    %v1706 = vand.u32 %v1446, 4294901760
    %1707 = vmatmul.mubr.f32.gmra.mrb[0].mxu0 %v1706
    %v1708 = vpop.f32.mrb[0].mxu0
    %v1709 = vadd.f32 %v1552, %v1708
    %v1710 = vpop.f32.mrb[0].mxu0
    %1711 = vmatprep.mubr.f32.mxu0 0.0
    %v1712 = vand.u32 %v1449, 4294901760
    %1713 = vmatmul.mubr.f32.gmra.mrb[0].mxu0 %v1712
    %v1714 = vpop.f32.mrb[0].mxu0
    %v1715 = vadd.f32 %v1562, %v1714
    %v1716 = vpop.f32.mrb[0].mxu0
    %1717 = vmatprep.mubr.f32.mxu0 0.0
    %v1718 = vand.u32 %v1452, 4294901760
    %1719 = vmatmul.mubr.f32.gmra.mrb[0].mxu0 %v1718
    %v1720 = vpop.f32.mrb[0].mxu0
    %v1721 = vadd.f32 %v1572, %v1720
    %v1722 = vpop.f32.mrb[0].mxu0
    %1723 = vmatprep.mubr.f32.mxu0 0.0
    %v1724 = vand.u32 %v1455, 4294901760
    %1725 = vmatmul.mubr.f32.gmra.mrb[0].mxu0 %v1724
    %v1726 = vpop.f32.mrb[0].mxu0
    %v1727 = vadd.f32 %v1582, %v1726
    %v1728 = vpop.f32.mrb[0].mxu0
    %1729 = vmatprep.mubr.f32.mxu0 0.0
    %v1730 = vand.u32 %v1458, 4294901760
    %1731 = vmatmul.mubr.f32.gmra.mrb[0].mxu0 %v1730
    %v1732 = vpop.f32.mrb[0].mxu0
    %v1733 = vadd.f32 %v1592, %v1732
    %v1734 = vpop.f32.mrb[0].mxu0
    %1735 = vmatprep.mubr.f32.mxu0 0.0
    %v1736 = vand.u32 %v1461, 4294901760
    %1737 = vmatmul.mubr.f32.gmra.mrb[0].mxu0 %v1736
    %v1738 = vpop.f32.mrb[0].mxu0
    %v1739 = vadd.f32 %v1602, %v1738
    %v1740 = vpop.f32.mrb[0].mxu0
    %1741 = vmatprep.mubr.f32.mxu0 0.0
    %v1742 = vand.u32 %v1464, 4294901760
    %1743 = vmatmul.mubr.f32.gmra.mrb[0].mxu0 %v1742
    %v1744 = vpop.f32.mrb[0].mxu0
    %v1745 = vadd.f32 %v1612, %v1744
    %v1746 = vpop.f32.mrb[0].mxu0
    %1747 = vdwg.mxu0
    %1748 = vmatprep.subr.mxu0 0.0
    %v1749 = vand.u32 %v65, 4294901760
    %v1750 = vsub.f32 %v65, %v1749
    %1751 = vmatpush1.msra.mxu0 %v1750
    %1752 = vmatprep.subr.mxu0 0.0
    %v1753 = vand.u32 %v66, 4294901760
    %v1754 = vsub.f32 %v66, %v1753
    %1755 = vmatpush1.msra.mxu0 %v1754
    %1756 = vmatprep.subr.mxu0 0.0
    %v1757 = vand.u32 %v67, 4294901760
    %v1758 = vsub.f32 %v67, %v1757
    %1759 = vmatpush1.msra.mxu0 %v1758
    %1760 = vmatprep.subr.mxu0 0.0
    %v1761 = vand.u32 %v68, 4294901760
    %v1762 = vsub.f32 %v68, %v1761
    %1763 = vmatpush1.msra.mxu0 %v1762
    %1764 = vmatprep.subr.mxu0 0.0
    %1765 = vmatpush1.msra.mxu0 0.0
    %1766 = vmatprep.subr.mxu0 0.0
    %1767 = vmatpush1.msra.mxu0 0.0
    %1768 = vmatprep.subr.mxu0 0.0
    %1769 = vmatpush1.msra.mxu0 0.0
    %1770 = vmatprep.subr.mxu0 0.0
    %1771 = vmatpush1.msra.mxu0 0.0
    %1772 = vmatprep.subr.mxu0 0.0
    %1773 = vmatpush1.msra.mxu0 0.0
    %1774 = vmatprep.subr.mxu0 0.0
    %1775 = vmatpush1.msra.mxu0 0.0
    %1776 = vmatprep.subr.mxu0 0.0
    %1777 = vmatpush1.msra.mxu0 0.0
    %1778 = vmatprep.subr.mxu0 0.0
    %1779 = vmatpush1.msra.mxu0 0.0
    %1780 = vmatprep.subr.mxu0 0.0
    %1781 = vmatpush1.msra.mxu0 0.0
    %1782 = vmatprep.subr.mxu0 0.0
    %1783 = vmatpush1.msra.mxu0 0.0
    %1784 = vmatprep.subr.mxu0 0.0
    %1785 = vmatpush1.msra.mxu0 0.0
    %1786 = vmatprep.subr.mxu0 0.0
    %1787 = vmatpush1.msra.mxu0 0.0
    %1788 = vmatprep.subr.mxu0 0.0
    %1789 = vmatpush1.msra.mxu0 0.0
    %1790 = vmatprep.subr.mxu0 0.0
    %1791 = vmatpush1.msra.mxu0 0.0
    %1792 = vmatprep.subr.mxu0 0.0
    %1793 = vmatpush1.msra.mxu0 0.0
    %1794 = vmatprep.subr.mxu0 0.0
    %1795 = vmatpush1.msra.mxu0 0.0
    %1796 = vmatprep.subr.mxu0 0.0
    %1797 = vmatpush1.msra.mxu0 0.0
    %1798 = vmatprep.subr.mxu0 0.0
    %1799 = vmatpush1.msra.mxu0 0.0
    %1800 = vmatprep.subr.mxu0 0.0
    %1801 = vmatpush1.msra.mxu0 0.0
    %1802 = vmatprep.subr.mxu0 0.0
    %1803 = vmatpush1.msra.mxu0 0.0
    %1804 = vmatprep.subr.mxu0 0.0
    %1805 = vmatpush1.msra.mxu0 0.0
    %1806 = vmatprep.subr.mxu0 0.0
    %1807 = vmatpush1.msra.mxu0 0.0
    %1808 = vmatprep.subr.mxu0 0.0
    %1809 = vmatpush1.msra.mxu0 0.0
    %1810 = vmatprep.subr.mxu0 0.0
    %1811 = vmatpush1.msra.mxu0 0.0
    %1812 = vmatprep.subr.mxu0 0.0
    %1813 = vmatpush1.msra.mxu0 0.0
    %1814 = vmatprep.subr.mxu0 0.0
    %1815 = vmatpush1.msra.mxu0 0.0
    %1816 = vmatprep.subr.mxu0 0.0
    %1817 = vmatpush1.msra.mxu0 0.0
    %1818 = vmatprep.subr.mxu0 0.0
    %1819 = vmatpush1.msra.mxu0 0.0
    %1820 = vmatprep.mubr.f32.mxu0 0.0
    %v1821 = vand.u32 %v1443, 4294901760
    %v1822 = vsub.f32 %v1443, %v1821
    %1823 = vmatmul.mubr.f32.gmra.mrb[0].mxu0 %v1822
    %v1824 = vpop.f32.mrb[0].mxu0
    %v1825 = vadd.f32 %v1703, %v1824
    %v1826 = vpop.f32.mrb[0].mxu0
    %1827 = vmatprep.mubr.f32.mxu0 0.0
    %v1828 = vand.u32 %v1446, 4294901760
    %v1829 = vsub.f32 %v1446, %v1828
    %1830 = vmatmul.mubr.f32.gmra.mrb[0].mxu0 %v1829
    %v1831 = vpop.f32.mrb[0].mxu0
    %v1832 = vadd.f32 %v1709, %v1831
    %v1833 = vpop.f32.mrb[0].mxu0
    %1834 = vmatprep.mubr.f32.mxu0 0.0
    %v1835 = vand.u32 %v1449, 4294901760
    %v1836 = vsub.f32 %v1449, %v1835
    %1837 = vmatmul.mubr.f32.gmra.mrb[0].mxu0 %v1836
    %v1838 = vpop.f32.mrb[0].mxu0
    %v1839 = vadd.f32 %v1715, %v1838
    %v1840 = vpop.f32.mrb[0].mxu0
    %1841 = vmatprep.mubr.f32.mxu0 0.0
    %v1842 = vand.u32 %v1452, 4294901760
    %v1843 = vsub.f32 %v1452, %v1842
    %1844 = vmatmul.mubr.f32.gmra.mrb[0].mxu0 %v1843
    %v1845 = vpop.f32.mrb[0].mxu0
    %v1846 = vadd.f32 %v1721, %v1845
    %v1847 = vpop.f32.mrb[0].mxu0
    %1848 = vmatprep.mubr.f32.mxu0 0.0
    %v1849 = vand.u32 %v1455, 4294901760
    %v1850 = vsub.f32 %v1455, %v1849
    %1851 = vmatmul.mubr.f32.gmra.mrb[0].mxu0 %v1850
    %v1852 = vpop.f32.mrb[0].mxu0
    %v1853 = vadd.f32 %v1727, %v1852
    %v1854 = vpop.f32.mrb[0].mxu0
    %1855 = vmatprep.mubr.f32.mxu0 0.0
    %v1856 = vand.u32 %v1458, 4294901760
    %v1857 = vsub.f32 %v1458, %v1856
    %1858 = vmatmul.mubr.f32.gmra.mrb[0].mxu0 %v1857
    %v1859 = vpop.f32.mrb[0].mxu0
    %v1860 = vadd.f32 %v1733, %v1859
    %v1861 = vpop.f32.mrb[0].mxu0
    %1862 = vmatprep.mubr.f32.mxu0 0.0
    %v1863 = vand.u32 %v1461, 4294901760
    %v1864 = vsub.f32 %v1461, %v1863
    %1865 = vmatmul.mubr.f32.gmra.mrb[0].mxu0 %v1864
    %v1866 = vpop.f32.mrb[0].mxu0
    %v1867 = vadd.f32 %v1739, %v1866
    %v1868 = vpop.f32.mrb[0].mxu0
    %1869 = vmatprep.mubr.f32.mxu0 0.0
    %v1870 = vand.u32 %v1464, 4294901760
    %v1871 = vsub.f32 %v1464, %v1870
    %1872 = vmatmul.mubr.f32.gmra.mrb[0].mxu0 %v1871
    %v1873 = vpop.f32.mrb[0].mxu0
    %v1874 = vadd.f32 %v1745, %v1873
    %v1875 = vpop.f32.mrb[0].mxu0
    %1876 = vdwg.mxu0
    %1877 = vmatprep.subr.mxu0 0.0
    %v1878 = vand.u32 %v65, 4294901760
    %1879 = vmatpush1.msra.mxu0 %v1878
    %1880 = vmatprep.subr.mxu0 0.0
    %v1881 = vand.u32 %v66, 4294901760
    %1882 = vmatpush1.msra.mxu0 %v1881
    %1883 = vmatprep.subr.mxu0 0.0
    %v1884 = vand.u32 %v67, 4294901760
    %1885 = vmatpush1.msra.mxu0 %v1884
    %1886 = vmatprep.subr.mxu0 0.0
    %v1887 = vand.u32 %v68, 4294901760
    %1888 = vmatpush1.msra.mxu0 %v1887
    %1889 = vmatprep.subr.mxu0 0.0
    %1890 = vmatpush1.msra.mxu0 0.0
    %1891 = vmatprep.subr.mxu0 0.0
    %1892 = vmatpush1.msra.mxu0 0.0
    %1893 = vmatprep.subr.mxu0 0.0
    %1894 = vmatpush1.msra.mxu0 0.0
    %1895 = vmatprep.subr.mxu0 0.0
    %1896 = vmatpush1.msra.mxu0 0.0
    %1897 = vmatprep.subr.mxu0 0.0
    %1898 = vmatpush1.msra.mxu0 0.0
    %1899 = vmatprep.subr.mxu0 0.0
    %1900 = vmatpush1.msra.mxu0 0.0
    %1901 = vmatprep.subr.mxu0 0.0
    %1902 = vmatpush1.msra.mxu0 0.0
    %1903 = vmatprep.subr.mxu0 0.0
    %1904 = vmatpush1.msra.mxu0 0.0
    %1905 = vmatprep.subr.mxu0 0.0
    %1906 = vmatpush1.msra.mxu0 0.0
    %1907 = vmatprep.subr.mxu0 0.0
    %1908 = vmatpush1.msra.mxu0 0.0
    %1909 = vmatprep.subr.mxu0 0.0
    %1910 = vmatpush1.msra.mxu0 0.0
    %1911 = vmatprep.subr.mxu0 0.0
    %1912 = vmatpush1.msra.mxu0 0.0
    %1913 = vmatprep.subr.mxu0 0.0
    %1914 = vmatpush1.msra.mxu0 0.0
    %1915 = vmatprep.subr.mxu0 0.0
    %1916 = vmatpush1.msra.mxu0 0.0
    %1917 = vmatprep.subr.mxu0 0.0
    %1918 = vmatpush1.msra.mxu0 0.0
    %1919 = vmatprep.subr.mxu0 0.0
    %1920 = vmatpush1.msra.mxu0 0.0
    %1921 = vmatprep.subr.mxu0 0.0
    %1922 = vmatpush1.msra.mxu0 0.0
    %1923 = vmatprep.subr.mxu0 0.0
    %1924 = vmatpush1.msra.mxu0 0.0
    %1925 = vmatprep.subr.mxu0 0.0
    %1926 = vmatpush1.msra.mxu0 0.0
    %1927 = vmatprep.subr.mxu0 0.0
    %1928 = vmatpush1.msra.mxu0 0.0
    %1929 = vmatprep.subr.mxu0 0.0
    %1930 = vmatpush1.msra.mxu0 0.0
    %1931 = vmatprep.subr.mxu0 0.0
    %1932 = vmatpush1.msra.mxu0 0.0
    %1933 = vmatprep.subr.mxu0 0.0
    %1934 = vmatpush1.msra.mxu0 0.0
    %1935 = vmatprep.subr.mxu0 0.0
    %1936 = vmatpush1.msra.mxu0 0.0
    %1937 = vmatprep.subr.mxu0 0.0
    %1938 = vmatpush1.msra.mxu0 0.0
    %1939 = vmatprep.subr.mxu0 0.0
    %1940 = vmatpush1.msra.mxu0 0.0
    %1941 = vmatprep.subr.mxu0 0.0
    %1942 = vmatpush1.msra.mxu0 0.0
    %1943 = vmatprep.subr.mxu0 0.0
    %1944 = vmatpush1.msra.mxu0 0.0
    %1945 = vmatprep.mubr.f32.mxu0 0.0
    %v1946 = vand.u32 %v1443, 4294901760
    %v1947 = vsub.f32 %v1443, %v1946
    %v1948 = vand.u32 %v1947, 4294901760
    %1949 = vmatmul.mubr.f32.gmra.mrb[0].mxu0 %v1948
    %v1950 = vpop.f32.mrb[0].mxu0
    %v1951 = vadd.f32 %v1825, %v1950
    %v1952 = vpop.f32.mrb[0].mxu0
    %1953 = vmatprep.mubr.f32.mxu0 0.0
    %v1954 = vand.u32 %v1446, 4294901760
    %v1955 = vsub.f32 %v1446, %v1954
    %v1956 = vand.u32 %v1955, 4294901760
    %1957 = vmatmul.mubr.f32.gmra.mrb[0].mxu0 %v1956
    %v1958 = vpop.f32.mrb[0].mxu0
    %v1959 = vadd.f32 %v1832, %v1958
    %v1960 = vpop.f32.mrb[0].mxu0
    %1961 = vmatprep.mubr.f32.mxu0 0.0
    %v1962 = vand.u32 %v1449, 4294901760
    %v1963 = vsub.f32 %v1449, %v1962
    %v1964 = vand.u32 %v1963, 4294901760
    %1965 = vmatmul.mubr.f32.gmra.mrb[0].mxu0 %v1964
    %v1966 = vpop.f32.mrb[0].mxu0
    %v1967 = vadd.f32 %v1839, %v1966
    %v1968 = vpop.f32.mrb[0].mxu0
    %1969 = vmatprep.mubr.f32.mxu0 0.0
    %v1970 = vand.u32 %v1452, 4294901760
    %v1971 = vsub.f32 %v1452, %v1970
    %v1972 = vand.u32 %v1971, 4294901760
    %1973 = vmatmul.mubr.f32.gmra.mrb[0].mxu0 %v1972
    %v1974 = vpop.f32.mrb[0].mxu0
    %v1975 = vadd.f32 %v1846, %v1974
    %v1976 = vpop.f32.mrb[0].mxu0
    %1977 = vmatprep.mubr.f32.mxu0 0.0
    %v1978 = vand.u32 %v1455, 4294901760
    %v1979 = vsub.f32 %v1455, %v1978
    %v1980 = vand.u32 %v1979, 4294901760
    %1981 = vmatmul.mubr.f32.gmra.mrb[0].mxu0 %v1980
    %v1982 = vpop.f32.mrb[0].mxu0
    %v1983 = vadd.f32 %v1853, %v1982
    %v1984 = vpop.f32.mrb[0].mxu0
    %1985 = vmatprep.mubr.f32.mxu0 0.0
    %v1986 = vand.u32 %v1458, 4294901760
    %v1987 = vsub.f32 %v1458, %v1986
    %v1988 = vand.u32 %v1987, 4294901760
    %1989 = vmatmul.mubr.f32.gmra.mrb[0].mxu0 %v1988
    %v1990 = vpop.f32.mrb[0].mxu0
    %v1991 = vadd.f32 %v1860, %v1990
    %v1992 = vpop.f32.mrb[0].mxu0
    %1993 = vmatprep.mubr.f32.mxu0 0.0
    %v1994 = vand.u32 %v1461, 4294901760
    %v1995 = vsub.f32 %v1461, %v1994
    %v1996 = vand.u32 %v1995, 4294901760
    %1997 = vmatmul.mubr.f32.gmra.mrb[0].mxu0 %v1996
    %v1998 = vpop.f32.mrb[0].mxu0
    %v1999 = vadd.f32 %v1867, %v1998
    %v2000 = vpop.f32.mrb[0].mxu0
    %2001 = vmatprep.mubr.f32.mxu0 0.0
    %v2002 = vand.u32 %v1464, 4294901760
    %v2003 = vsub.f32 %v1464, %v2002
    %v2004 = vand.u32 %v2003, 4294901760
    %2005 = vmatmul.mubr.f32.gmra.mrb[0].mxu0 %v2004
    %v2006 = vpop.f32.mrb[0].mxu0
    %v2007 = vadd.f32 %v1874, %v2006
    %v2008 = vpop.f32.mrb[0].mxu0
    %2009 = vdwg.mxu0
    %2010 = vmatprep.subr.mxu0 0.0
    %v2011 = vand.u32 %v65, 4294901760
    %v2012 = vsub.f32 %v65, %v2011
    %v2013 = vand.u32 %v2012, 4294901760
    %2014 = vmatpush1.msra.mxu0 %v2013
    %2015 = vmatprep.subr.mxu0 0.0
    %v2016 = vand.u32 %v66, 4294901760
    %v2017 = vsub.f32 %v66, %v2016
    %v2018 = vand.u32 %v2017, 4294901760
    %2019 = vmatpush1.msra.mxu0 %v2018
    %2020 = vmatprep.subr.mxu0 0.0
    %v2021 = vand.u32 %v67, 4294901760
    %v2022 = vsub.f32 %v67, %v2021
    %v2023 = vand.u32 %v2022, 4294901760
    %2024 = vmatpush1.msra.mxu0 %v2023
    %2025 = vmatprep.subr.mxu0 0.0
    %v2026 = vand.u32 %v68, 4294901760
    %v2027 = vsub.f32 %v68, %v2026
    %v2028 = vand.u32 %v2027, 4294901760
    %2029 = vmatpush1.msra.mxu0 %v2028
    %2030 = vmatprep.subr.mxu0 0.0
    %2031 = vmatpush1.msra.mxu0 0.0
    %2032 = vmatprep.subr.mxu0 0.0
    %2033 = vmatpush1.msra.mxu0 0.0
    %2034 = vmatprep.subr.mxu0 0.0
    %2035 = vmatpush1.msra.mxu0 0.0
    %2036 = vmatprep.subr.mxu0 0.0
    %2037 = vmatpush1.msra.mxu0 0.0
    %2038 = vmatprep.subr.mxu0 0.0
    %2039 = vmatpush1.msra.mxu0 0.0
    %2040 = vmatprep.subr.mxu0 0.0
    %2041 = vmatpush1.msra.mxu0 0.0
    %2042 = vmatprep.subr.mxu0 0.0
    %2043 = vmatpush1.msra.mxu0 0.0
    %2044 = vmatprep.subr.mxu0 0.0
    %2045 = vmatpush1.msra.mxu0 0.0
    %2046 = vmatprep.subr.mxu0 0.0
    %2047 = vmatpush1.msra.mxu0 0.0
    %2048 = vmatprep.subr.mxu0 0.0
    %2049 = vmatpush1.msra.mxu0 0.0
    %2050 = vmatprep.subr.mxu0 0.0
    %2051 = vmatpush1.msra.mxu0 0.0
    %2052 = vmatprep.subr.mxu0 0.0
    %2053 = vmatpush1.msra.mxu0 0.0
    %2054 = vmatprep.subr.mxu0 0.0
    %2055 = vmatpush1.msra.mxu0 0.0
    %2056 = vmatprep.subr.mxu0 0.0
    %2057 = vmatpush1.msra.mxu0 0.0
    %2058 = vmatprep.subr.mxu0 0.0
    %2059 = vmatpush1.msra.mxu0 0.0
    %2060 = vmatprep.subr.mxu0 0.0
    %2061 = vmatpush1.msra.mxu0 0.0
    %2062 = vmatprep.subr.mxu0 0.0
    %2063 = vmatpush1.msra.mxu0 0.0
    %2064 = vmatprep.subr.mxu0 0.0
    %2065 = vmatpush1.msra.mxu0 0.0
    %2066 = vmatprep.subr.mxu0 0.0
    %2067 = vmatpush1.msra.mxu0 0.0
    %2068 = vmatprep.subr.mxu0 0.0
    %2069 = vmatpush1.msra.mxu0 0.0
    %2070 = vmatprep.subr.mxu0 0.0
    %2071 = vmatpush1.msra.mxu0 0.0
    %2072 = vmatprep.subr.mxu0 0.0
    %2073 = vmatpush1.msra.mxu0 0.0
    %2074 = vmatprep.subr.mxu0 0.0
    %2075 = vmatpush1.msra.mxu0 0.0
    %2076 = vmatprep.subr.mxu0 0.0
    %2077 = vmatpush1.msra.mxu0 0.0
    %2078 = vmatprep.subr.mxu0 0.0
    %2079 = vmatpush1.msra.mxu0 0.0
    %2080 = vmatprep.subr.mxu0 0.0
    %2081 = vmatpush1.msra.mxu0 0.0
    %2082 = vmatprep.subr.mxu0 0.0
    %2083 = vmatpush1.msra.mxu0 0.0
    %2084 = vmatprep.subr.mxu0 0.0
    %2085 = vmatpush1.msra.mxu0 0.0
    %2086 = vmatprep.mubr.f32.mxu0 0.0
    %v2087 = vand.u32 %v1443, 4294901760
    %2088 = vmatmul.mubr.f32.gmra.mrb[0].mxu0 %v2087
    %v2089 = vpop.f32.mrb[0].mxu0
    %v2090 = vadd.f32 %v1951, %v2089
    %v2091 = vpop.f32.mrb[0].mxu0
    %2092 = vmatprep.mubr.f32.mxu0 0.0
    %v2093 = vand.u32 %v1446, 4294901760
    %2094 = vmatmul.mubr.f32.gmra.mrb[0].mxu0 %v2093
    %v2095 = vpop.f32.mrb[0].mxu0
    %v2096 = vadd.f32 %v1959, %v2095
    %v2097 = vpop.f32.mrb[0].mxu0
    %2098 = vmatprep.mubr.f32.mxu0 0.0
    %v2099 = vand.u32 %v1449, 4294901760
    %2100 = vmatmul.mubr.f32.gmra.mrb[0].mxu0 %v2099
    %v2101 = vpop.f32.mrb[0].mxu0
    %v2102 = vadd.f32 %v1967, %v2101
    %v2103 = vpop.f32.mrb[0].mxu0
    %2104 = vmatprep.mubr.f32.mxu0 0.0
    %v2105 = vand.u32 %v1452, 4294901760
    %2106 = vmatmul.mubr.f32.gmra.mrb[0].mxu0 %v2105
    %v2107 = vpop.f32.mrb[0].mxu0
    %v2108 = vadd.f32 %v1975, %v2107
    %v2109 = vpop.f32.mrb[0].mxu0
    %2110 = vmatprep.mubr.f32.mxu0 0.0
    %v2111 = vand.u32 %v1455, 4294901760
    %2112 = vmatmul.mubr.f32.gmra.mrb[0].mxu0 %v2111
    %v2113 = vpop.f32.mrb[0].mxu0
    %v2114 = vadd.f32 %v1983, %v2113
    %v2115 = vpop.f32.mrb[0].mxu0
    %2116 = vmatprep.mubr.f32.mxu0 0.0
    %v2117 = vand.u32 %v1458, 4294901760
    %2118 = vmatmul.mubr.f32.gmra.mrb[0].mxu0 %v2117
    %v2119 = vpop.f32.mrb[0].mxu0
    %v2120 = vadd.f32 %v1991, %v2119
    %v2121 = vpop.f32.mrb[0].mxu0
    %2122 = vmatprep.mubr.f32.mxu0 0.0
    %v2123 = vand.u32 %v1461, 4294901760
    %2124 = vmatmul.mubr.f32.gmra.mrb[0].mxu0 %v2123
    %v2125 = vpop.f32.mrb[0].mxu0
    %v2126 = vadd.f32 %v1999, %v2125
    %v2127 = vpop.f32.mrb[0].mxu0
    %2128 = vmatprep.mubr.f32.mxu0 0.0
    %v2129 = vand.u32 %v1464, 4294901760
    %2130 = vmatmul.mubr.f32.gmra.mrb[0].mxu0 %v2129
    %v2131 = vpop.f32.mrb[0].mxu0
    %v2132 = vadd.f32 %v2007, %v2131
    %v2133 = vpop.f32.mrb[0].mxu0
    %2134 = vdwg.mxu0
    %2135 = vmatprep.subr.mxu0 0.0
    %v2136 = vand.u32 %v65, 4294901760
    %2137 = vmatpush1.msra.mxu0 %v2136
    %2138 = vmatprep.subr.mxu0 0.0
    %v2139 = vand.u32 %v66, 4294901760
    %2140 = vmatpush1.msra.mxu0 %v2139
    %2141 = vmatprep.subr.mxu0 0.0
    %v2142 = vand.u32 %v67, 4294901760
    %2143 = vmatpush1.msra.mxu0 %v2142
    %2144 = vmatprep.subr.mxu0 0.0
    %v2145 = vand.u32 %v68, 4294901760
    %2146 = vmatpush1.msra.mxu0 %v2145
    %2147 = vmatprep.subr.mxu0 0.0
    %2148 = vmatpush1.msra.mxu0 0.0
    %2149 = vmatprep.subr.mxu0 0.0
    %2150 = vmatpush1.msra.mxu0 0.0
    %2151 = vmatprep.subr.mxu0 0.0
    %2152 = vmatpush1.msra.mxu0 0.0
    %2153 = vmatprep.subr.mxu0 0.0
    %2154 = vmatpush1.msra.mxu0 0.0
    %2155 = vmatprep.subr.mxu0 0.0
    %2156 = vmatpush1.msra.mxu0 0.0
    %2157 = vmatprep.subr.mxu0 0.0
    %2158 = vmatpush1.msra.mxu0 0.0
    %2159 = vmatprep.subr.mxu0 0.0
    %2160 = vmatpush1.msra.mxu0 0.0
    %2161 = vmatprep.subr.mxu0 0.0
    %2162 = vmatpush1.msra.mxu0 0.0
    %2163 = vmatprep.subr.mxu0 0.0
    %2164 = vmatpush1.msra.mxu0 0.0
    %2165 = vmatprep.subr.mxu0 0.0
    %2166 = vmatpush1.msra.mxu0 0.0
    %2167 = vmatprep.subr.mxu0 0.0
    %2168 = vmatpush1.msra.mxu0 0.0
    %2169 = vmatprep.subr.mxu0 0.0
    %2170 = vmatpush1.msra.mxu0 0.0
    %2171 = vmatprep.subr.mxu0 0.0
    %2172 = vmatpush1.msra.mxu0 0.0
    %2173 = vmatprep.subr.mxu0 0.0
    %2174 = vmatpush1.msra.mxu0 0.0
    %2175 = vmatprep.subr.mxu0 0.0
    %2176 = vmatpush1.msra.mxu0 0.0
    %2177 = vmatprep.subr.mxu0 0.0
    %2178 = vmatpush1.msra.mxu0 0.0
    %2179 = vmatprep.subr.mxu0 0.0
    %2180 = vmatpush1.msra.mxu0 0.0
    %2181 = vmatprep.subr.mxu0 0.0
    %2182 = vmatpush1.msra.mxu0 0.0
    %2183 = vmatprep.subr.mxu0 0.0
    %2184 = vmatpush1.msra.mxu0 0.0
    %2185 = vmatprep.subr.mxu0 0.0
    %2186 = vmatpush1.msra.mxu0 0.0
    %2187 = vmatprep.subr.mxu0 0.0
    %2188 = vmatpush1.msra.mxu0 0.0
    %2189 = vmatprep.subr.mxu0 0.0
    %2190 = vmatpush1.msra.mxu0 0.0
    %2191 = vmatprep.subr.mxu0 0.0
    %2192 = vmatpush1.msra.mxu0 0.0
    %2193 = vmatprep.subr.mxu0 0.0
    %2194 = vmatpush1.msra.mxu0 0.0
    %2195 = vmatprep.subr.mxu0 0.0
    %2196 = vmatpush1.msra.mxu0 0.0
    %2197 = vmatprep.subr.mxu0 0.0
    %2198 = vmatpush1.msra.mxu0 0.0
    %2199 = vmatprep.subr.mxu0 0.0
    %2200 = vmatpush1.msra.mxu0 0.0
    %2201 = vmatprep.subr.mxu0 0.0
    %2202 = vmatpush1.msra.mxu0 0.0
    %2203 = vmatprep.mubr.f32.mxu0 0.0
    %v2204 = vand.u32 %v1443, 4294901760
    %2205 = vmatmul.mubr.f32.gmra.mrb[0].mxu0 %v2204
    %v2206 = vpop.f32.mrb[0].mxu0
    %v2207 = vadd.f32 %v2090, %v2206
    %v2208 = vpop.f32.mrb[0].mxu0
    %2209 = vmatprep.mubr.f32.mxu0 0.0
    %v2210 = vand.u32 %v1446, 4294901760
    %2211 = vmatmul.mubr.f32.gmra.mrb[0].mxu0 %v2210
    %v2212 = vpop.f32.mrb[0].mxu0
    %v2213 = vadd.f32 %v2096, %v2212
    %v2214 = vpop.f32.mrb[0].mxu0
    %2215 = vmatprep.mubr.f32.mxu0 0.0
    %v2216 = vand.u32 %v1449, 4294901760
    %2217 = vmatmul.mubr.f32.gmra.mrb[0].mxu0 %v2216
    %v2218 = vpop.f32.mrb[0].mxu0
    %v2219 = vadd.f32 %v2102, %v2218
    %v2220 = vpop.f32.mrb[0].mxu0
    %2221 = vmatprep.mubr.f32.mxu0 0.0
    %v2222 = vand.u32 %v1452, 4294901760
    %2223 = vmatmul.mubr.f32.gmra.mrb[0].mxu0 %v2222
    %v2224 = vpop.f32.mrb[0].mxu0
    %v2225 = vadd.f32 %v2108, %v2224
    %v2226 = vpop.f32.mrb[0].mxu0
    %2227 = vmatprep.mubr.f32.mxu0 0.0
    %v2228 = vand.u32 %v1455, 4294901760
    %2229 = vmatmul.mubr.f32.gmra.mrb[0].mxu0 %v2228
    %v2230 = vpop.f32.mrb[0].mxu0
    %v2231 = vadd.f32 %v2114, %v2230
    %v2232 = vpop.f32.mrb[0].mxu0
    %2233 = vmatprep.mubr.f32.mxu0 0.0
    %v2234 = vand.u32 %v1458, 4294901760
    %2235 = vmatmul.mubr.f32.gmra.mrb[0].mxu0 %v2234
    %v2236 = vpop.f32.mrb[0].mxu0
    %v2237 = vadd.f32 %v2120, %v2236
    %v2238 = vpop.f32.mrb[0].mxu0
    %2239 = vmatprep.mubr.f32.mxu0 0.0
    %v2240 = vand.u32 %v1461, 4294901760
    %2241 = vmatmul.mubr.f32.gmra.mrb[0].mxu0 %v2240
    %v2242 = vpop.f32.mrb[0].mxu0
    %v2243 = vadd.f32 %v2126, %v2242
    %v2244 = vpop.f32.mrb[0].mxu0
    %2245 = vmatprep.mubr.f32.mxu0 0.0
    %v2246 = vand.u32 %v1464, 4294901760
    %2247 = vmatmul.mubr.f32.gmra.mrb[0].mxu0 %v2246
    %v2248 = vpop.f32.mrb[0].mxu0
    %v2249 = vadd.f32 %v2132, %v2248
    %v2250 = vpop.f32.mrb[0].mxu0
    %2251 = vdwg.mxu0
    %v2252 = vsel %vm874, %v2207, 0.0
    %v2253 = vrot.slane %v2252, 4
    %v2254 = vadd.f32 %v2252, %v2253
    %v2255 = vrot.slane %v2254, 2
    %v2256 = vadd.f32 %v2254, %v2255
    %v2257 = vrot.slane %v2256, 1
    %v2258 = vadd.f32 %v2256, %v2257
    %v2259 = vsel %vm874, %v2213, 0.0
    %v2260 = vrot.slane %v2259, 4
    %v2261 = vadd.f32 %v2259, %v2260
    %v2262 = vrot.slane %v2261, 2
    %v2263 = vadd.f32 %v2261, %v2262
    %v2264 = vrot.slane %v2263, 1
    %v2265 = vadd.f32 %v2263, %v2264
    %v2266 = vsel %vm874, %v2219, 0.0
    %v2267 = vrot.slane %v2266, 4
    %v2268 = vadd.f32 %v2266, %v2267
    %v2269 = vrot.slane %v2268, 2
    %v2270 = vadd.f32 %v2268, %v2269
    %v2271 = vrot.slane %v2270, 1
    %v2272 = vadd.f32 %v2270, %v2271
    %v2273 = vsel %vm874, %v2225, 0.0
    %v2274 = vrot.slane %v2273, 4
    %v2275 = vadd.f32 %v2273, %v2274
    %v2276 = vrot.slane %v2275, 2
    %v2277 = vadd.f32 %v2275, %v2276
    %v2278 = vrot.slane %v2277, 1
    %v2279 = vadd.f32 %v2277, %v2278
    %v2280 = vsel %vm874, %v2231, 0.0
    %v2281 = vrot.slane %v2280, 4
    %v2282 = vadd.f32 %v2280, %v2281
    %v2283 = vrot.slane %v2282, 2
    %v2284 = vadd.f32 %v2282, %v2283
    %v2285 = vrot.slane %v2284, 1
    %v2286 = vadd.f32 %v2284, %v2285
    %v2287 = vsel %vm874, %v2237, 0.0
    %v2288 = vrot.slane %v2287, 4
    %v2289 = vadd.f32 %v2287, %v2288
    %v2290 = vrot.slane %v2289, 2
    %v2291 = vadd.f32 %v2289, %v2290
    %v2292 = vrot.slane %v2291, 1
    %v2293 = vadd.f32 %v2291, %v2292
    %v2294 = vsel %vm874, %v2243, 0.0
    %v2295 = vrot.slane %v2294, 4
    %v2296 = vadd.f32 %v2294, %v2295
    %v2297 = vrot.slane %v2296, 2
    %v2298 = vadd.f32 %v2296, %v2297
    %v2299 = vrot.slane %v2298, 1
    %v2300 = vadd.f32 %v2298, %v2299
    %v2301 = vsel %vm874, %v2249, 0.0
    %v2302 = vrot.slane %v2301, 4
    %v2303 = vadd.f32 %v2301, %v2302
    %v2304 = vrot.slane %v2303, 2
    %v2305 = vadd.f32 %v2303, %v2304
    %v2306 = vrot.slane %v2305, 1
    %v2307 = vadd.f32 %v2305, %v2306
    %v2308 = vmul.f32 %v2258, 0.125
    %v2309 = vmul.f32 %v2265, 0.125
    %v2310 = vmul.f32 %v2272, 0.125
    %v2311 = vmul.f32 %v2279, 0.125
    %v2312 = vmul.f32 %v2286, 0.125
    %v2313 = vmul.f32 %v2293, 0.125
    %v2314 = vmul.f32 %v2300, 0.125
    %v2315 = vmul.f32 %v2307, 0.125
    %v2316 = vmul.f32 %v2207, %v2207
    %v2317 = vmul.f32 %v2213, %v2213
    %v2318 = vmul.f32 %v2219, %v2219
    %v2319 = vmul.f32 %v2225, %v2225
    %v2320 = vmul.f32 %v2231, %v2231
    %v2321 = vmul.f32 %v2237, %v2237
    %v2322 = vmul.f32 %v2243, %v2243
    %v2323 = vmul.f32 %v2249, %v2249
    %v2324 = vsel %vm874, %v2316, 0.0
    %v2325 = vrot.slane %v2324, 4
    %v2326 = vadd.f32 %v2324, %v2325
    %v2327 = vrot.slane %v2326, 2
    %v2328 = vadd.f32 %v2326, %v2327
    %v2329 = vrot.slane %v2328, 1
    %v2330 = vadd.f32 %v2328, %v2329
    %v2331 = vsel %vm874, %v2317, 0.0
    %v2332 = vrot.slane %v2331, 4
    %v2333 = vadd.f32 %v2331, %v2332
    %v2334 = vrot.slane %v2333, 2
    %v2335 = vadd.f32 %v2333, %v2334
    %v2336 = vrot.slane %v2335, 1
    %v2337 = vadd.f32 %v2335, %v2336
    %v2338 = vsel %vm874, %v2318, 0.0
    %v2339 = vrot.slane %v2338, 4
    %v2340 = vadd.f32 %v2338, %v2339
    %v2341 = vrot.slane %v2340, 2
    %v2342 = vadd.f32 %v2340, %v2341
    %v2343 = vrot.slane %v2342, 1
    %v2344 = vadd.f32 %v2342, %v2343
    %v2345 = vsel %vm874, %v2319, 0.0
    %v2346 = vrot.slane %v2345, 4
    %v2347 = vadd.f32 %v2345, %v2346
    %v2348 = vrot.slane %v2347, 2
    %v2349 = vadd.f32 %v2347, %v2348
    %v2350 = vrot.slane %v2349, 1
    %v2351 = vadd.f32 %v2349, %v2350
    %v2352 = vsel %vm874, %v2320, 0.0
    %v2353 = vrot.slane %v2352, 4
    %v2354 = vadd.f32 %v2352, %v2353
    %v2355 = vrot.slane %v2354, 2
    %v2356 = vadd.f32 %v2354, %v2355
    %v2357 = vrot.slane %v2356, 1
    %v2358 = vadd.f32 %v2356, %v2357
    %v2359 = vsel %vm874, %v2321, 0.0
    %v2360 = vrot.slane %v2359, 4
    %v2361 = vadd.f32 %v2359, %v2360
    %v2362 = vrot.slane %v2361, 2
    %v2363 = vadd.f32 %v2361, %v2362
    %v2364 = vrot.slane %v2363, 1
    %v2365 = vadd.f32 %v2363, %v2364
    %v2366 = vsel %vm874, %v2322, 0.0
    %v2367 = vrot.slane %v2366, 4
    %v2368 = vadd.f32 %v2366, %v2367
    %v2369 = vrot.slane %v2368, 2
    %v2370 = vadd.f32 %v2368, %v2369
    %v2371 = vrot.slane %v2370, 1
    %v2372 = vadd.f32 %v2370, %v2371
    %v2373 = vsel %vm874, %v2323, 0.0
    %v2374 = vrot.slane %v2373, 4
    %v2375 = vadd.f32 %v2373, %v2374
    %v2376 = vrot.slane %v2375, 2
    %v2377 = vadd.f32 %v2375, %v2376
    %v2378 = vrot.slane %v2377, 1
    %v2379 = vadd.f32 %v2377, %v2378
    %v2380 = vmul.f32 %v2330, 0.125
    %v2381 = vmul.f32 %v2337, 0.125
    %v2382 = vmul.f32 %v2344, 0.125
    %v2383 = vmul.f32 %v2351, 0.125
    %v2384 = vmul.f32 %v2358, 0.125
    %v2385 = vmul.f32 %v2365, 0.125
    %v2386 = vmul.f32 %v2372, 0.125
    %v2387 = vmul.f32 %v2379, 0.125
    %v2388 = vmul.f32 %v2308, %v2308
    %v2389 = vmul.f32 %v2309, %v2309
    %v2390 = vmul.f32 %v2310, %v2310
    %v2391 = vmul.f32 %v2311, %v2311
    %v2392 = vmul.f32 %v2312, %v2312
    %v2393 = vmul.f32 %v2313, %v2313
    %v2394 = vmul.f32 %v2314, %v2314
    %v2395 = vmul.f32 %v2315, %v2315
    %v2396 = vsub.f32 %v2380, %v2388
    %v2397 = vsub.f32 %v2381, %v2389
    %v2398 = vsub.f32 %v2382, %v2390
    %v2399 = vsub.f32 %v2383, %v2391
    %v2400 = vsub.f32 %v2384, %v2392
    %v2401 = vsub.f32 %v2385, %v2393
    %v2402 = vsub.f32 %v2386, %v2394
    %v2403 = vsub.f32 %v2387, %v2395
    %v2404 = vadd.f32 %v2396, 1e-05
    %v2405 = vadd.f32 %v2397, 1e-05
    %v2406 = vadd.f32 %v2398, 1e-05
    %v2407 = vadd.f32 %v2399, 1e-05
    %v2408 = vadd.f32 %v2400, 1e-05
    %v2409 = vadd.f32 %v2401, 1e-05
    %v2410 = vadd.f32 %v2402, 1e-05
    %v2411 = vadd.f32 %v2403, 1e-05
    %v2412 = vrsqrt.pop %v2404
    %v2413 = vrsqrt.pop %v2405
    %v2414 = vrsqrt.pop %v2406
    %v2415 = vrsqrt.pop %v2407
    %v2416 = vrsqrt.pop %v2408
    %v2417 = vrsqrt.pop %v2409
    %v2418 = vrsqrt.pop %v2410
    %v2419 = vrsqrt.pop %v2411
    %v2420 = vmul.f32 %v71, %v2412
    %v2421 = vmul.f32 %v71, %v2413
    %v2422 = vmul.f32 %v71, %v2414
    %v2423 = vmul.f32 %v71, %v2415
    %v2424 = vmul.f32 %v71, %v2416
    %v2425 = vmul.f32 %v71, %v2417
    %v2426 = vmul.f32 %v71, %v2418
    %v2427 = vmul.f32 %v71, %v2419
    %v2428 = vsub.f32 %v2207, %v2308
    %v2429 = vsub.f32 %v2213, %v2309
    %v2430 = vsub.f32 %v2219, %v2310
    %v2431 = vsub.f32 %v2225, %v2311
    %v2432 = vsub.f32 %v2231, %v2312
    %v2433 = vsub.f32 %v2237, %v2313
    %v2434 = vsub.f32 %v2243, %v2314
    %v2435 = vsub.f32 %v2249, %v2315
    %v2444 = vlaneseq
    %v2445 = vshrl.u32 %v2444, 7
    %v2446 = vsub.s32 0, %v2445
    %v2447 = vrot.slane %v2420, %v2446
    %v2448 = vlaneseq
    %v2449 = vshrl.u32 %v2448, 7
    %v2450 = vsub.s32 0, %v2449
    %v2451 = vrot.slane %v2421, %v2450
    %v2452 = vlaneseq
    %v2453 = vshrl.u32 %v2452, 7
    %v2454 = vsub.s32 0, %v2453
    %v2455 = vrot.slane %v2422, %v2454
    %v2456 = vlaneseq
    %v2457 = vshrl.u32 %v2456, 7
    %v2458 = vsub.s32 0, %v2457
    %v2459 = vrot.slane %v2423, %v2458
    %v2460 = vlaneseq
    %v2461 = vshrl.u32 %v2460, 7
    %v2462 = vsub.s32 0, %v2461
    %v2463 = vrot.slane %v2424, %v2462
    %v2464 = vlaneseq
    %v2465 = vshrl.u32 %v2464, 7
    %v2466 = vsub.s32 0, %v2465
    %v2467 = vrot.slane %v2425, %v2466
    %v2468 = vlaneseq
    %v2469 = vshrl.u32 %v2468, 7
    %v2470 = vsub.s32 0, %v2469
    %v2471 = vrot.slane %v2426, %v2470
    %v2472 = vlaneseq
    %v2473 = vshrl.u32 %v2472, 7
    %v2474 = vsub.s32 0, %v2473
    %v2475 = vrot.slane %v2427, %v2474
    %v2484 = vmul.f32 %v2428, %v2447
    %v2485 = vmul.f32 %v2429, %v2451
    %v2486 = vmul.f32 %v2430, %v2455
    %v2487 = vmul.f32 %v2431, %v2459
    %v2488 = vmul.f32 %v2432, %v2463
    %v2489 = vmul.f32 %v2433, %v2467
    %v2490 = vmul.f32 %v2434, %v2471
    %v2491 = vmul.f32 %v2435, %v2475
    %v2493 = vlaneseq
    %v2494 = vshrl.u32 %v2493, 7
    %v2495 = vsub.s32 0, %v2494
    %v2496 = vrot.slane %v72, %v2495
    %v2498 = vadd.f32 %v2484, %v2496
    %v2499 = vadd.f32 %v2485, %v2496
    %v2500 = vadd.f32 %v2486, %v2496
    %v2501 = vadd.f32 %v2487, %v2496
    %v2502 = vadd.f32 %v2488, %v2496
    %v2503 = vadd.f32 %v2489, %v2496
    %v2504 = vadd.f32 %v2490, %v2496
    %v2505 = vadd.f32 %v2491, %v2496
    %v2507 = vlaneseq
    %v2508 = vshrl.u32 %v2507, 7
    %v2509 = vsub.s32 0, %v2508
    %v2510 = vrot.slane %v70, %v2509
    %v2512 = vmul.f32 %v2510, 0.0
    %v2513 = vadd.f32 %v2498, %v2512
    %v2514 = vmax.f32 %v2513, 0.0
    %v2515 = vsel %vm874, %v2514, 0.0
    %v2516 = vrot.slane %v2515, 4
    %v2517 = vadd.f32 %v2515, %v2516
    %v2518 = vrot.slane %v2517, 2
    %v2519 = vadd.f32 %v2517, %v2518
    %v2520 = vrot.slane %v2519, 1
    %v2521 = vadd.f32 %v2519, %v2520
    %v2522 = vmul.f32 %v2521, 0.125
    %v2523 = vmul.f32 %v2514, %v2514
    %v2524 = vsel %vm874, %v2523, 0.0
    %v2525 = vrot.slane %v2524, 4
    %v2526 = vadd.f32 %v2524, %v2525
    %v2527 = vrot.slane %v2526, 2
    %v2528 = vadd.f32 %v2526, %v2527
    %v2529 = vrot.slane %v2528, 1
    %v2530 = vadd.f32 %v2528, %v2529
    %v2531 = vmul.f32 %v2530, 0.125
    %v2532 = vmul.f32 %v2522, %v2522
    %v2533 = vsub.f32 %v2531, %v2532
    %v2534 = vadd.f32 %v2533, 1e-05
    %v2535 = vrsqrt.pop %v2534
    %v2536 = vmul.f32 %v73, %v2535
    %v2537 = vsub.f32 %v2514, %v2522
    %v2539 = vlaneseq
    %v2540 = vshrl.u32 %v2539, 7
    %v2541 = vsub.s32 0, %v2540
    %v2542 = vrot.slane %v2536, %v2541
    %v2544 = vmul.f32 %v2537, %v2542
    %v2546 = vlaneseq
    %v2547 = vshrl.u32 %v2546, 7
    %v2548 = vsub.s32 0, %v2547
    %v2549 = vrot.slane %v74, %v2548
    %v2551 = vadd.f32 %v2544, %v2549
    %2552 = vst.msk [vmem:[#allocation2] sm:$0xff] %vm874, %v2551
    %v2553 = vmul.f32 %v2551, %v2510
    %v2554 = vadd.f32 %v2499, %v2553
    %v2555 = vmax.f32 %v2554, 0.0
    %v2556 = vsel %vm874, %v2555, 0.0
    %v2557 = vrot.slane %v2556, 4
    %v2558 = vadd.f32 %v2556, %v2557
    %v2559 = vrot.slane %v2558, 2
    %v2560 = vadd.f32 %v2558, %v2559
    %v2561 = vrot.slane %v2560, 1
    %v2562 = vadd.f32 %v2560, %v2561
    %v2563 = vmul.f32 %v2562, 0.125
    %v2564 = vmul.f32 %v2555, %v2555
    %v2565 = vsel %vm874, %v2564, 0.0
    %v2566 = vrot.slane %v2565, 4
    %v2567 = vadd.f32 %v2565, %v2566
    %v2568 = vrot.slane %v2567, 2
    %v2569 = vadd.f32 %v2567, %v2568
    %v2570 = vrot.slane %v2569, 1
    %v2571 = vadd.f32 %v2569, %v2570
    %v2572 = vmul.f32 %v2571, 0.125
    %v2573 = vmul.f32 %v2563, %v2563
    %v2574 = vsub.f32 %v2572, %v2573
    %v2575 = vadd.f32 %v2574, 1e-05
    %v2576 = vrsqrt.pop %v2575
    %v2577 = vmul.f32 %v73, %v2576
    %v2578 = vsub.f32 %v2555, %v2563
    %v2580 = vlaneseq
    %v2581 = vshrl.u32 %v2580, 7
    %v2582 = vsub.s32 0, %v2581
    %v2583 = vrot.slane %v2577, %v2582
    %v2585 = vmul.f32 %v2578, %v2583
    %v2586 = vadd.f32 %v2585, %v2549
    %2587 = vst.msk [vmem:[%s1210] sm:$0xff] %vm874, %v2586
    %v2588 = vmul.f32 %v2586, %v2510
    %v2589 = vadd.f32 %v2500, %v2588
    %v2590 = vmax.f32 %v2589, 0.0
    %v2591 = vsel %vm874, %v2590, 0.0
    %v2592 = vrot.slane %v2591, 4
    %v2593 = vadd.f32 %v2591, %v2592
    %v2594 = vrot.slane %v2593, 2
    %v2595 = vadd.f32 %v2593, %v2594
    %v2596 = vrot.slane %v2595, 1
    %v2597 = vadd.f32 %v2595, %v2596
    %v2598 = vmul.f32 %v2597, 0.125
    %v2599 = vmul.f32 %v2590, %v2590
    %v2600 = vsel %vm874, %v2599, 0.0
    %v2601 = vrot.slane %v2600, 4
    %v2602 = vadd.f32 %v2600, %v2601
    %v2603 = vrot.slane %v2602, 2
    %v2604 = vadd.f32 %v2602, %v2603
    %v2605 = vrot.slane %v2604, 1
    %v2606 = vadd.f32 %v2604, %v2605
    %v2607 = vmul.f32 %v2606, 0.125
    %v2608 = vmul.f32 %v2598, %v2598
    %v2609 = vsub.f32 %v2607, %v2608
    %v2610 = vadd.f32 %v2609, 1e-05
    %v2611 = vrsqrt.pop %v2610
    %v2612 = vmul.f32 %v73, %v2611
    %v2613 = vsub.f32 %v2590, %v2598
    %v2615 = vlaneseq
    %v2616 = vshrl.u32 %v2615, 7
    %v2617 = vsub.s32 0, %v2616
    %v2618 = vrot.slane %v2612, %v2617
    %v2620 = vmul.f32 %v2613, %v2618
    %v2621 = vadd.f32 %v2620, %v2549
    %2622 = vst.msk [vmem:[%s1246] sm:$0xff] %vm874, %v2621
    %v2623 = vmul.f32 %v2621, %v2510
    %v2624 = vadd.f32 %v2501, %v2623
    %v2625 = vmax.f32 %v2624, 0.0
    %v2626 = vsel %vm874, %v2625, 0.0
    %v2627 = vrot.slane %v2626, 4
    %v2628 = vadd.f32 %v2626, %v2627
    %v2629 = vrot.slane %v2628, 2
    %v2630 = vadd.f32 %v2628, %v2629
    %v2631 = vrot.slane %v2630, 1
    %v2632 = vadd.f32 %v2630, %v2631
    %v2633 = vmul.f32 %v2632, 0.125
    %v2634 = vmul.f32 %v2625, %v2625
    %v2635 = vsel %vm874, %v2634, 0.0
    %v2636 = vrot.slane %v2635, 4
    %v2637 = vadd.f32 %v2635, %v2636
    %v2638 = vrot.slane %v2637, 2
    %v2639 = vadd.f32 %v2637, %v2638
    %v2640 = vrot.slane %v2639, 1
    %v2641 = vadd.f32 %v2639, %v2640
    %v2642 = vmul.f32 %v2641, 0.125
    %v2643 = vmul.f32 %v2633, %v2633
    %v2644 = vsub.f32 %v2642, %v2643
    %v2645 = vadd.f32 %v2644, 1e-05
    %v2646 = vrsqrt.pop %v2645
    %v2647 = vmul.f32 %v73, %v2646
    %v2648 = vsub.f32 %v2625, %v2633
    %v2650 = vlaneseq
    %v2651 = vshrl.u32 %v2650, 7
    %v2652 = vsub.s32 0, %v2651
    %v2653 = vrot.slane %v2647, %v2652
    %v2655 = vmul.f32 %v2648, %v2653
    %v2656 = vadd.f32 %v2655, %v2549
    %2657 = vst.msk [vmem:[%s1282] sm:$0xff] %vm874, %v2656
    %v2658 = vmul.f32 %v2656, %v2510
    %v2659 = vadd.f32 %v2502, %v2658
    %v2660 = vmax.f32 %v2659, 0.0
    %v2661 = vsel %vm874, %v2660, 0.0
    %v2662 = vrot.slane %v2661, 4
    %v2663 = vadd.f32 %v2661, %v2662
    %v2664 = vrot.slane %v2663, 2
    %v2665 = vadd.f32 %v2663, %v2664
    %v2666 = vrot.slane %v2665, 1
    %v2667 = vadd.f32 %v2665, %v2666
    %v2668 = vmul.f32 %v2667, 0.125
    %v2669 = vmul.f32 %v2660, %v2660
    %v2670 = vsel %vm874, %v2669, 0.0
    %v2671 = vrot.slane %v2670, 4
    %v2672 = vadd.f32 %v2670, %v2671
    %v2673 = vrot.slane %v2672, 2
    %v2674 = vadd.f32 %v2672, %v2673
    %v2675 = vrot.slane %v2674, 1
    %v2676 = vadd.f32 %v2674, %v2675
    %v2677 = vmul.f32 %v2676, 0.125
    %v2678 = vmul.f32 %v2668, %v2668
    %v2679 = vsub.f32 %v2677, %v2678
    %v2680 = vadd.f32 %v2679, 1e-05
    %v2681 = vrsqrt.pop %v2680
    %v2682 = vmul.f32 %v73, %v2681
    %v2683 = vsub.f32 %v2660, %v2668
    %v2685 = vlaneseq
    %v2686 = vshrl.u32 %v2685, 7
    %v2687 = vsub.s32 0, %v2686
    %v2688 = vrot.slane %v2682, %v2687
    %v2690 = vmul.f32 %v2683, %v2688
    %v2691 = vadd.f32 %v2690, %v2549
    %2692 = vst.msk [vmem:[%s1318] sm:$0xff] %vm874, %v2691
    %v2693 = vmul.f32 %v2691, %v2510
    %v2694 = vadd.f32 %v2503, %v2693
    %v2695 = vmax.f32 %v2694, 0.0
    %v2696 = vsel %vm874, %v2695, 0.0
    %v2697 = vrot.slane %v2696, 4
    %v2698 = vadd.f32 %v2696, %v2697
    %v2699 = vrot.slane %v2698, 2
    %v2700 = vadd.f32 %v2698, %v2699
    %v2701 = vrot.slane %v2700, 1
    %v2702 = vadd.f32 %v2700, %v2701
    %v2703 = vmul.f32 %v2702, 0.125
    %v2704 = vmul.f32 %v2695, %v2695
    %v2705 = vsel %vm874, %v2704, 0.0
    %v2706 = vrot.slane %v2705, 4
    %v2707 = vadd.f32 %v2705, %v2706
    %v2708 = vrot.slane %v2707, 2
    %v2709 = vadd.f32 %v2707, %v2708
    %v2710 = vrot.slane %v2709, 1
    %v2711 = vadd.f32 %v2709, %v2710
    %v2712 = vmul.f32 %v2711, 0.125
    %v2713 = vmul.f32 %v2703, %v2703
    %v2714 = vsub.f32 %v2712, %v2713
    %v2715 = vadd.f32 %v2714, 1e-05
    %v2716 = vrsqrt.pop %v2715
    %v2717 = vmul.f32 %v73, %v2716
    %v2718 = vsub.f32 %v2695, %v2703
    %v2720 = vlaneseq
    %v2721 = vshrl.u32 %v2720, 7
    %v2722 = vsub.s32 0, %v2721
    %v2723 = vrot.slane %v2717, %v2722
    %v2725 = vmul.f32 %v2718, %v2723
    %v2726 = vadd.f32 %v2725, %v2549
    %2727 = vst.msk [vmem:[%s1354] sm:$0xff] %vm874, %v2726
    %v2728 = vmul.f32 %v2726, %v2510
    %v2729 = vadd.f32 %v2504, %v2728
    %v2730 = vmax.f32 %v2729, 0.0
    %v2731 = vsel %vm874, %v2730, 0.0
    %v2732 = vrot.slane %v2731, 4
    %v2733 = vadd.f32 %v2731, %v2732
    %v2734 = vrot.slane %v2733, 2
    %v2735 = vadd.f32 %v2733, %v2734
    %v2736 = vrot.slane %v2735, 1
    %v2737 = vadd.f32 %v2735, %v2736
    %v2738 = vmul.f32 %v2737, 0.125
    %v2739 = vmul.f32 %v2730, %v2730
    %v2740 = vsel %vm874, %v2739, 0.0
    %v2741 = vrot.slane %v2740, 4
    %v2742 = vadd.f32 %v2740, %v2741
    %v2743 = vrot.slane %v2742, 2
    %v2744 = vadd.f32 %v2742, %v2743
    %v2745 = vrot.slane %v2744, 1
    %v2746 = vadd.f32 %v2744, %v2745
    %v2747 = vmul.f32 %v2746, 0.125
    %v2748 = vmul.f32 %v2738, %v2738
    %v2749 = vsub.f32 %v2747, %v2748
    %v2750 = vadd.f32 %v2749, 1e-05
    %v2751 = vrsqrt.pop %v2750
    %v2752 = vmul.f32 %v73, %v2751
    %v2753 = vsub.f32 %v2730, %v2738
    %v2755 = vlaneseq
    %v2756 = vshrl.u32 %v2755, 7
    %v2757 = vsub.s32 0, %v2756
    %v2758 = vrot.slane %v2752, %v2757
    %v2760 = vmul.f32 %v2753, %v2758
    %v2761 = vadd.f32 %v2760, %v2549
    %2762 = vst.msk [vmem:[%s1390] sm:$0xff] %vm874, %v2761
    %v2763 = vmul.f32 %v2761, %v2510
    %v2764 = vadd.f32 %v2505, %v2763
    %v2765 = vmax.f32 %v2764, 0.0
    %v2766 = vsel %vm874, %v2765, 0.0
    %v2767 = vrot.slane %v2766, 4
    %v2768 = vadd.f32 %v2766, %v2767
    %v2769 = vrot.slane %v2768, 2
    %v2770 = vadd.f32 %v2768, %v2769
    %v2771 = vrot.slane %v2770, 1
    %v2772 = vadd.f32 %v2770, %v2771
    %v2773 = vmul.f32 %v2772, 0.125
    %v2774 = vmul.f32 %v2765, %v2765
    %v2775 = vsel %vm874, %v2774, 0.0
    %v2776 = vrot.slane %v2775, 4
    %v2777 = vadd.f32 %v2775, %v2776
    %v2778 = vrot.slane %v2777, 2
    %v2779 = vadd.f32 %v2777, %v2778
    %v2780 = vrot.slane %v2779, 1
    %v2781 = vadd.f32 %v2779, %v2780
    %v2782 = vmul.f32 %v2781, 0.125
    %v2783 = vmul.f32 %v2773, %v2773
    %v2784 = vsub.f32 %v2782, %v2783
    %v2785 = vadd.f32 %v2784, 1e-05
    %v2786 = vrsqrt.pop %v2785
    %v2787 = vmul.f32 %v73, %v2786
    %v2788 = vsub.f32 %v2765, %v2773
    %v2790 = vlaneseq
    %v2791 = vshrl.u32 %v2790, 7
    %v2792 = vsub.s32 0, %v2791
    %v2793 = vrot.slane %v2787, %v2792
    %v2795 = vmul.f32 %v2788, %v2793
    %v2796 = vadd.f32 %v2795, %v2549
    %2797 = vst.msk [vmem:[%s1426] sm:$0xff] %vm874, %v2796
    %v2798 = vld [vmem:[#allocation2] sm:$0xff]
    %v2799 = vld [vmem:[#allocation2 + $0x8] sm:$0xff]
    %v2800 = vld [vmem:[#allocation2 + $0x10] sm:$0xff]
    %v2801 = vld [vmem:[#allocation2 + $0x18] sm:$0xff]
    %v2802 = vld [vmem:[#allocation2 + $0x20] sm:$0xff]
    %v2803 = vld [vmem:[#allocation2 + $0x28] sm:$0xff]
    %v2804 = vld [vmem:[#allocation2 + $0x30] sm:$0xff]
    %v2805 = vld [vmem:[#allocation2 + $0x38] sm:$0xff]
    %v2807 = vsel %vm874, %v2798, 0
    %v2810 = vsel %vm874, %v2799, 0
    %v2813 = vsel %vm874, %v2800, 0
    %v2816 = vsel %vm874, %v2801, 0
    %v2819 = vsel %vm874, %v2802, 0
    %v2822 = vsel %vm874, %v2803, 0
    %v2825 = vsel %vm874, %v2804, 0
    %v2828 = vsel %vm874, %v2805, 0
    %2830 = vmatprep.subr.mxu0 0.0
    %v2831 = vand.u32 %v65, 4294901760
    %2832 = vmatpush1.msra.mxu0 %v2831
    %2833 = vmatprep.subr.mxu0 0.0
    %v2834 = vand.u32 %v66, 4294901760
    %2835 = vmatpush1.msra.mxu0 %v2834
    %2836 = vmatprep.subr.mxu0 0.0
    %v2837 = vand.u32 %v67, 4294901760
    %2838 = vmatpush1.msra.mxu0 %v2837
    %2839 = vmatprep.subr.mxu0 0.0
    %v2840 = vand.u32 %v68, 4294901760
    %2841 = vmatpush1.msra.mxu0 %v2840
    %2842 = vmatprep.subr.mxu0 0.0
    %2843 = vmatpush1.msra.mxu0 0.0
    %2844 = vmatprep.subr.mxu0 0.0
    %2845 = vmatpush1.msra.mxu0 0.0
    %2846 = vmatprep.subr.mxu0 0.0
    %2847 = vmatpush1.msra.mxu0 0.0
    %2848 = vmatprep.subr.mxu0 0.0
    %2849 = vmatpush1.msra.mxu0 0.0
    %2850 = vmatprep.subr.mxu0 0.0
    %2851 = vmatpush1.msra.mxu0 0.0
    %2852 = vmatprep.subr.mxu0 0.0
    %2853 = vmatpush1.msra.mxu0 0.0
    %2854 = vmatprep.subr.mxu0 0.0
    %2855 = vmatpush1.msra.mxu0 0.0
    %2856 = vmatprep.subr.mxu0 0.0
    %2857 = vmatpush1.msra.mxu0 0.0
    %2858 = vmatprep.subr.mxu0 0.0
    %2859 = vmatpush1.msra.mxu0 0.0
    %2860 = vmatprep.subr.mxu0 0.0
    %2861 = vmatpush1.msra.mxu0 0.0
    %2862 = vmatprep.subr.mxu0 0.0
    %2863 = vmatpush1.msra.mxu0 0.0
    %2864 = vmatprep.subr.mxu0 0.0
    %2865 = vmatpush1.msra.mxu0 0.0
    %2866 = vmatprep.subr.mxu0 0.0
    %2867 = vmatpush1.msra.mxu0 0.0
    %2868 = vmatprep.subr.mxu0 0.0
    %2869 = vmatpush1.msra.mxu0 0.0
    %2870 = vmatprep.subr.mxu0 0.0
    %2871 = vmatpush1.msra.mxu0 0.0
    %2872 = vmatprep.subr.mxu0 0.0
    %2873 = vmatpush1.msra.mxu0 0.0
    %2874 = vmatprep.subr.mxu0 0.0
    %2875 = vmatpush1.msra.mxu0 0.0
    %2876 = vmatprep.subr.mxu0 0.0
    %2877 = vmatpush1.msra.mxu0 0.0
    %2878 = vmatprep.subr.mxu0 0.0
    %2879 = vmatpush1.msra.mxu0 0.0
    %2880 = vmatprep.subr.mxu0 0.0
    %2881 = vmatpush1.msra.mxu0 0.0
    %2882 = vmatprep.subr.mxu0 0.0
    %2883 = vmatpush1.msra.mxu0 0.0
    %2884 = vmatprep.subr.mxu0 0.0
    %2885 = vmatpush1.msra.mxu0 0.0
    %2886 = vmatprep.subr.mxu0 0.0
    %2887 = vmatpush1.msra.mxu0 0.0
    %2888 = vmatprep.subr.mxu0 0.0
    %2889 = vmatpush1.msra.mxu0 0.0
    %2890 = vmatprep.subr.mxu0 0.0
    %2891 = vmatpush1.msra.mxu0 0.0
    %2892 = vmatprep.subr.mxu0 0.0
    %2893 = vmatpush1.msra.mxu0 0.0
    %2894 = vmatprep.subr.mxu0 0.0
    %2895 = vmatpush1.msra.mxu0 0.0
    %2896 = vmatprep.subr.mxu0 0.0
    %2897 = vmatpush1.msra.mxu0 0.0
    %2898 = vmatprep.mubr.f32.mxu0 0.0
    %v2899 = vand.u32 %v2807, 4294901760
    %v2900 = vsub.f32 %v2807, %v2899
    %v2901 = vand.u32 %v2900, 4294901760
    %v2902 = vsub.f32 %v2900, %v2901
    %v2903 = vand.u32 %v2902, 4294901760
    %2904 = vmatmul.mubr.f32.gmra.mrb[0].mxu0 %v2903
    %v2905 = vpop.f32.mrb[0].mxu0
    %v2906 = vadd.f32 %v1440, %v2905
    %v2907 = vpop.f32.mrb[0].mxu0
    %2908 = vmatprep.mubr.f32.mxu0 0.0
    %v2909 = vand.u32 %v2810, 4294901760
    %v2910 = vsub.f32 %v2810, %v2909
    %v2911 = vand.u32 %v2910, 4294901760
    %v2912 = vsub.f32 %v2910, %v2911
    %v2913 = vand.u32 %v2912, 4294901760
    %2914 = vmatmul.mubr.f32.gmra.mrb[0].mxu0 %v2913
    %v2915 = vpop.f32.mrb[0].mxu0
    %v2916 = vadd.f32 %v1440, %v2915
    %v2917 = vpop.f32.mrb[0].mxu0
    %2918 = vmatprep.mubr.f32.mxu0 0.0
    %v2919 = vand.u32 %v2813, 4294901760
    %v2920 = vsub.f32 %v2813, %v2919
    %v2921 = vand.u32 %v2920, 4294901760
    %v2922 = vsub.f32 %v2920, %v2921
    %v2923 = vand.u32 %v2922, 4294901760
    %2924 = vmatmul.mubr.f32.gmra.mrb[0].mxu0 %v2923
    %v2925 = vpop.f32.mrb[0].mxu0
    %v2926 = vadd.f32 %v1440, %v2925
    %v2927 = vpop.f32.mrb[0].mxu0
    %2928 = vmatprep.mubr.f32.mxu0 0.0
    %v2929 = vand.u32 %v2816, 4294901760
    %v2930 = vsub.f32 %v2816, %v2929
    %v2931 = vand.u32 %v2930, 4294901760
    %v2932 = vsub.f32 %v2930, %v2931
    %v2933 = vand.u32 %v2932, 4294901760
    %2934 = vmatmul.mubr.f32.gmra.mrb[0].mxu0 %v2933
    %v2935 = vpop.f32.mrb[0].mxu0
    %v2936 = vadd.f32 %v1440, %v2935
    %v2937 = vpop.f32.mrb[0].mxu0
    %2938 = vmatprep.mubr.f32.mxu0 0.0
    %v2939 = vand.u32 %v2819, 4294901760
    %v2940 = vsub.f32 %v2819, %v2939
    %v2941 = vand.u32 %v2940, 4294901760
    %v2942 = vsub.f32 %v2940, %v2941
    %v2943 = vand.u32 %v2942, 4294901760
    %2944 = vmatmul.mubr.f32.gmra.mrb[0].mxu0 %v2943
    %v2945 = vpop.f32.mrb[0].mxu0
    %v2946 = vadd.f32 %v1440, %v2945
    %v2947 = vpop.f32.mrb[0].mxu0
    %2948 = vmatprep.mubr.f32.mxu0 0.0
    %v2949 = vand.u32 %v2822, 4294901760
    %v2950 = vsub.f32 %v2822, %v2949
    %v2951 = vand.u32 %v2950, 4294901760
    %v2952 = vsub.f32 %v2950, %v2951
    %v2953 = vand.u32 %v2952, 4294901760
    %2954 = vmatmul.mubr.f32.gmra.mrb[0].mxu0 %v2953
    %v2955 = vpop.f32.mrb[0].mxu0
    %v2956 = vadd.f32 %v1440, %v2955
    %v2957 = vpop.f32.mrb[0].mxu0
    %2958 = vmatprep.mubr.f32.mxu0 0.0
    %v2959 = vand.u32 %v2825, 4294901760
    %v2960 = vsub.f32 %v2825, %v2959
    %v2961 = vand.u32 %v2960, 4294901760
    %v2962 = vsub.f32 %v2960, %v2961
    %v2963 = vand.u32 %v2962, 4294901760
    %2964 = vmatmul.mubr.f32.gmra.mrb[0].mxu0 %v2963
    %v2965 = vpop.f32.mrb[0].mxu0
    %v2966 = vadd.f32 %v1440, %v2965
    %v2967 = vpop.f32.mrb[0].mxu0
    %2968 = vmatprep.mubr.f32.mxu0 0.0
    %v2969 = vand.u32 %v2828, 4294901760
    %v2970 = vsub.f32 %v2828, %v2969
    %v2971 = vand.u32 %v2970, 4294901760
    %v2972 = vsub.f32 %v2970, %v2971
    %v2973 = vand.u32 %v2972, 4294901760
    %2974 = vmatmul.mubr.f32.gmra.mrb[0].mxu0 %v2973
    %v2975 = vpop.f32.mrb[0].mxu0
    %v2976 = vadd.f32 %v1440, %v2975
    %v2977 = vpop.f32.mrb[0].mxu0
    %2978 = vdwg.mxu0
    %2979 = vmatprep.subr.mxu0 0.0
    %v2980 = vand.u32 %v65, 4294901760
    %v2981 = vsub.f32 %v65, %v2980
    %v2982 = vand.u32 %v2981, 4294901760
    %v2983 = vsub.f32 %v2981, %v2982
    %v2984 = vand.u32 %v2983, 4294901760
    %2985 = vmatpush1.msra.mxu0 %v2984
    %2986 = vmatprep.subr.mxu0 0.0
    %v2987 = vand.u32 %v66, 4294901760
    %v2988 = vsub.f32 %v66, %v2987
    %v2989 = vand.u32 %v2988, 4294901760
    %v2990 = vsub.f32 %v2988, %v2989
    %v2991 = vand.u32 %v2990, 4294901760
    %2992 = vmatpush1.msra.mxu0 %v2991
    %2993 = vmatprep.subr.mxu0 0.0
    %v2994 = vand.u32 %v67, 4294901760
    %v2995 = vsub.f32 %v67, %v2994
    %v2996 = vand.u32 %v2995, 4294901760
    %v2997 = vsub.f32 %v2995, %v2996
    %v2998 = vand.u32 %v2997, 4294901760
    %2999 = vmatpush1.msra.mxu0 %v2998
    %3000 = vmatprep.subr.mxu0 0.0
    %v3001 = vand.u32 %v68, 4294901760
    %v3002 = vsub.f32 %v68, %v3001
    %v3003 = vand.u32 %v3002, 4294901760
    %v3004 = vsub.f32 %v3002, %v3003
    %v3005 = vand.u32 %v3004, 4294901760
    %3006 = vmatpush1.msra.mxu0 %v3005
    %3007 = vmatprep.subr.mxu0 0.0
    %3008 = vmatpush1.msra.mxu0 0.0
    %3009 = vmatprep.subr.mxu0 0.0
    %3010 = vmatpush1.msra.mxu0 0.0
    %3011 = vmatprep.subr.mxu0 0.0
    %3012 = vmatpush1.msra.mxu0 0.0
    %3013 = vmatprep.subr.mxu0 0.0
    %3014 = vmatpush1.msra.mxu0 0.0
    %3015 = vmatprep.subr.mxu0 0.0
    %3016 = vmatpush1.msra.mxu0 0.0
    %3017 = vmatprep.subr.mxu0 0.0
    %3018 = vmatpush1.msra.mxu0 0.0
    %3019 = vmatprep.subr.mxu0 0.0
    %3020 = vmatpush1.msra.mxu0 0.0
    %3021 = vmatprep.subr.mxu0 0.0
    %3022 = vmatpush1.msra.mxu0 0.0
    %3023 = vmatprep.subr.mxu0 0.0
    %3024 = vmatpush1.msra.mxu0 0.0
    %3025 = vmatprep.subr.mxu0 0.0
    %3026 = vmatpush1.msra.mxu0 0.0
    %3027 = vmatprep.subr.mxu0 0.0
    %3028 = vmatpush1.msra.mxu0 0.0
    %3029 = vmatprep.subr.mxu0 0.0
    %3030 = vmatpush1.msra.mxu0 0.0
    %3031 = vmatprep.subr.mxu0 0.0
    %3032 = vmatpush1.msra.mxu0 0.0
    %3033 = vmatprep.subr.mxu0 0.0
    %3034 = vmatpush1.msra.mxu0 0.0
    %3035 = vmatprep.subr.mxu0 0.0
    %3036 = vmatpush1.msra.mxu0 0.0
    %3037 = vmatprep.subr.mxu0 0.0
    %3038 = vmatpush1.msra.mxu0 0.0
    %3039 = vmatprep.subr.mxu0 0.0
    %3040 = vmatpush1.msra.mxu0 0.0
    %3041 = vmatprep.subr.mxu0 0.0
    %3042 = vmatpush1.msra.mxu0 0.0
    %3043 = vmatprep.subr.mxu0 0.0
    %3044 = vmatpush1.msra.mxu0 0.0
    %3045 = vmatprep.subr.mxu0 0.0
    %3046 = vmatpush1.msra.mxu0 0.0
    %3047 = vmatprep.subr.mxu0 0.0
    %3048 = vmatpush1.msra.mxu0 0.0
    %3049 = vmatprep.subr.mxu0 0.0
    %3050 = vmatpush1.msra.mxu0 0.0
    %3051 = vmatprep.subr.mxu0 0.0
    %3052 = vmatpush1.msra.mxu0 0.0
    %3053 = vmatprep.subr.mxu0 0.0
    %3054 = vmatpush1.msra.mxu0 0.0
    %3055 = vmatprep.subr.mxu0 0.0
    %3056 = vmatpush1.msra.mxu0 0.0
    %3057 = vmatprep.subr.mxu0 0.0
    %3058 = vmatpush1.msra.mxu0 0.0
    %3059 = vmatprep.subr.mxu0 0.0
    %3060 = vmatpush1.msra.mxu0 0.0
    %3061 = vmatprep.subr.mxu0 0.0
    %3062 = vmatpush1.msra.mxu0 0.0
    %3063 = vmatprep.mubr.f32.mxu0 0.0
    %v3064 = vand.u32 %v2807, 4294901760
    %3065 = vmatmul.mubr.f32.gmra.mrb[0].mxu0 %v3064
    %v3066 = vpop.f32.mrb[0].mxu0
    %v3067 = vadd.f32 %v2906, %v3066
    %v3068 = vpop.f32.mrb[0].mxu0
    %3069 = vmatprep.mubr.f32.mxu0 0.0
    %v3070 = vand.u32 %v2810, 4294901760
    %3071 = vmatmul.mubr.f32.gmra.mrb[0].mxu0 %v3070
    %v3072 = vpop.f32.mrb[0].mxu0
    %v3073 = vadd.f32 %v2916, %v3072
    %v3074 = vpop.f32.mrb[0].mxu0
    %3075 = vmatprep.mubr.f32.mxu0 0.0
    %v3076 = vand.u32 %v2813, 4294901760
    %3077 = vmatmul.mubr.f32.gmra.mrb[0].mxu0 %v3076
    %v3078 = vpop.f32.mrb[0].mxu0
    %v3079 = vadd.f32 %v2926, %v3078
    %v3080 = vpop.f32.mrb[0].mxu0
    %3081 = vmatprep.mubr.f32.mxu0 0.0
    %v3082 = vand.u32 %v2816, 4294901760
    %3083 = vmatmul.mubr.f32.gmra.mrb[0].mxu0 %v3082
    %v3084 = vpop.f32.mrb[0].mxu0
    %v3085 = vadd.f32 %v2936, %v3084
    %v3086 = vpop.f32.mrb[0].mxu0
    %3087 = vmatprep.mubr.f32.mxu0 0.0
    %v3088 = vand.u32 %v2819, 4294901760
    %3089 = vmatmul.mubr.f32.gmra.mrb[0].mxu0 %v3088
    %v3090 = vpop.f32.mrb[0].mxu0
    %v3091 = vadd.f32 %v2946, %v3090
    %v3092 = vpop.f32.mrb[0].mxu0
    %3093 = vmatprep.mubr.f32.mxu0 0.0
    %v3094 = vand.u32 %v2822, 4294901760
    %3095 = vmatmul.mubr.f32.gmra.mrb[0].mxu0 %v3094
    %v3096 = vpop.f32.mrb[0].mxu0
    %v3097 = vadd.f32 %v2956, %v3096
    %v3098 = vpop.f32.mrb[0].mxu0
    %3099 = vmatprep.mubr.f32.mxu0 0.0
    %v3100 = vand.u32 %v2825, 4294901760
    %3101 = vmatmul.mubr.f32.gmra.mrb[0].mxu0 %v3100
    %v3102 = vpop.f32.mrb[0].mxu0
    %v3103 = vadd.f32 %v2966, %v3102
    %v3104 = vpop.f32.mrb[0].mxu0
    %3105 = vmatprep.mubr.f32.mxu0 0.0
    %v3106 = vand.u32 %v2828, 4294901760
    %3107 = vmatmul.mubr.f32.gmra.mrb[0].mxu0 %v3106
    %v3108 = vpop.f32.mrb[0].mxu0
    %v3109 = vadd.f32 %v2976, %v3108
    %v3110 = vpop.f32.mrb[0].mxu0
    %3111 = vdwg.mxu0
    %3112 = vmatprep.subr.mxu0 0.0
    %v3113 = vand.u32 %v65, 4294901760
    %v3114 = vsub.f32 %v65, %v3113
    %3115 = vmatpush1.msra.mxu0 %v3114
    %3116 = vmatprep.subr.mxu0 0.0
    %v3117 = vand.u32 %v66, 4294901760
    %v3118 = vsub.f32 %v66, %v3117
    %3119 = vmatpush1.msra.mxu0 %v3118
    %3120 = vmatprep.subr.mxu0 0.0
    %v3121 = vand.u32 %v67, 4294901760
    %v3122 = vsub.f32 %v67, %v3121
    %3123 = vmatpush1.msra.mxu0 %v3122
    %3124 = vmatprep.subr.mxu0 0.0
    %v3125 = vand.u32 %v68, 4294901760
    %v3126 = vsub.f32 %v68, %v3125
    %3127 = vmatpush1.msra.mxu0 %v3126
    %3128 = vmatprep.subr.mxu0 0.0
    %3129 = vmatpush1.msra.mxu0 0.0
    %3130 = vmatprep.subr.mxu0 0.0
    %3131 = vmatpush1.msra.mxu0 0.0
    %3132 = vmatprep.subr.mxu0 0.0
    %3133 = vmatpush1.msra.mxu0 0.0
    %3134 = vmatprep.subr.mxu0 0.0
    %3135 = vmatpush1.msra.mxu0 0.0
    %3136 = vmatprep.subr.mxu0 0.0
    %3137 = vmatpush1.msra.mxu0 0.0
    %3138 = vmatprep.subr.mxu0 0.0
    %3139 = vmatpush1.msra.mxu0 0.0
    %3140 = vmatprep.subr.mxu0 0.0
    %3141 = vmatpush1.msra.mxu0 0.0
    %3142 = vmatprep.subr.mxu0 0.0
    %3143 = vmatpush1.msra.mxu0 0.0
    %3144 = vmatprep.subr.mxu0 0.0
    %3145 = vmatpush1.msra.mxu0 0.0
    %3146 = vmatprep.subr.mxu0 0.0
    %3147 = vmatpush1.msra.mxu0 0.0
    %3148 = vmatprep.subr.mxu0 0.0
    %3149 = vmatpush1.msra.mxu0 0.0
    %3150 = vmatprep.subr.mxu0 0.0
    %3151 = vmatpush1.msra.mxu0 0.0
    %3152 = vmatprep.subr.mxu0 0.0
    %3153 = vmatpush1.msra.mxu0 0.0
    %3154 = vmatprep.subr.mxu0 0.0
    %3155 = vmatpush1.msra.mxu0 0.0
    %3156 = vmatprep.subr.mxu0 0.0
    %3157 = vmatpush1.msra.mxu0 0.0
    %3158 = vmatprep.subr.mxu0 0.0
    %3159 = vmatpush1.msra.mxu0 0.0
    %3160 = vmatprep.subr.mxu0 0.0
    %3161 = vmatpush1.msra.mxu0 0.0
    %3162 = vmatprep.subr.mxu0 0.0
    %3163 = vmatpush1.msra.mxu0 0.0
    %3164 = vmatprep.subr.mxu0 0.0
    %3165 = vmatpush1.msra.mxu0 0.0
    %3166 = vmatprep.subr.mxu0 0.0
    %3167 = vmatpush1.msra.mxu0 0.0
    %3168 = vmatprep.subr.mxu0 0.0
    %3169 = vmatpush1.msra.mxu0 0.0
    %3170 = vmatprep.subr.mxu0 0.0
    %3171 = vmatpush1.msra.mxu0 0.0
    %3172 = vmatprep.subr.mxu0 0.0
    %3173 = vmatpush1.msra.mxu0 0.0
    %3174 = vmatprep.subr.mxu0 0.0
    %3175 = vmatpush1.msra.mxu0 0.0
    %3176 = vmatprep.subr.mxu0 0.0
    %3177 = vmatpush1.msra.mxu0 0.0
    %3178 = vmatprep.subr.mxu0 0.0
    %3179 = vmatpush1.msra.mxu0 0.0
    %3180 = vmatprep.subr.mxu0 0.0
    %3181 = vmatpush1.msra.mxu0 0.0
    %3182 = vmatprep.subr.mxu0 0.0
    %3183 = vmatpush1.msra.mxu0 0.0
    %3184 = vmatprep.mubr.f32.mxu0 0.0
    %v3185 = vand.u32 %v2807, 4294901760
    %v3186 = vsub.f32 %v2807, %v3185
    %3187 = vmatmul.mubr.f32.gmra.mrb[0].mxu0 %v3186
    %v3188 = vpop.f32.mrb[0].mxu0
    %v3189 = vadd.f32 %v3067, %v3188
    %v3190 = vpop.f32.mrb[0].mxu0
    %3191 = vmatprep.mubr.f32.mxu0 0.0
    %v3192 = vand.u32 %v2810, 4294901760
    %v3193 = vsub.f32 %v2810, %v3192
    %3194 = vmatmul.mubr.f32.gmra.mrb[0].mxu0 %v3193
    %v3195 = vpop.f32.mrb[0].mxu0
    %v3196 = vadd.f32 %v3073, %v3195
    %v3197 = vpop.f32.mrb[0].mxu0
    %3198 = vmatprep.mubr.f32.mxu0 0.0
    %v3199 = vand.u32 %v2813, 4294901760
    %v3200 = vsub.f32 %v2813, %v3199
    %3201 = vmatmul.mubr.f32.gmra.mrb[0].mxu0 %v3200
    %v3202 = vpop.f32.mrb[0].mxu0
    %v3203 = vadd.f32 %v3079, %v3202
    %v3204 = vpop.f32.mrb[0].mxu0
    %3205 = vmatprep.mubr.f32.mxu0 0.0
    %v3206 = vand.u32 %v2816, 4294901760
    %v3207 = vsub.f32 %v2816, %v3206
    %3208 = vmatmul.mubr.f32.gmra.mrb[0].mxu0 %v3207
    %v3209 = vpop.f32.mrb[0].mxu0
    %v3210 = vadd.f32 %v3085, %v3209
    %v3211 = vpop.f32.mrb[0].mxu0
    %3212 = vmatprep.mubr.f32.mxu0 0.0
    %v3213 = vand.u32 %v2819, 4294901760
    %v3214 = vsub.f32 %v2819, %v3213
    %3215 = vmatmul.mubr.f32.gmra.mrb[0].mxu0 %v3214
    %v3216 = vpop.f32.mrb[0].mxu0
    %v3217 = vadd.f32 %v3091, %v3216
    %v3218 = vpop.f32.mrb[0].mxu0
    %3219 = vmatprep.mubr.f32.mxu0 0.0
    %v3220 = vand.u32 %v2822, 4294901760
    %v3221 = vsub.f32 %v2822, %v3220
    %3222 = vmatmul.mubr.f32.gmra.mrb[0].mxu0 %v3221
    %v3223 = vpop.f32.mrb[0].mxu0
    %v3224 = vadd.f32 %v3097, %v3223
    %v3225 = vpop.f32.mrb[0].mxu0
    %3226 = vmatprep.mubr.f32.mxu0 0.0
    %v3227 = vand.u32 %v2825, 4294901760
    %v3228 = vsub.f32 %v2825, %v3227
    %3229 = vmatmul.mubr.f32.gmra.mrb[0].mxu0 %v3228
    %v3230 = vpop.f32.mrb[0].mxu0
    %v3231 = vadd.f32 %v3103, %v3230
    %v3232 = vpop.f32.mrb[0].mxu0
    %3233 = vmatprep.mubr.f32.mxu0 0.0
    %v3234 = vand.u32 %v2828, 4294901760
    %v3235 = vsub.f32 %v2828, %v3234
    %3236 = vmatmul.mubr.f32.gmra.mrb[0].mxu0 %v3235
    %v3237 = vpop.f32.mrb[0].mxu0
    %v3238 = vadd.f32 %v3109, %v3237
    %v3239 = vpop.f32.mrb[0].mxu0
    %3240 = vdwg.mxu0
    %3241 = vmatprep.subr.mxu0 0.0
    %v3242 = vand.u32 %v65, 4294901760
    %3243 = vmatpush1.msra.mxu0 %v3242
    %3244 = vmatprep.subr.mxu0 0.0
    %v3245 = vand.u32 %v66, 4294901760
    %3246 = vmatpush1.msra.mxu0 %v3245
    %3247 = vmatprep.subr.mxu0 0.0
    %v3248 = vand.u32 %v67, 4294901760
    %3249 = vmatpush1.msra.mxu0 %v3248
    %3250 = vmatprep.subr.mxu0 0.0
    %v3251 = vand.u32 %v68, 4294901760
    %3252 = vmatpush1.msra.mxu0 %v3251
    %3253 = vmatprep.subr.mxu0 0.0
    %3254 = vmatpush1.msra.mxu0 0.0
    %3255 = vmatprep.subr.mxu0 0.0
    %3256 = vmatpush1.msra.mxu0 0.0
    %3257 = vmatprep.subr.mxu0 0.0
    %3258 = vmatpush1.msra.mxu0 0.0
    %3259 = vmatprep.subr.mxu0 0.0
    %3260 = vmatpush1.msra.mxu0 0.0
    %3261 = vmatprep.subr.mxu0 0.0
    %3262 = vmatpush1.msra.mxu0 0.0
    %3263 = vmatprep.subr.mxu0 0.0
    %3264 = vmatpush1.msra.mxu0 0.0
    %3265 = vmatprep.subr.mxu0 0.0
    %3266 = vmatpush1.msra.mxu0 0.0
    %3267 = vmatprep.subr.mxu0 0.0
    %3268 = vmatpush1.msra.mxu0 0.0
    %3269 = vmatprep.subr.mxu0 0.0
    %3270 = vmatpush1.msra.mxu0 0.0
    %3271 = vmatprep.subr.mxu0 0.0
    %3272 = vmatpush1.msra.mxu0 0.0
    %3273 = vmatprep.subr.mxu0 0.0
    %3274 = vmatpush1.msra.mxu0 0.0
    %3275 = vmatprep.subr.mxu0 0.0
    %3276 = vmatpush1.msra.mxu0 0.0
    %3277 = vmatprep.subr.mxu0 0.0
    %3278 = vmatpush1.msra.mxu0 0.0
    %3279 = vmatprep.subr.mxu0 0.0
    %3280 = vmatpush1.msra.mxu0 0.0
    %3281 = vmatprep.subr.mxu0 0.0
    %3282 = vmatpush1.msra.mxu0 0.0
    %3283 = vmatprep.subr.mxu0 0.0
    %3284 = vmatpush1.msra.mxu0 0.0
    %3285 = vmatprep.subr.mxu0 0.0
    %3286 = vmatpush1.msra.mxu0 0.0
    %3287 = vmatprep.subr.mxu0 0.0
    %3288 = vmatpush1.msra.mxu0 0.0
    %3289 = vmatprep.subr.mxu0 0.0
    %3290 = vmatpush1.msra.mxu0 0.0
    %3291 = vmatprep.subr.mxu0 0.0
    %3292 = vmatpush1.msra.mxu0 0.0
    %3293 = vmatprep.subr.mxu0 0.0
    %3294 = vmatpush1.msra.mxu0 0.0
    %3295 = vmatprep.subr.mxu0 0.0
    %3296 = vmatpush1.msra.mxu0 0.0
    %3297 = vmatprep.subr.mxu0 0.0
    %3298 = vmatpush1.msra.mxu0 0.0
    %3299 = vmatprep.subr.mxu0 0.0
    %3300 = vmatpush1.msra.mxu0 0.0
    %3301 = vmatprep.subr.mxu0 0.0
    %3302 = vmatpush1.msra.mxu0 0.0
    %3303 = vmatprep.subr.mxu0 0.0
    %3304 = vmatpush1.msra.mxu0 0.0
    %3305 = vmatprep.subr.mxu0 0.0
    %3306 = vmatpush1.msra.mxu0 0.0
    %3307 = vmatprep.subr.mxu0 0.0
    %3308 = vmatpush1.msra.mxu0 0.0
    %3309 = vmatprep.mubr.f32.mxu0 0.0
    %v3310 = vand.u32 %v2807, 4294901760
    %v3311 = vsub.f32 %v2807, %v3310
    %v3312 = vand.u32 %v3311, 4294901760
    %3313 = vmatmul.mubr.f32.gmra.mrb[0].mxu0 %v3312
    %v3314 = vpop.f32.mrb[0].mxu0
    %v3315 = vadd.f32 %v3189, %v3314
    %v3316 = vpop.f32.mrb[0].mxu0
    %3317 = vmatprep.mubr.f32.mxu0 0.0
    %v3318 = vand.u32 %v2810, 4294901760
    %v3319 = vsub.f32 %v2810, %v3318
    %v3320 = vand.u32 %v3319, 4294901760
    %3321 = vmatmul.mubr.f32.gmra.mrb[0].mxu0 %v3320
    %v3322 = vpop.f32.mrb[0].mxu0
    %v3323 = vadd.f32 %v3196, %v3322
    %v3324 = vpop.f32.mrb[0].mxu0
    %3325 = vmatprep.mubr.f32.mxu0 0.0
    %v3326 = vand.u32 %v2813, 4294901760
    %v3327 = vsub.f32 %v2813, %v3326
    %v3328 = vand.u32 %v3327, 4294901760
    %3329 = vmatmul.mubr.f32.gmra.mrb[0].mxu0 %v3328
    %v3330 = vpop.f32.mrb[0].mxu0
    %v3331 = vadd.f32 %v3203, %v3330
    %v3332 = vpop.f32.mrb[0].mxu0
    %3333 = vmatprep.mubr.f32.mxu0 0.0
    %v3334 = vand.u32 %v2816, 4294901760
    %v3335 = vsub.f32 %v2816, %v3334
    %v3336 = vand.u32 %v3335, 4294901760
    %3337 = vmatmul.mubr.f32.gmra.mrb[0].mxu0 %v3336
    %v3338 = vpop.f32.mrb[0].mxu0
    %v3339 = vadd.f32 %v3210, %v3338
    %v3340 = vpop.f32.mrb[0].mxu0
    %3341 = vmatprep.mubr.f32.mxu0 0.0
    %v3342 = vand.u32 %v2819, 4294901760
    %v3343 = vsub.f32 %v2819, %v3342
    %v3344 = vand.u32 %v3343, 4294901760
    %3345 = vmatmul.mubr.f32.gmra.mrb[0].mxu0 %v3344
    %v3346 = vpop.f32.mrb[0].mxu0
    %v3347 = vadd.f32 %v3217, %v3346
    %v3348 = vpop.f32.mrb[0].mxu0
    %3349 = vmatprep.mubr.f32.mxu0 0.0
    %v3350 = vand.u32 %v2822, 4294901760
    %v3351 = vsub.f32 %v2822, %v3350
    %v3352 = vand.u32 %v3351, 4294901760
    %3353 = vmatmul.mubr.f32.gmra.mrb[0].mxu0 %v3352
    %v3354 = vpop.f32.mrb[0].mxu0
    %v3355 = vadd.f32 %v3224, %v3354
    %v3356 = vpop.f32.mrb[0].mxu0
    %3357 = vmatprep.mubr.f32.mxu0 0.0
    %v3358 = vand.u32 %v2825, 4294901760
    %v3359 = vsub.f32 %v2825, %v3358
    %v3360 = vand.u32 %v3359, 4294901760
    %3361 = vmatmul.mubr.f32.gmra.mrb[0].mxu0 %v3360
    %v3362 = vpop.f32.mrb[0].mxu0
    %v3363 = vadd.f32 %v3231, %v3362
    %v3364 = vpop.f32.mrb[0].mxu0
    %3365 = vmatprep.mubr.f32.mxu0 0.0
    %v3366 = vand.u32 %v2828, 4294901760
    %v3367 = vsub.f32 %v2828, %v3366
    %v3368 = vand.u32 %v3367, 4294901760
    %3369 = vmatmul.mubr.f32.gmra.mrb[0].mxu0 %v3368
    %v3370 = vpop.f32.mrb[0].mxu0
    %v3371 = vadd.f32 %v3238, %v3370
    %v3372 = vpop.f32.mrb[0].mxu0
    %3373 = vdwg.mxu0
    %3374 = vmatprep.subr.mxu0 0.0
    %v3375 = vand.u32 %v65, 4294901760
    %v3376 = vsub.f32 %v65, %v3375
    %v3377 = vand.u32 %v3376, 4294901760
    %3378 = vmatpush1.msra.mxu0 %v3377
    %3379 = vmatprep.subr.mxu0 0.0
    %v3380 = vand.u32 %v66, 4294901760
    %v3381 = vsub.f32 %v66, %v3380
    %v3382 = vand.u32 %v3381, 4294901760
    %3383 = vmatpush1.msra.mxu0 %v3382
    %3384 = vmatprep.subr.mxu0 0.0
    %v3385 = vand.u32 %v67, 4294901760
    %v3386 = vsub.f32 %v67, %v3385
    %v3387 = vand.u32 %v3386, 4294901760
    %3388 = vmatpush1.msra.mxu0 %v3387
    %3389 = vmatprep.subr.mxu0 0.0
    %v3390 = vand.u32 %v68, 4294901760
    %v3391 = vsub.f32 %v68, %v3390
    %v3392 = vand.u32 %v3391, 4294901760
    %3393 = vmatpush1.msra.mxu0 %v3392
    %3394 = vmatprep.subr.mxu0 0.0
    %3395 = vmatpush1.msra.mxu0 0.0
    %3396 = vmatprep.subr.mxu0 0.0
    %3397 = vmatpush1.msra.mxu0 0.0
    %3398 = vmatprep.subr.mxu0 0.0
    %3399 = vmatpush1.msra.mxu0 0.0
    %3400 = vmatprep.subr.mxu0 0.0
    %3401 = vmatpush1.msra.mxu0 0.0
    %3402 = vmatprep.subr.mxu0 0.0
    %3403 = vmatpush1.msra.mxu0 0.0
    %3404 = vmatprep.subr.mxu0 0.0
    %3405 = vmatpush1.msra.mxu0 0.0
    %3406 = vmatprep.subr.mxu0 0.0
    %3407 = vmatpush1.msra.mxu0 0.0
    %3408 = vmatprep.subr.mxu0 0.0
    %3409 = vmatpush1.msra.mxu0 0.0
    %3410 = vmatprep.subr.mxu0 0.0
    %3411 = vmatpush1.msra.mxu0 0.0
    %3412 = vmatprep.subr.mxu0 0.0
    %3413 = vmatpush1.msra.mxu0 0.0
    %3414 = vmatprep.subr.mxu0 0.0
    %3415 = vmatpush1.msra.mxu0 0.0
    %3416 = vmatprep.subr.mxu0 0.0
    %3417 = vmatpush1.msra.mxu0 0.0
    %3418 = vmatprep.subr.mxu0 0.0
    %3419 = vmatpush1.msra.mxu0 0.0
    %3420 = vmatprep.subr.mxu0 0.0
    %3421 = vmatpush1.msra.mxu0 0.0
    %3422 = vmatprep.subr.mxu0 0.0
    %3423 = vmatpush1.msra.mxu0 0.0
    %3424 = vmatprep.subr.mxu0 0.0
    %3425 = vmatpush1.msra.mxu0 0.0
    %3426 = vmatprep.subr.mxu0 0.0
    %3427 = vmatpush1.msra.mxu0 0.0
    %3428 = vmatprep.subr.mxu0 0.0
    %3429 = vmatpush1.msra.mxu0 0.0
    %3430 = vmatprep.subr.mxu0 0.0
    %3431 = vmatpush1.msra.mxu0 0.0
    %3432 = vmatprep.subr.mxu0 0.0
    %3433 = vmatpush1.msra.mxu0 0.0
    %3434 = vmatprep.subr.mxu0 0.0
    %3435 = vmatpush1.msra.mxu0 0.0
    %3436 = vmatprep.subr.mxu0 0.0
    %3437 = vmatpush1.msra.mxu0 0.0
    %3438 = vmatprep.subr.mxu0 0.0
    %3439 = vmatpush1.msra.mxu0 0.0
    %3440 = vmatprep.subr.mxu0 0.0
    %3441 = vmatpush1.msra.mxu0 0.0
    %3442 = vmatprep.subr.mxu0 0.0
    %3443 = vmatpush1.msra.mxu0 0.0
    %3444 = vmatprep.subr.mxu0 0.0
    %3445 = vmatpush1.msra.mxu0 0.0
    %3446 = vmatprep.subr.mxu0 0.0
    %3447 = vmatpush1.msra.mxu0 0.0
    %3448 = vmatprep.subr.mxu0 0.0
    %3449 = vmatpush1.msra.mxu0 0.0
    %3450 = vmatprep.mubr.f32.mxu0 0.0
    %v3451 = vand.u32 %v2807, 4294901760
    %3452 = vmatmul.mubr.f32.gmra.mrb[0].mxu0 %v3451
    %v3453 = vpop.f32.mrb[0].mxu0
    %v3454 = vadd.f32 %v3315, %v3453
    %v3455 = vpop.f32.mrb[0].mxu0
    %3456 = vmatprep.mubr.f32.mxu0 0.0
    %v3457 = vand.u32 %v2810, 4294901760
    %3458 = vmatmul.mubr.f32.gmra.mrb[0].mxu0 %v3457
    %v3459 = vpop.f32.mrb[0].mxu0
    %v3460 = vadd.f32 %v3323, %v3459
    %v3461 = vpop.f32.mrb[0].mxu0
    %3462 = vmatprep.mubr.f32.mxu0 0.0
    %v3463 = vand.u32 %v2813, 4294901760
    %3464 = vmatmul.mubr.f32.gmra.mrb[0].mxu0 %v3463
    %v3465 = vpop.f32.mrb[0].mxu0
    %v3466 = vadd.f32 %v3331, %v3465
    %v3467 = vpop.f32.mrb[0].mxu0
    %3468 = vmatprep.mubr.f32.mxu0 0.0
    %v3469 = vand.u32 %v2816, 4294901760
    %3470 = vmatmul.mubr.f32.gmra.mrb[0].mxu0 %v3469
    %v3471 = vpop.f32.mrb[0].mxu0
    %v3472 = vadd.f32 %v3339, %v3471
    %v3473 = vpop.f32.mrb[0].mxu0
    %3474 = vmatprep.mubr.f32.mxu0 0.0
    %v3475 = vand.u32 %v2819, 4294901760
    %3476 = vmatmul.mubr.f32.gmra.mrb[0].mxu0 %v3475
    %v3477 = vpop.f32.mrb[0].mxu0
    %v3478 = vadd.f32 %v3347, %v3477
    %v3479 = vpop.f32.mrb[0].mxu0
    %3480 = vmatprep.mubr.f32.mxu0 0.0
    %v3481 = vand.u32 %v2822, 4294901760
    %3482 = vmatmul.mubr.f32.gmra.mrb[0].mxu0 %v3481
    %v3483 = vpop.f32.mrb[0].mxu0
    %v3484 = vadd.f32 %v3355, %v3483
    %v3485 = vpop.f32.mrb[0].mxu0
    %3486 = vmatprep.mubr.f32.mxu0 0.0
    %v3487 = vand.u32 %v2825, 4294901760
    %3488 = vmatmul.mubr.f32.gmra.mrb[0].mxu0 %v3487
    %v3489 = vpop.f32.mrb[0].mxu0
    %v3490 = vadd.f32 %v3363, %v3489
    %v3491 = vpop.f32.mrb[0].mxu0
    %3492 = vmatprep.mubr.f32.mxu0 0.0
    %v3493 = vand.u32 %v2828, 4294901760
    %3494 = vmatmul.mubr.f32.gmra.mrb[0].mxu0 %v3493
    %v3495 = vpop.f32.mrb[0].mxu0
    %v3496 = vadd.f32 %v3371, %v3495
    %v3497 = vpop.f32.mrb[0].mxu0
    %3498 = vdwg.mxu0
    %3499 = vmatprep.subr.mxu0 0.0
    %v3500 = vand.u32 %v65, 4294901760
    %3501 = vmatpush1.msra.mxu0 %v3500
    %3502 = vmatprep.subr.mxu0 0.0
    %v3503 = vand.u32 %v66, 4294901760
    %3504 = vmatpush1.msra.mxu0 %v3503
    %3505 = vmatprep.subr.mxu0 0.0
    %v3506 = vand.u32 %v67, 4294901760
    %3507 = vmatpush1.msra.mxu0 %v3506
    %3508 = vmatprep.subr.mxu0 0.0
    %v3509 = vand.u32 %v68, 4294901760
    %3510 = vmatpush1.msra.mxu0 %v3509
    %3511 = vmatprep.subr.mxu0 0.0
    %3512 = vmatpush1.msra.mxu0 0.0
    %3513 = vmatprep.subr.mxu0 0.0
    %3514 = vmatpush1.msra.mxu0 0.0
    %3515 = vmatprep.subr.mxu0 0.0
    %3516 = vmatpush1.msra.mxu0 0.0
    %3517 = vmatprep.subr.mxu0 0.0
    %3518 = vmatpush1.msra.mxu0 0.0
    %3519 = vmatprep.subr.mxu0 0.0
    %3520 = vmatpush1.msra.mxu0 0.0
    %3521 = vmatprep.subr.mxu0 0.0
    %3522 = vmatpush1.msra.mxu0 0.0
    %3523 = vmatprep.subr.mxu0 0.0
    %3524 = vmatpush1.msra.mxu0 0.0
    %3525 = vmatprep.subr.mxu0 0.0
    %3526 = vmatpush1.msra.mxu0 0.0
    %3527 = vmatprep.subr.mxu0 0.0
    %3528 = vmatpush1.msra.mxu0 0.0
    %3529 = vmatprep.subr.mxu0 0.0
    %3530 = vmatpush1.msra.mxu0 0.0
    %3531 = vmatprep.subr.mxu0 0.0
    %3532 = vmatpush1.msra.mxu0 0.0
    %3533 = vmatprep.subr.mxu0 0.0
    %3534 = vmatpush1.msra.mxu0 0.0
    %3535 = vmatprep.subr.mxu0 0.0
    %3536 = vmatpush1.msra.mxu0 0.0
    %3537 = vmatprep.subr.mxu0 0.0
    %3538 = vmatpush1.msra.mxu0 0.0
    %3539 = vmatprep.subr.mxu0 0.0
    %3540 = vmatpush1.msra.mxu0 0.0
    %3541 = vmatprep.subr.mxu0 0.0
    %3542 = vmatpush1.msra.mxu0 0.0
    %3543 = vmatprep.subr.mxu0 0.0
    %3544 = vmatpush1.msra.mxu0 0.0
    %3545 = vmatprep.subr.mxu0 0.0
    %3546 = vmatpush1.msra.mxu0 0.0
    %3547 = vmatprep.subr.mxu0 0.0
    %3548 = vmatpush1.msra.mxu0 0.0
    %3549 = vmatprep.subr.mxu0 0.0
    %3550 = vmatpush1.msra.mxu0 0.0
    %3551 = vmatprep.subr.mxu0 0.0
    %3552 = vmatpush1.msra.mxu0 0.0
    %3553 = vmatprep.subr.mxu0 0.0
    %3554 = vmatpush1.msra.mxu0 0.0
    %3555 = vmatprep.subr.mxu0 0.0
    %3556 = vmatpush1.msra.mxu0 0.0
    %3557 = vmatprep.subr.mxu0 0.0
    %3558 = vmatpush1.msra.mxu0 0.0
    %3559 = vmatprep.subr.mxu0 0.0
    %3560 = vmatpush1.msra.mxu0 0.0
    %3561 = vmatprep.subr.mxu0 0.0
    %3562 = vmatpush1.msra.mxu0 0.0
    %3563 = vmatprep.subr.mxu0 0.0
    %3564 = vmatpush1.msra.mxu0 0.0
    %3565 = vmatprep.subr.mxu0 0.0
    %3566 = vmatpush1.msra.mxu0 0.0
    %3567 = vmatprep.mubr.f32.mxu0 0.0
    %v3568 = vand.u32 %v2807, 4294901760
    %3569 = vmatmul.mubr.f32.gmra.mrb[0].mxu0 %v3568
    %v3570 = vpop.f32.mrb[0].mxu0
    %v3571 = vadd.f32 %v3454, %v3570
    %v3572 = vpop.f32.mrb[0].mxu0
    %3573 = vmatprep.mubr.f32.mxu0 0.0
    %v3574 = vand.u32 %v2810, 4294901760
    %3575 = vmatmul.mubr.f32.gmra.mrb[0].mxu0 %v3574
    %v3576 = vpop.f32.mrb[0].mxu0
    %v3577 = vadd.f32 %v3460, %v3576
    %v3578 = vpop.f32.mrb[0].mxu0
    %3579 = vmatprep.mubr.f32.mxu0 0.0
    %v3580 = vand.u32 %v2813, 4294901760
    %3581 = vmatmul.mubr.f32.gmra.mrb[0].mxu0 %v3580
    %v3582 = vpop.f32.mrb[0].mxu0
    %v3583 = vadd.f32 %v3466, %v3582
    %v3584 = vpop.f32.mrb[0].mxu0
    %3585 = vmatprep.mubr.f32.mxu0 0.0
    %v3586 = vand.u32 %v2816, 4294901760
    %3587 = vmatmul.mubr.f32.gmra.mrb[0].mxu0 %v3586
    %v3588 = vpop.f32.mrb[0].mxu0
    %v3589 = vadd.f32 %v3472, %v3588
    %v3590 = vpop.f32.mrb[0].mxu0
    %3591 = vmatprep.mubr.f32.mxu0 0.0
    %v3592 = vand.u32 %v2819, 4294901760
    %3593 = vmatmul.mubr.f32.gmra.mrb[0].mxu0 %v3592
    %v3594 = vpop.f32.mrb[0].mxu0
    %v3595 = vadd.f32 %v3478, %v3594
    %v3596 = vpop.f32.mrb[0].mxu0
    %3597 = vmatprep.mubr.f32.mxu0 0.0
    %v3598 = vand.u32 %v2822, 4294901760
    %3599 = vmatmul.mubr.f32.gmra.mrb[0].mxu0 %v3598
    %v3600 = vpop.f32.mrb[0].mxu0
    %v3601 = vadd.f32 %v3484, %v3600
    %v3602 = vpop.f32.mrb[0].mxu0
    %3603 = vmatprep.mubr.f32.mxu0 0.0
    %v3604 = vand.u32 %v2825, 4294901760
    %3605 = vmatmul.mubr.f32.gmra.mrb[0].mxu0 %v3604
    %v3606 = vpop.f32.mrb[0].mxu0
    %v3607 = vadd.f32 %v3490, %v3606
    %v3608 = vpop.f32.mrb[0].mxu0
    %3609 = vmatprep.mubr.f32.mxu0 0.0
    %v3610 = vand.u32 %v2828, 4294901760
    %3611 = vmatmul.mubr.f32.gmra.mrb[0].mxu0 %v3610
    %v3612 = vpop.f32.mrb[0].mxu0
    %v3613 = vadd.f32 %v3496, %v3612
    %v3614 = vpop.f32.mrb[0].mxu0
    %3615 = vdwg.mxu0
    %v3616 = vsel %vm874, %v3571, 0.0
    %v3617 = vrot.slane %v3616, 4
    %v3618 = vadd.f32 %v3616, %v3617
    %v3619 = vrot.slane %v3618, 2
    %v3620 = vadd.f32 %v3618, %v3619
    %v3621 = vrot.slane %v3620, 1
    %v3622 = vadd.f32 %v3620, %v3621
    %v3623 = vsel %vm874, %v3577, 0.0
    %v3624 = vrot.slane %v3623, 4
    %v3625 = vadd.f32 %v3623, %v3624
    %v3626 = vrot.slane %v3625, 2
    %v3627 = vadd.f32 %v3625, %v3626
    %v3628 = vrot.slane %v3627, 1
    %v3629 = vadd.f32 %v3627, %v3628
    %v3630 = vsel %vm874, %v3583, 0.0
    %v3631 = vrot.slane %v3630, 4
    %v3632 = vadd.f32 %v3630, %v3631
    %v3633 = vrot.slane %v3632, 2
    %v3634 = vadd.f32 %v3632, %v3633
    %v3635 = vrot.slane %v3634, 1
    %v3636 = vadd.f32 %v3634, %v3635
    %v3637 = vsel %vm874, %v3589, 0.0
    %v3638 = vrot.slane %v3637, 4
    %v3639 = vadd.f32 %v3637, %v3638
    %v3640 = vrot.slane %v3639, 2
    %v3641 = vadd.f32 %v3639, %v3640
    %v3642 = vrot.slane %v3641, 1
    %v3643 = vadd.f32 %v3641, %v3642
    %v3644 = vsel %vm874, %v3595, 0.0
    %v3645 = vrot.slane %v3644, 4
    %v3646 = vadd.f32 %v3644, %v3645
    %v3647 = vrot.slane %v3646, 2
    %v3648 = vadd.f32 %v3646, %v3647
    %v3649 = vrot.slane %v3648, 1
    %v3650 = vadd.f32 %v3648, %v3649
    %v3651 = vsel %vm874, %v3601, 0.0
    %v3652 = vrot.slane %v3651, 4
    %v3653 = vadd.f32 %v3651, %v3652
    %v3654 = vrot.slane %v3653, 2
    %v3655 = vadd.f32 %v3653, %v3654
    %v3656 = vrot.slane %v3655, 1
    %v3657 = vadd.f32 %v3655, %v3656
    %v3658 = vsel %vm874, %v3607, 0.0
    %v3659 = vrot.slane %v3658, 4
    %v3660 = vadd.f32 %v3658, %v3659
    %v3661 = vrot.slane %v3660, 2
    %v3662 = vadd.f32 %v3660, %v3661
    %v3663 = vrot.slane %v3662, 1
    %v3664 = vadd.f32 %v3662, %v3663
    %v3665 = vsel %vm874, %v3613, 0.0
    %v3666 = vrot.slane %v3665, 4
    %v3667 = vadd.f32 %v3665, %v3666
    %v3668 = vrot.slane %v3667, 2
    %v3669 = vadd.f32 %v3667, %v3668
    %v3670 = vrot.slane %v3669, 1
    %v3671 = vadd.f32 %v3669, %v3670
    %v3672 = vmul.f32 %v3622, 0.125
    %v3673 = vmul.f32 %v3629, 0.125
    %v3674 = vmul.f32 %v3636, 0.125
    %v3675 = vmul.f32 %v3643, 0.125
    %v3676 = vmul.f32 %v3650, 0.125
    %v3677 = vmul.f32 %v3657, 0.125
    %v3678 = vmul.f32 %v3664, 0.125
    %v3679 = vmul.f32 %v3671, 0.125
    %v3680 = vmul.f32 %v3571, %v3571
    %v3681 = vmul.f32 %v3577, %v3577
    %v3682 = vmul.f32 %v3583, %v3583
    %v3683 = vmul.f32 %v3589, %v3589
    %v3684 = vmul.f32 %v3595, %v3595
    %v3685 = vmul.f32 %v3601, %v3601
    %v3686 = vmul.f32 %v3607, %v3607
    %v3687 = vmul.f32 %v3613, %v3613
    %v3688 = vsel %vm874, %v3680, 0.0
    %v3689 = vrot.slane %v3688, 4
    %v3690 = vadd.f32 %v3688, %v3689
    %v3691 = vrot.slane %v3690, 2
    %v3692 = vadd.f32 %v3690, %v3691
    %v3693 = vrot.slane %v3692, 1
    %v3694 = vadd.f32 %v3692, %v3693
    %v3695 = vsel %vm874, %v3681, 0.0
    %v3696 = vrot.slane %v3695, 4
    %v3697 = vadd.f32 %v3695, %v3696
    %v3698 = vrot.slane %v3697, 2
    %v3699 = vadd.f32 %v3697, %v3698
    %v3700 = vrot.slane %v3699, 1
    %v3701 = vadd.f32 %v3699, %v3700
    %v3702 = vsel %vm874, %v3682, 0.0
    %v3703 = vrot.slane %v3702, 4
    %v3704 = vadd.f32 %v3702, %v3703
    %v3705 = vrot.slane %v3704, 2
    %v3706 = vadd.f32 %v3704, %v3705
    %v3707 = vrot.slane %v3706, 1
    %v3708 = vadd.f32 %v3706, %v3707
    %v3709 = vsel %vm874, %v3683, 0.0
    %v3710 = vrot.slane %v3709, 4
    %v3711 = vadd.f32 %v3709, %v3710
    %v3712 = vrot.slane %v3711, 2
    %v3713 = vadd.f32 %v3711, %v3712
    %v3714 = vrot.slane %v3713, 1
    %v3715 = vadd.f32 %v3713, %v3714
    %v3716 = vsel %vm874, %v3684, 0.0
    %v3717 = vrot.slane %v3716, 4
    %v3718 = vadd.f32 %v3716, %v3717
    %v3719 = vrot.slane %v3718, 2
    %v3720 = vadd.f32 %v3718, %v3719
    %v3721 = vrot.slane %v3720, 1
    %v3722 = vadd.f32 %v3720, %v3721
    %v3723 = vsel %vm874, %v3685, 0.0
    %v3724 = vrot.slane %v3723, 4
    %v3725 = vadd.f32 %v3723, %v3724
    %v3726 = vrot.slane %v3725, 2
    %v3727 = vadd.f32 %v3725, %v3726
    %v3728 = vrot.slane %v3727, 1
    %v3729 = vadd.f32 %v3727, %v3728
    %v3730 = vsel %vm874, %v3686, 0.0
    %v3731 = vrot.slane %v3730, 4
    %v3732 = vadd.f32 %v3730, %v3731
    %v3733 = vrot.slane %v3732, 2
    %v3734 = vadd.f32 %v3732, %v3733
    %v3735 = vrot.slane %v3734, 1
    %v3736 = vadd.f32 %v3734, %v3735
    %v3737 = vsel %vm874, %v3687, 0.0
    %v3738 = vrot.slane %v3737, 4
    %v3739 = vadd.f32 %v3737, %v3738
    %v3740 = vrot.slane %v3739, 2
    %v3741 = vadd.f32 %v3739, %v3740
    %v3742 = vrot.slane %v3741, 1
    %v3743 = vadd.f32 %v3741, %v3742
    %v3744 = vmul.f32 %v3694, 0.125
    %v3745 = vmul.f32 %v3701, 0.125
    %v3746 = vmul.f32 %v3708, 0.125
    %v3747 = vmul.f32 %v3715, 0.125
    %v3748 = vmul.f32 %v3722, 0.125
    %v3749 = vmul.f32 %v3729, 0.125
    %v3750 = vmul.f32 %v3736, 0.125
    %v3751 = vmul.f32 %v3743, 0.125
    %v3752 = vmul.f32 %v3672, %v3672
    %v3753 = vmul.f32 %v3673, %v3673
    %v3754 = vmul.f32 %v3674, %v3674
    %v3755 = vmul.f32 %v3675, %v3675
    %v3756 = vmul.f32 %v3676, %v3676
    %v3757 = vmul.f32 %v3677, %v3677
    %v3758 = vmul.f32 %v3678, %v3678
    %v3759 = vmul.f32 %v3679, %v3679
    %v3760 = vsub.f32 %v3744, %v3752
    %v3761 = vsub.f32 %v3745, %v3753
    %v3762 = vsub.f32 %v3746, %v3754
    %v3763 = vsub.f32 %v3747, %v3755
    %v3764 = vsub.f32 %v3748, %v3756
    %v3765 = vsub.f32 %v3749, %v3757
    %v3766 = vsub.f32 %v3750, %v3758
    %v3767 = vsub.f32 %v3751, %v3759
    %v3768 = vadd.f32 %v3760, 1e-05
    %v3769 = vadd.f32 %v3761, 1e-05
    %v3770 = vadd.f32 %v3762, 1e-05
    %v3771 = vadd.f32 %v3763, 1e-05
    %v3772 = vadd.f32 %v3764, 1e-05
    %v3773 = vadd.f32 %v3765, 1e-05
    %v3774 = vadd.f32 %v3766, 1e-05
    %v3775 = vadd.f32 %v3767, 1e-05
    %v3776 = vrsqrt.pop %v3768
    %v3777 = vrsqrt.pop %v3769
    %v3778 = vrsqrt.pop %v3770
    %v3779 = vrsqrt.pop %v3771
    %v3780 = vrsqrt.pop %v3772
    %v3781 = vrsqrt.pop %v3773
    %v3782 = vrsqrt.pop %v3774
    %v3783 = vrsqrt.pop %v3775
    %v3784 = vmul.f32 %v71, %v3776
    %v3785 = vmul.f32 %v71, %v3777
    %v3786 = vmul.f32 %v71, %v3778
    %v3787 = vmul.f32 %v71, %v3779
    %v3788 = vmul.f32 %v71, %v3780
    %v3789 = vmul.f32 %v71, %v3781
    %v3790 = vmul.f32 %v71, %v3782
    %v3791 = vmul.f32 %v71, %v3783
    %v3792 = vsub.f32 %v3571, %v3672
    %v3793 = vsub.f32 %v3577, %v3673
    %v3794 = vsub.f32 %v3583, %v3674
    %v3795 = vsub.f32 %v3589, %v3675
    %v3796 = vsub.f32 %v3595, %v3676
    %v3797 = vsub.f32 %v3601, %v3677
    %v3798 = vsub.f32 %v3607, %v3678
    %v3799 = vsub.f32 %v3613, %v3679
    %v3808 = vlaneseq
    %v3809 = vshrl.u32 %v3808, 7
    %v3810 = vsub.s32 0, %v3809
    %v3811 = vrot.slane %v3784, %v3810
    %v3812 = vlaneseq
    %v3813 = vshrl.u32 %v3812, 7
    %v3814 = vsub.s32 0, %v3813
    %v3815 = vrot.slane %v3785, %v3814
    %v3816 = vlaneseq
    %v3817 = vshrl.u32 %v3816, 7
    %v3818 = vsub.s32 0, %v3817
    %v3819 = vrot.slane %v3786, %v3818
    %v3820 = vlaneseq
    %v3821 = vshrl.u32 %v3820, 7
    %v3822 = vsub.s32 0, %v3821
    %v3823 = vrot.slane %v3787, %v3822
    %v3824 = vlaneseq
    %v3825 = vshrl.u32 %v3824, 7
    %v3826 = vsub.s32 0, %v3825
    %v3827 = vrot.slane %v3788, %v3826
    %v3828 = vlaneseq
    %v3829 = vshrl.u32 %v3828, 7
    %v3830 = vsub.s32 0, %v3829
    %v3831 = vrot.slane %v3789, %v3830
    %v3832 = vlaneseq
    %v3833 = vshrl.u32 %v3832, 7
    %v3834 = vsub.s32 0, %v3833
    %v3835 = vrot.slane %v3790, %v3834
    %v3836 = vlaneseq
    %v3837 = vshrl.u32 %v3836, 7
    %v3838 = vsub.s32 0, %v3837
    %v3839 = vrot.slane %v3791, %v3838
    %v3848 = vmul.f32 %v3792, %v3811
    %v3849 = vmul.f32 %v3793, %v3815
    %v3850 = vmul.f32 %v3794, %v3819
    %v3851 = vmul.f32 %v3795, %v3823
    %v3852 = vmul.f32 %v3796, %v3827
    %v3853 = vmul.f32 %v3797, %v3831
    %v3854 = vmul.f32 %v3798, %v3835
    %v3855 = vmul.f32 %v3799, %v3839
    %v3856 = vadd.f32 %v3848, %v2496
    %v3857 = vadd.f32 %v3849, %v2496
    %v3858 = vadd.f32 %v3850, %v2496
    %v3859 = vadd.f32 %v3851, %v2496
    %v3860 = vadd.f32 %v3852, %v2496
    %v3861 = vadd.f32 %v3853, %v2496
    %v3862 = vadd.f32 %v3854, %v2496
    %v3863 = vadd.f32 %v3855, %v2496
    %v3864 = vadd.f32 %v3856, %v2512
    %v3865 = vmax.f32 %v3864, 0.0
    %v3866 = vsel %vm874, %v3865, 0.0
    %v3867 = vrot.slane %v3866, 4
    %v3868 = vadd.f32 %v3866, %v3867
    %v3869 = vrot.slane %v3868, 2
    %v3870 = vadd.f32 %v3868, %v3869
    %v3871 = vrot.slane %v3870, 1
    %v3872 = vadd.f32 %v3870, %v3871
    %v3873 = vmul.f32 %v3872, 0.125
    %v3874 = vmul.f32 %v3865, %v3865
    %v3875 = vsel %vm874, %v3874, 0.0
    %v3876 = vrot.slane %v3875, 4
    %v3877 = vadd.f32 %v3875, %v3876
    %v3878 = vrot.slane %v3877, 2
    %v3879 = vadd.f32 %v3877, %v3878
    %v3880 = vrot.slane %v3879, 1
    %v3881 = vadd.f32 %v3879, %v3880
    %v3882 = vmul.f32 %v3881, 0.125
    %v3883 = vmul.f32 %v3873, %v3873
    %v3884 = vsub.f32 %v3882, %v3883
    %v3885 = vadd.f32 %v3884, 1e-05
    %v3886 = vrsqrt.pop %v3885
    %v3887 = vmul.f32 %v73, %v3886
    %v3888 = vsub.f32 %v3865, %v3873
    %v3890 = vlaneseq
    %v3891 = vshrl.u32 %v3890, 7
    %v3892 = vsub.s32 0, %v3891
    %v3893 = vrot.slane %v3887, %v3892
    %v3895 = vmul.f32 %v3888, %v3893
    %v3896 = vadd.f32 %v3895, %v2549
    %v3897 = vmul.f32 %v3896, %v2510
    %v3898 = vadd.f32 %v3857, %v3897
    %v3899 = vmax.f32 %v3898, 0.0
    %v3900 = vsel %vm874, %v3899, 0.0
    %v3901 = vrot.slane %v3900, 4
    %v3902 = vadd.f32 %v3900, %v3901
    %v3903 = vrot.slane %v3902, 2
    %v3904 = vadd.f32 %v3902, %v3903
    %v3905 = vrot.slane %v3904, 1
    %v3906 = vadd.f32 %v3904, %v3905
    %v3907 = vmul.f32 %v3906, 0.125
    %v3908 = vmul.f32 %v3899, %v3899
    %v3909 = vsel %vm874, %v3908, 0.0
    %v3910 = vrot.slane %v3909, 4
    %v3911 = vadd.f32 %v3909, %v3910
    %v3912 = vrot.slane %v3911, 2
    %v3913 = vadd.f32 %v3911, %v3912
    %v3914 = vrot.slane %v3913, 1
    %v3915 = vadd.f32 %v3913, %v3914
    %v3916 = vmul.f32 %v3915, 0.125
    %v3917 = vmul.f32 %v3907, %v3907
    %v3918 = vsub.f32 %v3916, %v3917
    %v3919 = vadd.f32 %v3918, 1e-05
    %v3920 = vrsqrt.pop %v3919
    %v3921 = vmul.f32 %v73, %v3920
    %v3922 = vsub.f32 %v3899, %v3907
    %v3924 = vlaneseq
    %v3925 = vshrl.u32 %v3924, 7
    %v3926 = vsub.s32 0, %v3925
    %v3927 = vrot.slane %v3921, %v3926
    %v3929 = vmul.f32 %v3922, %v3927
    %v3930 = vadd.f32 %v3929, %v2549
    %v3931 = vmul.f32 %v3930, %v2510
    %v3932 = vadd.f32 %v3858, %v3931
    %v3933 = vmax.f32 %v3932, 0.0
    %v3934 = vsel %vm874, %v3933, 0.0
    %v3935 = vrot.slane %v3934, 4
    %v3936 = vadd.f32 %v3934, %v3935
    %v3937 = vrot.slane %v3936, 2
    %v3938 = vadd.f32 %v3936, %v3937
    %v3939 = vrot.slane %v3938, 1
    %v3940 = vadd.f32 %v3938, %v3939
    %v3941 = vmul.f32 %v3940, 0.125
    %v3942 = vmul.f32 %v3933, %v3933
    %v3943 = vsel %vm874, %v3942, 0.0
    %v3944 = vrot.slane %v3943, 4
    %v3945 = vadd.f32 %v3943, %v3944
    %v3946 = vrot.slane %v3945, 2
    %v3947 = vadd.f32 %v3945, %v3946
    %v3948 = vrot.slane %v3947, 1
    %v3949 = vadd.f32 %v3947, %v3948
    %v3950 = vmul.f32 %v3949, 0.125
    %v3951 = vmul.f32 %v3941, %v3941
    %v3952 = vsub.f32 %v3950, %v3951
    %v3953 = vadd.f32 %v3952, 1e-05
    %v3954 = vrsqrt.pop %v3953
    %v3955 = vmul.f32 %v73, %v3954
    %v3956 = vsub.f32 %v3933, %v3941
    %v3958 = vlaneseq
    %v3959 = vshrl.u32 %v3958, 7
    %v3960 = vsub.s32 0, %v3959
    %v3961 = vrot.slane %v3955, %v3960
    %v3963 = vmul.f32 %v3956, %v3961
    %v3964 = vadd.f32 %v3963, %v2549
    %v3965 = vmul.f32 %v3964, %v2510
    %v3966 = vadd.f32 %v3859, %v3965
    %v3967 = vmax.f32 %v3966, 0.0
    %v3968 = vsel %vm874, %v3967, 0.0
    %v3969 = vrot.slane %v3968, 4
    %v3970 = vadd.f32 %v3968, %v3969
    %v3971 = vrot.slane %v3970, 2
    %v3972 = vadd.f32 %v3970, %v3971
    %v3973 = vrot.slane %v3972, 1
    %v3974 = vadd.f32 %v3972, %v3973
    %v3975 = vmul.f32 %v3974, 0.125
    %v3976 = vmul.f32 %v3967, %v3967
    %v3977 = vsel %vm874, %v3976, 0.0
    %v3978 = vrot.slane %v3977, 4
    %v3979 = vadd.f32 %v3977, %v3978
    %v3980 = vrot.slane %v3979, 2
    %v3981 = vadd.f32 %v3979, %v3980
    %v3982 = vrot.slane %v3981, 1
    %v3983 = vadd.f32 %v3981, %v3982
    %v3984 = vmul.f32 %v3983, 0.125
    %v3985 = vmul.f32 %v3975, %v3975
    %v3986 = vsub.f32 %v3984, %v3985
    %v3987 = vadd.f32 %v3986, 1e-05
    %v3988 = vrsqrt.pop %v3987
    %v3989 = vmul.f32 %v73, %v3988
    %v3990 = vsub.f32 %v3967, %v3975
    %v3992 = vlaneseq
    %v3993 = vshrl.u32 %v3992, 7
    %v3994 = vsub.s32 0, %v3993
    %v3995 = vrot.slane %v3989, %v3994
    %v3997 = vmul.f32 %v3990, %v3995
    %v3998 = vadd.f32 %v3997, %v2549
    %v3999 = vmul.f32 %v3998, %v2510
    %v4000 = vadd.f32 %v3860, %v3999
    %v4001 = vmax.f32 %v4000, 0.0
    %v4002 = vsel %vm874, %v4001, 0.0
    %v4003 = vrot.slane %v4002, 4
    %v4004 = vadd.f32 %v4002, %v4003
    %v4005 = vrot.slane %v4004, 2
    %v4006 = vadd.f32 %v4004, %v4005
    %v4007 = vrot.slane %v4006, 1
    %v4008 = vadd.f32 %v4006, %v4007
    %v4009 = vmul.f32 %v4008, 0.125
    %v4010 = vmul.f32 %v4001, %v4001
    %v4011 = vsel %vm874, %v4010, 0.0
    %v4012 = vrot.slane %v4011, 4
    %v4013 = vadd.f32 %v4011, %v4012
    %v4014 = vrot.slane %v4013, 2
    %v4015 = vadd.f32 %v4013, %v4014
    %v4016 = vrot.slane %v4015, 1
    %v4017 = vadd.f32 %v4015, %v4016
    %v4018 = vmul.f32 %v4017, 0.125
    %v4019 = vmul.f32 %v4009, %v4009
    %v4020 = vsub.f32 %v4018, %v4019
    %v4021 = vadd.f32 %v4020, 1e-05
    %v4022 = vrsqrt.pop %v4021
    %v4023 = vmul.f32 %v73, %v4022
    %v4024 = vsub.f32 %v4001, %v4009
    %v4026 = vlaneseq
    %v4027 = vshrl.u32 %v4026, 7
    %v4028 = vsub.s32 0, %v4027
    %v4029 = vrot.slane %v4023, %v4028
    %v4031 = vmul.f32 %v4024, %v4029
    %v4032 = vadd.f32 %v4031, %v2549
    %v4033 = vmul.f32 %v4032, %v2510
    %v4034 = vadd.f32 %v3861, %v4033
    %v4035 = vmax.f32 %v4034, 0.0
    %v4036 = vsel %vm874, %v4035, 0.0
    %v4037 = vrot.slane %v4036, 4
    %v4038 = vadd.f32 %v4036, %v4037
    %v4039 = vrot.slane %v4038, 2
    %v4040 = vadd.f32 %v4038, %v4039
    %v4041 = vrot.slane %v4040, 1
    %v4042 = vadd.f32 %v4040, %v4041
    %v4043 = vmul.f32 %v4042, 0.125
    %v4044 = vmul.f32 %v4035, %v4035
    %v4045 = vsel %vm874, %v4044, 0.0
    %v4046 = vrot.slane %v4045, 4
    %v4047 = vadd.f32 %v4045, %v4046
    %v4048 = vrot.slane %v4047, 2
    %v4049 = vadd.f32 %v4047, %v4048
    %v4050 = vrot.slane %v4049, 1
    %v4051 = vadd.f32 %v4049, %v4050
    %v4052 = vmul.f32 %v4051, 0.125
    %v4053 = vmul.f32 %v4043, %v4043
    %v4054 = vsub.f32 %v4052, %v4053
    %v4055 = vadd.f32 %v4054, 1e-05
    %v4056 = vrsqrt.pop %v4055
    %v4057 = vmul.f32 %v73, %v4056
    %v4058 = vsub.f32 %v4035, %v4043
    %v4060 = vlaneseq
    %v4061 = vshrl.u32 %v4060, 7
    %v4062 = vsub.s32 0, %v4061
    %v4063 = vrot.slane %v4057, %v4062
    %v4065 = vmul.f32 %v4058, %v4063
    %v4066 = vadd.f32 %v4065, %v2549
    %v4067 = vmul.f32 %v4066, %v2510
    %v4068 = vadd.f32 %v3862, %v4067
    %v4069 = vmax.f32 %v4068, 0.0
    %v4070 = vsel %vm874, %v4069, 0.0
    %v4071 = vrot.slane %v4070, 4
    %v4072 = vadd.f32 %v4070, %v4071
    %v4073 = vrot.slane %v4072, 2
    %v4074 = vadd.f32 %v4072, %v4073
    %v4075 = vrot.slane %v4074, 1
    %v4076 = vadd.f32 %v4074, %v4075
    %v4077 = vmul.f32 %v4076, 0.125
    %v4078 = vmul.f32 %v4069, %v4069
    %v4079 = vsel %vm874, %v4078, 0.0
    %v4080 = vrot.slane %v4079, 4
    %v4081 = vadd.f32 %v4079, %v4080
    %v4082 = vrot.slane %v4081, 2
    %v4083 = vadd.f32 %v4081, %v4082
    %v4084 = vrot.slane %v4083, 1
    %v4085 = vadd.f32 %v4083, %v4084
    %v4086 = vmul.f32 %v4085, 0.125
    %v4087 = vmul.f32 %v4077, %v4077
    %v4088 = vsub.f32 %v4086, %v4087
    %v4089 = vadd.f32 %v4088, 1e-05
    %v4090 = vrsqrt.pop %v4089
    %v4091 = vmul.f32 %v73, %v4090
    %v4092 = vsub.f32 %v4069, %v4077
    %v4094 = vlaneseq
    %v4095 = vshrl.u32 %v4094, 7
    %v4096 = vsub.s32 0, %v4095
    %v4097 = vrot.slane %v4091, %v4096
    %v4099 = vmul.f32 %v4092, %v4097
    %v4100 = vadd.f32 %v4099, %v2549
    %v4101 = vmul.f32 %v4100, %v2510
    %v4102 = vadd.f32 %v3863, %v4101
    %v4103 = vmax.f32 %v4102, 0.0
    %v4104 = vsel %vm874, %v4103, 0.0
    %v4105 = vrot.slane %v4104, 4
    %v4106 = vadd.f32 %v4104, %v4105
    %v4107 = vrot.slane %v4106, 2
    %v4108 = vadd.f32 %v4106, %v4107
    %v4109 = vrot.slane %v4108, 1
    %v4110 = vadd.f32 %v4108, %v4109
    %v4111 = vmul.f32 %v4110, 0.125
    %v4112 = vmul.f32 %v4103, %v4103
    %v4113 = vsel %vm874, %v4112, 0.0
    %v4114 = vrot.slane %v4113, 4
    %v4115 = vadd.f32 %v4113, %v4114
    %v4116 = vrot.slane %v4115, 2
    %v4117 = vadd.f32 %v4115, %v4116
    %v4118 = vrot.slane %v4117, 1
    %v4119 = vadd.f32 %v4117, %v4118
    %v4120 = vmul.f32 %v4119, 0.125
    %v4121 = vmul.f32 %v4111, %v4111
    %v4122 = vsub.f32 %v4120, %v4121
    %v4123 = vadd.f32 %v4122, 1e-05
    %v4124 = vrsqrt.pop %v4123
    %v4125 = vmul.f32 %v73, %v4124
    %v4126 = vsub.f32 %v4103, %v4111
    %v4128 = vlaneseq
    %v4129 = vshrl.u32 %v4128, 7
    %v4130 = vsub.s32 0, %v4129
    %v4131 = vrot.slane %v4125, %v4130
    %v4133 = vmul.f32 %v4126, %v4131
    %v4134 = vadd.f32 %v4133, %v2549
    %v4135 = vld [vmem:[%s15] sm:$0xff]
    %v4136 = vld [vmem:[%s15 + $0x8] sm:$0xff]
    %v4137 = vld [vmem:[%s15 + $0x10] sm:$0xff]
    %v4138 = vld [vmem:[%s15 + $0x18] sm:$0xff]
    %v4139 = vld [vmem:[%s16] sm:$0x1]
    %v4141 = vlaneseq
    %v4142 = vshrl.u32 %v4141, 7
    %v4143 = vsub.s32 0, %v4142
    %v4144 = vrot.slane %v4139, %v4143
    %v4147 = vsel %vm874, %v4134, 0
    %4149 = vmatprep.subr.mxu0 0.0
    %v4150 = vand.u32 %v4135, 4294901760
    %4151 = vmatpush1.msra.mxu0 %v4150
    %4152 = vmatprep.subr.mxu0 0.0
    %v4153 = vand.u32 %v4136, 4294901760
    %4154 = vmatpush1.msra.mxu0 %v4153
    %4155 = vmatprep.subr.mxu0 0.0
    %v4156 = vand.u32 %v4137, 4294901760
    %4157 = vmatpush1.msra.mxu0 %v4156
    %4158 = vmatprep.subr.mxu0 0.0
    %v4159 = vand.u32 %v4138, 4294901760
    %4160 = vmatpush1.msra.mxu0 %v4159
    %4161 = vmatprep.subr.mxu0 0.0
    %4162 = vmatpush1.msra.mxu0 0.0
    %4163 = vmatprep.subr.mxu0 0.0
    %4164 = vmatpush1.msra.mxu0 0.0
    %4165 = vmatprep.subr.mxu0 0.0
    %4166 = vmatpush1.msra.mxu0 0.0
    %4167 = vmatprep.subr.mxu0 0.0
    %4168 = vmatpush1.msra.mxu0 0.0
    %4169 = vmatprep.subr.mxu0 0.0
    %4170 = vmatpush1.msra.mxu0 0.0
    %4171 = vmatprep.subr.mxu0 0.0
    %4172 = vmatpush1.msra.mxu0 0.0
    %4173 = vmatprep.subr.mxu0 0.0
    %4174 = vmatpush1.msra.mxu0 0.0
    %4175 = vmatprep.subr.mxu0 0.0
    %4176 = vmatpush1.msra.mxu0 0.0
    %4177 = vmatprep.subr.mxu0 0.0
    %4178 = vmatpush1.msra.mxu0 0.0
    %4179 = vmatprep.subr.mxu0 0.0
    %4180 = vmatpush1.msra.mxu0 0.0
    %4181 = vmatprep.subr.mxu0 0.0
    %4182 = vmatpush1.msra.mxu0 0.0
    %4183 = vmatprep.subr.mxu0 0.0
    %4184 = vmatpush1.msra.mxu0 0.0
    %4185 = vmatprep.subr.mxu0 0.0
    %4186 = vmatpush1.msra.mxu0 0.0
    %4187 = vmatprep.subr.mxu0 0.0
    %4188 = vmatpush1.msra.mxu0 0.0
    %4189 = vmatprep.subr.mxu0 0.0
    %4190 = vmatpush1.msra.mxu0 0.0
    %4191 = vmatprep.subr.mxu0 0.0
    %4192 = vmatpush1.msra.mxu0 0.0
    %4193 = vmatprep.subr.mxu0 0.0
    %4194 = vmatpush1.msra.mxu0 0.0
    %4195 = vmatprep.subr.mxu0 0.0
    %4196 = vmatpush1.msra.mxu0 0.0
    %4197 = vmatprep.subr.mxu0 0.0
    %4198 = vmatpush1.msra.mxu0 0.0
    %4199 = vmatprep.subr.mxu0 0.0
    %4200 = vmatpush1.msra.mxu0 0.0
    %4201 = vmatprep.subr.mxu0 0.0
    %4202 = vmatpush1.msra.mxu0 0.0
    %4203 = vmatprep.subr.mxu0 0.0
    %4204 = vmatpush1.msra.mxu0 0.0
    %4205 = vmatprep.subr.mxu0 0.0
    %4206 = vmatpush1.msra.mxu0 0.0
    %4207 = vmatprep.subr.mxu0 0.0
    %4208 = vmatpush1.msra.mxu0 0.0
    %4209 = vmatprep.subr.mxu0 0.0
    %4210 = vmatpush1.msra.mxu0 0.0
    %4211 = vmatprep.subr.mxu0 0.0
    %4212 = vmatpush1.msra.mxu0 0.0
    %4213 = vmatprep.subr.mxu0 0.0
    %4214 = vmatpush1.msra.mxu0 0.0
    %4215 = vmatprep.subr.mxu0 0.0
    %4216 = vmatpush1.msra.mxu0 0.0
    %4217 = vmatprep.mubr.f32.mxu0 0.0
    %v4218 = vand.u32 %v4147, 4294901760
    %v4219 = vsub.f32 %v4147, %v4218
    %v4220 = vand.u32 %v4219, 4294901760
    %v4221 = vsub.f32 %v4219, %v4220
    %v4222 = vand.u32 %v4221, 4294901760
    %4223 = vmatmul.mubr.f32.gmra.mrb[0].mxu0 %v4222
    %v4224 = vpop.f32.mrb[0].mxu0
    %v4225 = vadd.f32 %v4144, %v4224
    %v4226 = vpop.f32.mrb[0].mxu0
    %4227 = vdwg.mxu0
    %4228 = vmatprep.subr.mxu0 0.0
    %v4229 = vand.u32 %v4135, 4294901760
    %v4230 = vsub.f32 %v4135, %v4229
    %v4231 = vand.u32 %v4230, 4294901760
    %v4232 = vsub.f32 %v4230, %v4231
    %v4233 = vand.u32 %v4232, 4294901760
    %4234 = vmatpush1.msra.mxu0 %v4233
    %4235 = vmatprep.subr.mxu0 0.0
    %v4236 = vand.u32 %v4136, 4294901760
    %v4237 = vsub.f32 %v4136, %v4236
    %v4238 = vand.u32 %v4237, 4294901760
    %v4239 = vsub.f32 %v4237, %v4238
    %v4240 = vand.u32 %v4239, 4294901760
    %4241 = vmatpush1.msra.mxu0 %v4240
    %4242 = vmatprep.subr.mxu0 0.0
    %v4243 = vand.u32 %v4137, 4294901760
    %v4244 = vsub.f32 %v4137, %v4243
    %v4245 = vand.u32 %v4244, 4294901760
    %v4246 = vsub.f32 %v4244, %v4245
    %v4247 = vand.u32 %v4246, 4294901760
    %4248 = vmatpush1.msra.mxu0 %v4247
    %4249 = vmatprep.subr.mxu0 0.0
    %v4250 = vand.u32 %v4138, 4294901760
    %v4251 = vsub.f32 %v4138, %v4250
    %v4252 = vand.u32 %v4251, 4294901760
    %v4253 = vsub.f32 %v4251, %v4252
    %v4254 = vand.u32 %v4253, 4294901760
    %4255 = vmatpush1.msra.mxu0 %v4254
    %4256 = vmatprep.subr.mxu0 0.0
    %4257 = vmatpush1.msra.mxu0 0.0
    %4258 = vmatprep.subr.mxu0 0.0
    %4259 = vmatpush1.msra.mxu0 0.0
    %4260 = vmatprep.subr.mxu0 0.0
    %4261 = vmatpush1.msra.mxu0 0.0
    %4262 = vmatprep.subr.mxu0 0.0
    %4263 = vmatpush1.msra.mxu0 0.0
    %4264 = vmatprep.subr.mxu0 0.0
    %4265 = vmatpush1.msra.mxu0 0.0
    %4266 = vmatprep.subr.mxu0 0.0
    %4267 = vmatpush1.msra.mxu0 0.0
    %4268 = vmatprep.subr.mxu0 0.0
    %4269 = vmatpush1.msra.mxu0 0.0
    %4270 = vmatprep.subr.mxu0 0.0
    %4271 = vmatpush1.msra.mxu0 0.0
    %4272 = vmatprep.subr.mxu0 0.0
    %4273 = vmatpush1.msra.mxu0 0.0
    %4274 = vmatprep.subr.mxu0 0.0
    %4275 = vmatpush1.msra.mxu0 0.0
    %4276 = vmatprep.subr.mxu0 0.0
    %4277 = vmatpush1.msra.mxu0 0.0
    %4278 = vmatprep.subr.mxu0 0.0
    %4279 = vmatpush1.msra.mxu0 0.0
    %4280 = vmatprep.subr.mxu0 0.0
    %4281 = vmatpush1.msra.mxu0 0.0
    %4282 = vmatprep.subr.mxu0 0.0
    %4283 = vmatpush1.msra.mxu0 0.0
    %4284 = vmatprep.subr.mxu0 0.0
    %4285 = vmatpush1.msra.mxu0 0.0
    %4286 = vmatprep.subr.mxu0 0.0
    %4287 = vmatpush1.msra.mxu0 0.0
    %4288 = vmatprep.subr.mxu0 0.0
    %4289 = vmatpush1.msra.mxu0 0.0
    %4290 = vmatprep.subr.mxu0 0.0
    %4291 = vmatpush1.msra.mxu0 0.0
    %4292 = vmatprep.subr.mxu0 0.0
    %4293 = vmatpush1.msra.mxu0 0.0
    %4294 = vmatprep.subr.mxu0 0.0
    %4295 = vmatpush1.msra.mxu0 0.0
    %4296 = vmatprep.subr.mxu0 0.0
    %4297 = vmatpush1.msra.mxu0 0.0
    %4298 = vmatprep.subr.mxu0 0.0
    %4299 = vmatpush1.msra.mxu0 0.0
    %4300 = vmatprep.subr.mxu0 0.0
    %4301 = vmatpush1.msra.mxu0 0.0
    %4302 = vmatprep.subr.mxu0 0.0
    %4303 = vmatpush1.msra.mxu0 0.0
    %4304 = vmatprep.subr.mxu0 0.0
    %4305 = vmatpush1.msra.mxu0 0.0
    %4306 = vmatprep.subr.mxu0 0.0
    %4307 = vmatpush1.msra.mxu0 0.0
    %4308 = vmatprep.subr.mxu0 0.0
    %4309 = vmatpush1.msra.mxu0 0.0
    %4310 = vmatprep.subr.mxu0 0.0
    %4311 = vmatpush1.msra.mxu0 0.0
    %4312 = vmatprep.mubr.f32.mxu0 0.0
    %v4313 = vand.u32 %v4147, 4294901760
    %4314 = vmatmul.mubr.f32.gmra.mrb[0].mxu0 %v4313
    %v4315 = vpop.f32.mrb[0].mxu0
    %v4316 = vadd.f32 %v4225, %v4315
    %v4317 = vpop.f32.mrb[0].mxu0
    %4318 = vdwg.mxu0
    %4319 = vmatprep.subr.mxu0 0.0
    %v4320 = vand.u32 %v4135, 4294901760
    %v4321 = vsub.f32 %v4135, %v4320
    %4322 = vmatpush1.msra.mxu0 %v4321
    %4323 = vmatprep.subr.mxu0 0.0
    %v4324 = vand.u32 %v4136, 4294901760
    %v4325 = vsub.f32 %v4136, %v4324
    %4326 = vmatpush1.msra.mxu0 %v4325
    %4327 = vmatprep.subr.mxu0 0.0
    %v4328 = vand.u32 %v4137, 4294901760
    %v4329 = vsub.f32 %v4137, %v4328
    %4330 = vmatpush1.msra.mxu0 %v4329
    %4331 = vmatprep.subr.mxu0 0.0
    %v4332 = vand.u32 %v4138, 4294901760
    %v4333 = vsub.f32 %v4138, %v4332
    %4334 = vmatpush1.msra.mxu0 %v4333
    %4335 = vmatprep.subr.mxu0 0.0
    %4336 = vmatpush1.msra.mxu0 0.0
    %4337 = vmatprep.subr.mxu0 0.0
    %4338 = vmatpush1.msra.mxu0 0.0
    %4339 = vmatprep.subr.mxu0 0.0
    %4340 = vmatpush1.msra.mxu0 0.0
    %4341 = vmatprep.subr.mxu0 0.0
    %4342 = vmatpush1.msra.mxu0 0.0
    %4343 = vmatprep.subr.mxu0 0.0
    %4344 = vmatpush1.msra.mxu0 0.0
    %4345 = vmatprep.subr.mxu0 0.0
    %4346 = vmatpush1.msra.mxu0 0.0
    %4347 = vmatprep.subr.mxu0 0.0
    %4348 = vmatpush1.msra.mxu0 0.0
    %4349 = vmatprep.subr.mxu0 0.0
    %4350 = vmatpush1.msra.mxu0 0.0
    %4351 = vmatprep.subr.mxu0 0.0
    %4352 = vmatpush1.msra.mxu0 0.0
    %4353 = vmatprep.subr.mxu0 0.0
    %4354 = vmatpush1.msra.mxu0 0.0
    %4355 = vmatprep.subr.mxu0 0.0
    %4356 = vmatpush1.msra.mxu0 0.0
    %4357 = vmatprep.subr.mxu0 0.0
    %4358 = vmatpush1.msra.mxu0 0.0
    %4359 = vmatprep.subr.mxu0 0.0
    %4360 = vmatpush1.msra.mxu0 0.0
    %4361 = vmatprep.subr.mxu0 0.0
    %4362 = vmatpush1.msra.mxu0 0.0
    %4363 = vmatprep.subr.mxu0 0.0
    %4364 = vmatpush1.msra.mxu0 0.0
    %4365 = vmatprep.subr.mxu0 0.0
    %4366 = vmatpush1.msra.mxu0 0.0
    %4367 = vmatprep.subr.mxu0 0.0
    %4368 = vmatpush1.msra.mxu0 0.0
    %4369 = vmatprep.subr.mxu0 0.0
    %4370 = vmatpush1.msra.mxu0 0.0
    %4371 = vmatprep.subr.mxu0 0.0
    %4372 = vmatpush1.msra.mxu0 0.0
    %4373 = vmatprep.subr.mxu0 0.0
    %4374 = vmatpush1.msra.mxu0 0.0
    %4375 = vmatprep.subr.mxu0 0.0
    %4376 = vmatpush1.msra.mxu0 0.0
    %4377 = vmatprep.subr.mxu0 0.0
    %4378 = vmatpush1.msra.mxu0 0.0
    %4379 = vmatprep.subr.mxu0 0.0
    %4380 = vmatpush1.msra.mxu0 0.0
    %4381 = vmatprep.subr.mxu0 0.0
    %4382 = vmatpush1.msra.mxu0 0.0
    %4383 = vmatprep.subr.mxu0 0.0
    %4384 = vmatpush1.msra.mxu0 0.0
    %4385 = vmatprep.subr.mxu0 0.0
    %4386 = vmatpush1.msra.mxu0 0.0
    %4387 = vmatprep.subr.mxu0 0.0
    %4388 = vmatpush1.msra.mxu0 0.0
    %4389 = vmatprep.subr.mxu0 0.0
    %4390 = vmatpush1.msra.mxu0 0.0
    %4391 = vmatprep.mubr.f32.mxu0 0.0
    %v4392 = vand.u32 %v4147, 4294901760
    %v4393 = vsub.f32 %v4147, %v4392
    %4394 = vmatmul.mubr.f32.gmra.mrb[0].mxu0 %v4393
    %v4395 = vpop.f32.mrb[0].mxu0
    %v4396 = vadd.f32 %v4316, %v4395
    %v4397 = vpop.f32.mrb[0].mxu0
    %4398 = vdwg.mxu0
    %4399 = vmatprep.subr.mxu0 0.0
    %v4400 = vand.u32 %v4135, 4294901760
    %4401 = vmatpush1.msra.mxu0 %v4400
    %4402 = vmatprep.subr.mxu0 0.0
    %v4403 = vand.u32 %v4136, 4294901760
    %4404 = vmatpush1.msra.mxu0 %v4403
    %4405 = vmatprep.subr.mxu0 0.0
    %v4406 = vand.u32 %v4137, 4294901760
    %4407 = vmatpush1.msra.mxu0 %v4406
    %4408 = vmatprep.subr.mxu0 0.0
    %v4409 = vand.u32 %v4138, 4294901760
    %4410 = vmatpush1.msra.mxu0 %v4409
    %4411 = vmatprep.subr.mxu0 0.0
    %4412 = vmatpush1.msra.mxu0 0.0
    %4413 = vmatprep.subr.mxu0 0.0
    %4414 = vmatpush1.msra.mxu0 0.0
    %4415 = vmatprep.subr.mxu0 0.0
    %4416 = vmatpush1.msra.mxu0 0.0
    %4417 = vmatprep.subr.mxu0 0.0
    %4418 = vmatpush1.msra.mxu0 0.0
    %4419 = vmatprep.subr.mxu0 0.0
    %4420 = vmatpush1.msra.mxu0 0.0
    %4421 = vmatprep.subr.mxu0 0.0
    %4422 = vmatpush1.msra.mxu0 0.0
    %4423 = vmatprep.subr.mxu0 0.0
    %4424 = vmatpush1.msra.mxu0 0.0
    %4425 = vmatprep.subr.mxu0 0.0
    %4426 = vmatpush1.msra.mxu0 0.0
    %4427 = vmatprep.subr.mxu0 0.0
    %4428 = vmatpush1.msra.mxu0 0.0
    %4429 = vmatprep.subr.mxu0 0.0
    %4430 = vmatpush1.msra.mxu0 0.0
    %4431 = vmatprep.subr.mxu0 0.0
    %4432 = vmatpush1.msra.mxu0 0.0
    %4433 = vmatprep.subr.mxu0 0.0
    %4434 = vmatpush1.msra.mxu0 0.0
    %4435 = vmatprep.subr.mxu0 0.0
    %4436 = vmatpush1.msra.mxu0 0.0
    %4437 = vmatprep.subr.mxu0 0.0
    %4438 = vmatpush1.msra.mxu0 0.0
    %4439 = vmatprep.subr.mxu0 0.0
    %4440 = vmatpush1.msra.mxu0 0.0
    %4441 = vmatprep.subr.mxu0 0.0
    %4442 = vmatpush1.msra.mxu0 0.0
    %4443 = vmatprep.subr.mxu0 0.0
    %4444 = vmatpush1.msra.mxu0 0.0
    %4445 = vmatprep.subr.mxu0 0.0
    %4446 = vmatpush1.msra.mxu0 0.0
    %4447 = vmatprep.subr.mxu0 0.0
    %4448 = vmatpush1.msra.mxu0 0.0
    %4449 = vmatprep.subr.mxu0 0.0
    %4450 = vmatpush1.msra.mxu0 0.0
    %4451 = vmatprep.subr.mxu0 0.0
    %4452 = vmatpush1.msra.mxu0 0.0
    %4453 = vmatprep.subr.mxu0 0.0
    %4454 = vmatpush1.msra.mxu0 0.0
    %4455 = vmatprep.subr.mxu0 0.0
    %4456 = vmatpush1.msra.mxu0 0.0
    %4457 = vmatprep.subr.mxu0 0.0
    %4458 = vmatpush1.msra.mxu0 0.0
    %4459 = vmatprep.subr.mxu0 0.0
    %4460 = vmatpush1.msra.mxu0 0.0
    %4461 = vmatprep.subr.mxu0 0.0
    %4462 = vmatpush1.msra.mxu0 0.0
    %4463 = vmatprep.subr.mxu0 0.0
    %4464 = vmatpush1.msra.mxu0 0.0
    %4465 = vmatprep.subr.mxu0 0.0
    %4466 = vmatpush1.msra.mxu0 0.0
    %4467 = vmatprep.mubr.f32.mxu0 0.0
    %v4468 = vand.u32 %v4147, 4294901760
    %v4469 = vsub.f32 %v4147, %v4468
    %v4470 = vand.u32 %v4469, 4294901760
    %4471 = vmatmul.mubr.f32.gmra.mrb[0].mxu0 %v4470
    %v4472 = vpop.f32.mrb[0].mxu0
    %v4473 = vadd.f32 %v4396, %v4472
    %v4474 = vpop.f32.mrb[0].mxu0
    %4475 = vdwg.mxu0
    %4476 = vmatprep.subr.mxu0 0.0
    %v4477 = vand.u32 %v4135, 4294901760
    %v4478 = vsub.f32 %v4135, %v4477
    %v4479 = vand.u32 %v4478, 4294901760
    %4480 = vmatpush1.msra.mxu0 %v4479
    %4481 = vmatprep.subr.mxu0 0.0
    %v4482 = vand.u32 %v4136, 4294901760
    %v4483 = vsub.f32 %v4136, %v4482
    %v4484 = vand.u32 %v4483, 4294901760
    %4485 = vmatpush1.msra.mxu0 %v4484
    %4486 = vmatprep.subr.mxu0 0.0
    %v4487 = vand.u32 %v4137, 4294901760
    %v4488 = vsub.f32 %v4137, %v4487
    %v4489 = vand.u32 %v4488, 4294901760
    %4490 = vmatpush1.msra.mxu0 %v4489
    %4491 = vmatprep.subr.mxu0 0.0
    %v4492 = vand.u32 %v4138, 4294901760
    %v4493 = vsub.f32 %v4138, %v4492
    %v4494 = vand.u32 %v4493, 4294901760
    %4495 = vmatpush1.msra.mxu0 %v4494
    %4496 = vmatprep.subr.mxu0 0.0
    %4497 = vmatpush1.msra.mxu0 0.0
    %4498 = vmatprep.subr.mxu0 0.0
    %4499 = vmatpush1.msra.mxu0 0.0
    %4500 = vmatprep.subr.mxu0 0.0
    %4501 = vmatpush1.msra.mxu0 0.0
    %4502 = vmatprep.subr.mxu0 0.0
    %4503 = vmatpush1.msra.mxu0 0.0
    %4504 = vmatprep.subr.mxu0 0.0
    %4505 = vmatpush1.msra.mxu0 0.0
    %4506 = vmatprep.subr.mxu0 0.0
    %4507 = vmatpush1.msra.mxu0 0.0
    %4508 = vmatprep.subr.mxu0 0.0
    %4509 = vmatpush1.msra.mxu0 0.0
    %4510 = vmatprep.subr.mxu0 0.0
    %4511 = vmatpush1.msra.mxu0 0.0
    %4512 = vmatprep.subr.mxu0 0.0
    %4513 = vmatpush1.msra.mxu0 0.0
    %4514 = vmatprep.subr.mxu0 0.0
    %4515 = vmatpush1.msra.mxu0 0.0
    %4516 = vmatprep.subr.mxu0 0.0
    %4517 = vmatpush1.msra.mxu0 0.0
    %4518 = vmatprep.subr.mxu0 0.0
    %4519 = vmatpush1.msra.mxu0 0.0
    %4520 = vmatprep.subr.mxu0 0.0
    %4521 = vmatpush1.msra.mxu0 0.0
    %4522 = vmatprep.subr.mxu0 0.0
    %4523 = vmatpush1.msra.mxu0 0.0
    %4524 = vmatprep.subr.mxu0 0.0
    %4525 = vmatpush1.msra.mxu0 0.0
    %4526 = vmatprep.subr.mxu0 0.0
    %4527 = vmatpush1.msra.mxu0 0.0
    %4528 = vmatprep.subr.mxu0 0.0
    %4529 = vmatpush1.msra.mxu0 0.0
    %4530 = vmatprep.subr.mxu0 0.0
    %4531 = vmatpush1.msra.mxu0 0.0
    %4532 = vmatprep.subr.mxu0 0.0
    %4533 = vmatpush1.msra.mxu0 0.0
    %4534 = vmatprep.subr.mxu0 0.0
    %4535 = vmatpush1.msra.mxu0 0.0
    %4536 = vmatprep.subr.mxu0 0.0
    %4537 = vmatpush1.msra.mxu0 0.0
    %4538 = vmatprep.subr.mxu0 0.0
    %4539 = vmatpush1.msra.mxu0 0.0
    %4540 = vmatprep.subr.mxu0 0.0
    %4541 = vmatpush1.msra.mxu0 0.0
    %4542 = vmatprep.subr.mxu0 0.0
    %4543 = vmatpush1.msra.mxu0 0.0
    %4544 = vmatprep.subr.mxu0 0.0
    %4545 = vmatpush1.msra.mxu0 0.0
    %4546 = vmatprep.subr.mxu0 0.0
    %4547 = vmatpush1.msra.mxu0 0.0
    %4548 = vmatprep.subr.mxu0 0.0
    %4549 = vmatpush1.msra.mxu0 0.0
    %4550 = vmatprep.subr.mxu0 0.0
    %4551 = vmatpush1.msra.mxu0 0.0
    %4552 = vmatprep.mubr.f32.mxu0 0.0
    %v4553 = vand.u32 %v4147, 4294901760
    %4554 = vmatmul.mubr.f32.gmra.mrb[0].mxu0 %v4553
    %v4555 = vpop.f32.mrb[0].mxu0
    %v4556 = vadd.f32 %v4473, %v4555
    %v4557 = vpop.f32.mrb[0].mxu0
    %4558 = vdwg.mxu0
    %4559 = vmatprep.subr.mxu0 0.0
    %v4560 = vand.u32 %v4135, 4294901760
    %4561 = vmatpush1.msra.mxu0 %v4560
    %4562 = vmatprep.subr.mxu0 0.0
    %v4563 = vand.u32 %v4136, 4294901760
    %4564 = vmatpush1.msra.mxu0 %v4563
    %4565 = vmatprep.subr.mxu0 0.0
    %v4566 = vand.u32 %v4137, 4294901760
    %4567 = vmatpush1.msra.mxu0 %v4566
    %4568 = vmatprep.subr.mxu0 0.0
    %v4569 = vand.u32 %v4138, 4294901760
    %4570 = vmatpush1.msra.mxu0 %v4569
    %4571 = vmatprep.subr.mxu0 0.0
    %4572 = vmatpush1.msra.mxu0 0.0
    %4573 = vmatprep.subr.mxu0 0.0
    %4574 = vmatpush1.msra.mxu0 0.0
    %4575 = vmatprep.subr.mxu0 0.0
    %4576 = vmatpush1.msra.mxu0 0.0
    %4577 = vmatprep.subr.mxu0 0.0
    %4578 = vmatpush1.msra.mxu0 0.0
    %4579 = vmatprep.subr.mxu0 0.0
    %4580 = vmatpush1.msra.mxu0 0.0
    %4581 = vmatprep.subr.mxu0 0.0
    %4582 = vmatpush1.msra.mxu0 0.0
    %4583 = vmatprep.subr.mxu0 0.0
    %4584 = vmatpush1.msra.mxu0 0.0
    %4585 = vmatprep.subr.mxu0 0.0
    %4586 = vmatpush1.msra.mxu0 0.0
    %4587 = vmatprep.subr.mxu0 0.0
    %4588 = vmatpush1.msra.mxu0 0.0
    %4589 = vmatprep.subr.mxu0 0.0
    %4590 = vmatpush1.msra.mxu0 0.0
    %4591 = vmatprep.subr.mxu0 0.0
    %4592 = vmatpush1.msra.mxu0 0.0
    %4593 = vmatprep.subr.mxu0 0.0
    %4594 = vmatpush1.msra.mxu0 0.0
    %4595 = vmatprep.subr.mxu0 0.0
    %4596 = vmatpush1.msra.mxu0 0.0
    %4597 = vmatprep.subr.mxu0 0.0
    %4598 = vmatpush1.msra.mxu0 0.0
    %4599 = vmatprep.subr.mxu0 0.0
    %4600 = vmatpush1.msra.mxu0 0.0
    %4601 = vmatprep.subr.mxu0 0.0
    %4602 = vmatpush1.msra.mxu0 0.0
    %4603 = vmatprep.subr.mxu0 0.0
    %4604 = vmatpush1.msra.mxu0 0.0
    %4605 = vmatprep.subr.mxu0 0.0
    %4606 = vmatpush1.msra.mxu0 0.0
    %4607 = vmatprep.subr.mxu0 0.0
    %4608 = vmatpush1.msra.mxu0 0.0
    %4609 = vmatprep.subr.mxu0 0.0
    %4610 = vmatpush1.msra.mxu0 0.0
    %4611 = vmatprep.subr.mxu0 0.0
    %4612 = vmatpush1.msra.mxu0 0.0
    %4613 = vmatprep.subr.mxu0 0.0
    %4614 = vmatpush1.msra.mxu0 0.0
    %4615 = vmatprep.subr.mxu0 0.0
    %4616 = vmatpush1.msra.mxu0 0.0
    %4617 = vmatprep.subr.mxu0 0.0
    %4618 = vmatpush1.msra.mxu0 0.0
    %4619 = vmatprep.subr.mxu0 0.0
    %4620 = vmatpush1.msra.mxu0 0.0
    %4621 = vmatprep.subr.mxu0 0.0
    %4622 = vmatpush1.msra.mxu0 0.0
    %4623 = vmatprep.subr.mxu0 0.0
    %4624 = vmatpush1.msra.mxu0 0.0
    %4625 = vmatprep.subr.mxu0 0.0
    %4626 = vmatpush1.msra.mxu0 0.0
    %4627 = vmatprep.mubr.f32.mxu0 0.0
    %v4628 = vand.u32 %v4147, 4294901760
    %4629 = vmatmul.mubr.f32.gmra.mrb[0].mxu0 %v4628
    %v4630 = vpop.f32.mrb[0].mxu0
    %v4631 = vadd.f32 %v4556, %v4630
    %v4632 = vpop.f32.mrb[0].mxu0
    %4633 = vdwg.mxu0
    %vm4634 = vcmask 64512
    %v4635 = vsel %vm4634, %v4631, -inf
    %4636 = vmax.xlane.f32.xlu0 %v4635
    %v4637 = vpop.xlane.xlu0 %4636
    %v4638 = vsub.f32 %v4631, %v4637
    %v4639 = vmul.f32 %v4638, 1.442695
    %v4640 = vpow.pop %v4639
    %v4641 = vsel %vm4634, %v4640, 0.0
    %4642 = vadd.xlane.f32.xlu0 %v4641
    %v4643 = vpop.xlane.xlu0 %4642
    %v4644 = vlog2.pop %v4643
    %v4645 = vmul.f32 %v4644, 0.6931472
    %v4646 = vsub.f32 %v4638, %v4645
    %4647 = vst.msk [vmem:[#allocation3] sm:$0xff] %vm4634, %v4646
    // Predicated region
    $region70: #{indrnn_forward.1} parent=1 // pred_check
      _
    $region71: #{indrnn_forward.1} parent=1 // pred_check_branch
      %4649 = sbr.rel (0) target = $region73
    $region72: #{indrnn_forward.1} parent=1 // pred_region
      %s4651 = ssub.s32 128, 128
      %4652 = vsyncadd [#allocation4], %s4651
      %s4654 = sshll.u32 [#allocation3], 4
      %s4655 = int_to_ptr.vmem [resolvable:$true] %s4654
      %4657 = dma.vmem_to_hbm [thread:$0]  %s4655, 128, %s17, [#allocation4]
    $region73: #{indrnn_forward.1} parent=1 // pred_fallthru
      _
    // Predicated region
    $region74: #{indrnn_forward.1} parent=1 // pred_check
      _
    $region75: #{indrnn_forward.1} parent=1 // pred_check_branch
      %4659 = sbr.rel (0) target = $region77
    $region76: #{indrnn_forward.1} parent=1 // pred_region
      %4660 = dma.done [#allocation4], 128
    $region77: #{indrnn_forward.1} parent=1 // pred_fallthru
      _
    %4661 = vsyncpa [#allocation4], 1

</llo_original>
